<compile_context>
chip_gen: v6e
topology: v6e:2x2x1
jax: 0.10.0
libtpu: 0.0.40
codegen_flags: <defaults>
</compile_context>

<pallas_src>
import functools

import jax
import jax.numpy as jnp
from jax.experimental import pallas as pl
from jax.experimental.pallas import tpu as pltpu

EPS = 1e-5  # PyTorch InstanceNorm2d default eps


def _boundary_masks(H, W, NB):
    """(NB, H*W) boolean masks marking first/last column and first/last row.
    Broadcast once per grid step (hoisted; JAX does not CSE broadcast_in_dim)."""
    HW = H * W
    idx = jax.lax.broadcasted_iota(jnp.int32, (1, HW), 1)
    if W & (W - 1) == 0:                      # power of two -> cheap bit ops
        wmod = jnp.bitwise_and(idx, W - 1)
    else:
        wmod = idx % W
    def bc(m):
        return jnp.broadcast_to(m, (NB, HW))
    w_first = bc(wmod == 0)
    w_last = bc(wmod == W - 1)
    h_first = bc(idx < W)
    h_last = bc(idx >= (H - 1) * W)
    return w_first, w_last, h_first, h_last


def _build_taps(x, H, W, masks):
    """x: (NB, H*W) one input channel for the whole batch block.
    Returns a list of 9 (NB, H*W) arrays, tap k = (dh, dw) with
    tap[n, h*W+w] == x[n, refl(h+dh)*W + refl(w+dw)]  (ReflectionPad2d(1)),
    built from 8 XLU lane rotations + boundary selects."""
    w_first, w_last, h_first, h_last = masks
    HW = H * W
    shifted = {}
    for a in (-1, 0, 1):
        for b in (-1, 0, 1):
            s = a * W + b
            if s == 0:
                shifted[(a, b)] = x
            else:
                # result[n, f] = x[n, (f + s) mod HW]  ==  roll by -s
                shifted[(a, b)] = pltpu.roll(x, (-s) % HW, 1)
    taps = []
    for dh in (-1, 0, 1):
        for dw in (-1, 0, 1):
            t = shifted[(dh, dw)]
            if dw != 0:
                cmask = w_first if dw == -1 else w_last
                t = jnp.where(cmask, shifted[(dh, -dw)], t)
            if dh != 0:
                rmask = h_first if dh == -1 else h_last
                t = jnp.where(rmask, shifted[(-dh, dw)], t)
                if dw != 0:
                    t = jnp.where(jnp.logical_and(rmask, cmask),
                                  shifted[(-dh, -dw)], t)
            taps.append(t)
    return taps


def _conv_layer(x_chans, w_ref, g_ref, be_ref, c_in, c_out, H, W, masks, relu):
    """ReflectionPad(1) -> 3x3 conv -> InstanceNorm(affine) [-> ReLU] on a
    batch block given as per-channel (NB, H*W) slabs.  Returns c_out slabs.

    Loop structure: outer over input channels (taps built once per ci, shared
    by every output channel), inner over output channels accumulating into
    c_out persistent (NB, H*W) accumulators -> at most 9 taps live at a time.
    Conv bias is omitted: InstanceNorm's mean subtraction cancels it exactly.
    """
    NB, HW = x_chans[0].shape
    accs = [jnp.zeros((NB, HW), jnp.float32) for _ in range(c_out)]
    for ci in range(c_in):
        taps = _build_taps(x_chans[ci], H, W, masks)
        for co in range(c_out):
            base = (co * c_in + ci) * 9
            a = accs[co]
            for k in range(9):
                a = a + w_ref[base + k] * taps[k]
            accs[co] = a
    out = []
    for co in range(c_out):
        a = accs[co]
        mean = jnp.mean(a, axis=-1, keepdims=True)            # (NB, 1)
        d = a - mean
        var = jnp.mean(d * d, axis=-1, keepdims=True)          # biased var (PyTorch IN)
        scale = g_ref[co] * jax.lax.rsqrt(var + EPS)            # rsqrt -> EUP (free slot)
        y = d * scale + be_ref[co]
        if relu:
            y = jnp.maximum(y, 0.0)
        out.append(y)
    return out


def res_kernel(x_ref, w1_ref, g1_ref, be1_ref, w2_ref, g2_ref, be2_ref,
               o_ref, *, H, W):
    # x_ref: (Cin,  NB, H*W) VMEM   channel-major, lane/sublane-dense batch block
    # o_ref: (Cout, NB, H*W) VMEM
    # w*_ref: flat (Cout*Cin*9,) SMEM conv weights (row-major OIHW)
    # g*/be*_ref: (Cout,)       SMEM InstanceNorm affine params
    Cin, NB, _ = x_ref.shape
    Cout = o_ref.shape[0]
    masks = _boundary_masks(H, W, NB)

    x_chans = [x_ref[ci] for ci in range(Cin)]                 # (NB, HW) each
    y1 = _conv_layer(x_chans, w1_ref, g1_ref, be1_ref,
                     Cin, Cout, H, W, masks, relu=True)
    y2 = _conv_layer(y1, w2_ref, g2_ref, be2_ref,
                     Cout, Cout, H, W, masks, relu=False)

    # Residual add straight from the input block (zero-padded / truncated
    # channels handled implicitly), lane-dense per-channel stores.
    for co in range(Cout):
        y = y2[co]
        if co < Cin:
            y = y + x_chans[co]
        o_ref[co] = y.astype(o_ref.dtype)


def res_forward(x, params):
    """x: (N, Cin, H, W) float32.  params: dict of conv/norm parameters
    (b1/b2 are accepted but unused: InstanceNorm cancels the conv bias)."""
    N, Cin, H, W = x.shape
    Cout = params["w1"].shape[0]
    HW = H * W
    itemsize = x.dtype.itemsize

    # Batch block = 8 images: fills the 8 sublanes of a vreg exactly while
    # keeping the 9 live tap slabs + accumulators within the 64-vreg budget.
    NB = int(min(N, 8))
    grid = (pl.cdiv(N, NB),)

    # Channel-major layout plumbing: (N, Cin, H, W) -> (Cin, N, HW) so each
    # per-channel slab is a contiguous (NB, HW) tile (lane dim = HW).
    x_cm = jnp.transpose(x.reshape(N, Cin, HW), (1, 0, 2))

    # VMEM budget derived from the actual per-step footprint:
    #   double-buffered x/out blocks + tap / y1 / accumulator spill headroom.
    blk = NB * HW * itemsize
    vmem_limit = int(2 * (Cin + Cout) * blk            # pipelined in/out blocks
                     + (9 + Cin + 3 * Cout) * blk      # taps + y1 + accs headroom
                     + (2 << 20))

    w1 = params["w1"].reshape(-1)   # (Cout*Cin*9,)  row-major OIHW
    w2 = params["w2"].reshape(-1)   # (Cout*Cout*9,)
    smem = pl.BlockSpec(memory_space=pltpu.MemorySpace.SMEM)

    out_cm = pl.pallas_call(
        functools.partial(res_kernel, H=H, W=W),
        out_shape=jax.ShapeDtypeStruct((Cout, N, HW), x.dtype),
        grid=grid,
        in_specs=[
            pl.BlockSpec((Cin, NB, HW), lambda i: (0, i, 0)),
            smem, smem, smem,          # w1, g1, be1
            smem, smem, smem,          # w2, g2, be2
        ],
        out_specs=pl.BlockSpec((Cout, NB, HW), lambda i: (0, i, 0)),
        compiler_params=pltpu.CompilerParams(
            dimension_semantics=("parallel",),
            vmem_limit_bytes=vmem_limit),
    )(x_cm,
      w1, params["g1"], params["be1"],
      w2, params["g2"], params["be2"])

    return jnp.transpose(out_cm, (1, 0, 2)).reshape(N, Cout, H, W)


def res_reference(x, params):
    """Pure-JAX reference mirroring the PyTorch forward (for validation)."""
    def block(x, w, b, g, be, relu):
        xp = jnp.pad(x, ((0, 0), (0, 0), (1, 1), (1, 1)), mode="reflect")
        y = jax.lax.conv_general_dilated(
            xp, w, window_strides=(1, 1), padding="VALID",
            dimension_numbers=("NCHW", "OIHW", "NCHW"))
        y = y + b[None, :, None, None]
        mean = jnp.mean(y, axis=(2, 3), keepdims=True)
        var = jnp.mean(jnp.square(y - mean), axis=(2, 3), keepdims=True)
        y = (y - mean) * jax.lax.rsqrt(var + EPS)
        y = y * g[None, :, None, None] + be[None, :, None, None]
        return jnp.maximum(y, 0.0) if relu else y

    Cin = x.shape[1]
    Cout = params["w1"].shape[0]
    y = block(x, params["w1"], params["b1"], params["g1"], params["be1"], True)
    y = block(y, params["w2"], params["b2"], params["g2"], params["be2"], False)
    residual = x if Cin == Cout else jnp.pad(
        x, ((0, 0), (0, Cout - Cin), (0, 0), (0, 0)))
    return y + residual


if __name__ == "__main__":
    # Small shapes consistent with Res(in_channels=4, out_channels=4).
    N, Cin, Cout, H, W = 2, 4, 4, 16, 16

    key = jax.random.PRNGKey(0)
    kx, kw1, kb1, kg1, kbe1, kw2, kb2, kg2, kbe2 = jax.random.split(key, 9)

    x = jax.random.normal(kx, (N, Cin, H, W), jnp.float32)
    params = dict(
        w1=jax.random.normal(kw1, (Cout, Cin, 3, 3), jnp.float32) * 0.2,
        b1=jax.random.normal(kb1, (Cout,), jnp.float32) * 0.1,
        g1=1.0 + 0.1 * jax.random.normal(kg1, (Cout,), jnp.float32),
        be1=0.1 * jax.random.normal(kbe1, (Cout,), jnp.float32),
        w2=jax.random.normal(kw2, (Cout, Cout, 3, 3), jnp.float32) * 0.2,
        b2=jax.random.normal(kb2, (Cout,), jnp.float32) * 0.1,
        g2=1.0 + 0.1 * jax.random.normal(kg2, (Cout,), jnp.float32),
        be2=0.1 * jax.random.normal(kbe2, (Cout,), jnp.float32),
    )

    out = jax.block_until_ready(res_forward(x, params))
    assert out.shape == (N, Cout, H, W)

    ref = res_reference(x, params)
    max_err = float(jnp.max(jnp.abs(out - ref)))
    assert max_err < 1e-3, f"mismatch vs reference: {max_err}"

    print("KERNEL_OK")
</pallas_src>

<mosaic_0001>
module attributes {stable_mosaic.version = 11 : i64} {
  func.func @res_kernel(%arg0: i32, %arg1: memref<4x2x256xf32, #tpu.memory_space<vmem>>, %arg2: memref<144xf32, #tpu.memory_space<smem>>, %arg3: memref<4xf32, #tpu.memory_space<smem>>, %arg4: memref<4xf32, #tpu.memory_space<smem>>, %arg5: memref<144xf32, #tpu.memory_space<smem>>, %arg6: memref<4xf32, #tpu.memory_space<smem>>, %arg7: memref<4xf32, #tpu.memory_space<smem>>, %arg8: memref<4x2x256xf32, #tpu.memory_space<vmem>>) attributes {dimension_semantics = [#tpu.dimension_semantics<parallel>], iteration_bounds = array<i64: 1>, scalar_prefetch = 0 : i64, scratch_operands = 0 : i64, tpu.core_type = #tpu.core_type<tc>, window_params = [{transform_indices = @transform_0, window_bounds = array<i64: 4, 2, 256>}, {transform_indices = @transform_1, window_bounds = array<i64: 144>}, {transform_indices = @transform_2, window_bounds = array<i64: 4>}, {transform_indices = @transform_3, window_bounds = array<i64: 4>}, {transform_indices = @transform_4, window_bounds = array<i64: 144>}, {transform_indices = @transform_5, window_bounds = array<i64: 4>}, {transform_indices = @transform_6, window_bounds = array<i64: 4>}, {transform_indices = @transform_7, window_bounds = array<i64: 4, 2, 256>}]} {
    %0 = tpu.iota {dimensions = array<i32: 1>} : vector<1x256xi32>
    %c15_i32 = arith.constant 15 : i32
    %1 = vector.broadcast %c15_i32 : i32 to vector<1x256xi32>
    %2 = arith.andi %0, %1 : vector<1x256xi32>
    %c0_i32 = arith.constant 0 : i32
    %3 = vector.broadcast %c0_i32 : i32 to vector<1x256xi32>
    %4 = arith.cmpi eq, %2, %3 : vector<1x256xi32>
    %5 = vector.shape_cast %4 : vector<1x256xi1> to vector<1x256xi1>
    %6 = vector.broadcast %5 : vector<1x256xi1> to vector<2x256xi1>
    %c15_i32_0 = arith.constant 15 : i32
    %7 = vector.broadcast %c15_i32_0 : i32 to vector<1x256xi32>
    %8 = arith.cmpi eq, %2, %7 : vector<1x256xi32>
    %9 = vector.shape_cast %8 : vector<1x256xi1> to vector<1x256xi1>
    %10 = vector.broadcast %9 : vector<1x256xi1> to vector<2x256xi1>
    %c16_i32 = arith.constant 16 : i32
    %11 = vector.broadcast %c16_i32 : i32 to vector<1x256xi32>
    %12 = arith.cmpi slt, %0, %11 : vector<1x256xi32>
    %13 = vector.shape_cast %12 : vector<1x256xi1> to vector<1x256xi1>
    %14 = vector.broadcast %13 : vector<1x256xi1> to vector<2x256xi1>
    %c240_i32 = arith.constant 240 : i32
    %15 = vector.broadcast %c240_i32 : i32 to vector<1x256xi32>
    %16 = arith.cmpi sge, %0, %15 : vector<1x256xi32>
    %17 = vector.shape_cast %16 : vector<1x256xi1> to vector<1x256xi1>
    %18 = vector.broadcast %17 : vector<1x256xi1> to vector<2x256xi1>
    %c0 = arith.constant 0 : index
    %c0_1 = arith.constant 0 : index
    %c0_2 = arith.constant 0 : index
    %19 = vector.load %arg1[%c0, %c0_1, %c0_2] : memref<4x2x256xf32, #tpu.memory_space<vmem>>, vector<1x2x256xf32>
    %20 = vector.shape_cast %19 : vector<1x2x256xf32> to vector<2x256xf32>
    %c1 = arith.constant 1 : index
    %c0_3 = arith.constant 0 : index
    %c0_4 = arith.constant 0 : index
    %21 = vector.load %arg1[%c1, %c0_3, %c0_4] : memref<4x2x256xf32, #tpu.memory_space<vmem>>, vector<1x2x256xf32>
    %22 = vector.shape_cast %21 : vector<1x2x256xf32> to vector<2x256xf32>
    %c2 = arith.constant 2 : index
    %c0_5 = arith.constant 0 : index
    %c0_6 = arith.constant 0 : index
    %23 = vector.load %arg1[%c2, %c0_5, %c0_6] : memref<4x2x256xf32, #tpu.memory_space<vmem>>, vector<1x2x256xf32>
    %24 = vector.shape_cast %23 : vector<1x2x256xf32> to vector<2x256xf32>
    %c3 = arith.constant 3 : index
    %c0_7 = arith.constant 0 : index
    %c0_8 = arith.constant 0 : index
    %25 = vector.load %arg1[%c3, %c0_7, %c0_8] : memref<4x2x256xf32, #tpu.memory_space<vmem>>, vector<1x2x256xf32>
    %26 = vector.shape_cast %25 : vector<1x2x256xf32> to vector<2x256xf32>
    %cst = arith.constant 0.000000e+00 : f32
    %27 = vector.broadcast %cst : f32 to vector<2x256xf32>
    %cst_9 = arith.constant 0.000000e+00 : f32
    %28 = vector.broadcast %cst_9 : f32 to vector<2x256xf32>
    %cst_10 = arith.constant 0.000000e+00 : f32
    %29 = vector.broadcast %cst_10 : f32 to vector<2x256xf32>
    %cst_11 = arith.constant 0.000000e+00 : f32
    %30 = vector.broadcast %cst_11 : f32 to vector<2x256xf32>
    %c17_i32 = arith.constant 17 : i32
    %31 = tpu.dynamic_rotate %20 by %c17_i32 dim 1 : vector<2x256xf32>, i32 -> vector<2x256xf32>
    %c16_i32_12 = arith.constant 16 : i32
    %32 = tpu.dynamic_rotate %20 by %c16_i32_12 dim 1 : vector<2x256xf32>, i32 -> vector<2x256xf32>
    %c15_i32_13 = arith.constant 15 : i32
    %33 = tpu.dynamic_rotate %20 by %c15_i32_13 dim 1 : vector<2x256xf32>, i32 -> vector<2x256xf32>
    %c1_i32 = arith.constant 1 : i32
    %34 = tpu.dynamic_rotate %20 by %c1_i32 dim 1 : vector<2x256xf32>, i32 -> vector<2x256xf32>
    %c255_i32 = arith.constant 255 : i32
    %35 = tpu.dynamic_rotate %20 by %c255_i32 dim 1 : vector<2x256xf32>, i32 -> vector<2x256xf32>
    %c241_i32 = arith.constant 241 : i32
    %36 = tpu.dynamic_rotate %20 by %c241_i32 dim 1 : vector<2x256xf32>, i32 -> vector<2x256xf32>
    %c240_i32_14 = arith.constant 240 : i32
    %37 = tpu.dynamic_rotate %20 by %c240_i32_14 dim 1 : vector<2x256xf32>, i32 -> vector<2x256xf32>
    %c239_i32 = arith.constant 239 : i32
    %38 = tpu.dynamic_rotate %20 by %c239_i32 dim 1 : vector<2x256xf32>, i32 -> vector<2x256xf32>
    %39 = arith.select %6, %33, %31 : vector<2x256xi1>, vector<2x256xf32>
    %40 = arith.select %14, %36, %39 : vector<2x256xi1>, vector<2x256xf32>
    %41 = arith.andi %14, %6 : vector<2x256xi1>
    %42 = arith.select %41, %38, %40 : vector<2x256xi1>, vector<2x256xf32>
    %43 = arith.select %14, %37, %32 : vector<2x256xi1>, vector<2x256xf32>
    %44 = arith.select %10, %31, %33 : vector<2x256xi1>, vector<2x256xf32>
    %45 = arith.select %14, %38, %44 : vector<2x256xi1>, vector<2x256xf32>
    %46 = arith.andi %14, %10 : vector<2x256xi1>
    %47 = arith.select %46, %36, %45 : vector<2x256xi1>, vector<2x256xf32>
    %48 = arith.select %6, %35, %34 : vector<2x256xi1>, vector<2x256xf32>
    %49 = arith.select %10, %34, %35 : vector<2x256xi1>, vector<2x256xf32>
    %50 = arith.select %6, %38, %36 : vector<2x256xi1>, vector<2x256xf32>
    %51 = arith.select %18, %31, %50 : vector<2x256xi1>, vector<2x256xf32>
    %52 = arith.andi %18, %6 : vector<2x256xi1>
    %53 = arith.select %52, %33, %51 : vector<2x256xi1>, vector<2x256xf32>
    %54 = arith.select %18, %32, %37 : vector<2x256xi1>, vector<2x256xf32>
    %55 = arith.select %10, %36, %38 : vector<2x256xi1>, vector<2x256xf32>
    %56 = arith.select %18, %33, %55 : vector<2x256xi1>, vector<2x256xf32>
    %57 = arith.andi %18, %10 : vector<2x256xi1>
    %58 = arith.select %57, %31, %56 : vector<2x256xi1>, vector<2x256xf32>
    %c0_15 = arith.constant 0 : index
    %59 = memref.load %arg2[%c0_15] : memref<144xf32, #tpu.memory_space<smem>>
    %60 = vector.broadcast %59 : f32 to vector<2x256xf32>
    %61 = arith.mulf %60, %42 : vector<2x256xf32>
    %62 = arith.addf %27, %61 : vector<2x256xf32>
    %c1_16 = arith.constant 1 : index
    %63 = memref.load %arg2[%c1_16] : memref<144xf32, #tpu.memory_space<smem>>
    %64 = vector.broadcast %63 : f32 to vector<2x256xf32>
    %65 = arith.mulf %64, %43 : vector<2x256xf32>
    %66 = arith.addf %62, %65 : vector<2x256xf32>
    %c2_17 = arith.constant 2 : index
    %67 = memref.load %arg2[%c2_17] : memref<144xf32, #tpu.memory_space<smem>>
    %68 = vector.broadcast %67 : f32 to vector<2x256xf32>
    %69 = arith.mulf %68, %47 : vector<2x256xf32>
    %70 = arith.addf %66, %69 : vector<2x256xf32>
    %c3_18 = arith.constant 3 : index
    %71 = memref.load %arg2[%c3_18] : memref<144xf32, #tpu.memory_space<smem>>
    %72 = vector.broadcast %71 : f32 to vector<2x256xf32>
    %73 = arith.mulf %72, %48 : vector<2x256xf32>
    %74 = arith.addf %70, %73 : vector<2x256xf32>
    %c4 = arith.constant 4 : index
    %75 = memref.load %arg2[%c4] : memref<144xf32, #tpu.memory_space<smem>>
    %76 = vector.broadcast %75 : f32 to vector<2x256xf32>
    %77 = arith.mulf %76, %20 : vector<2x256xf32>
    %78 = arith.addf %74, %77 : vector<2x256xf32>
    %c5 = arith.constant 5 : index
    %79 = memref.load %arg2[%c5] : memref<144xf32, #tpu.memory_space<smem>>
    %80 = vector.broadcast %79 : f32 to vector<2x256xf32>
    %81 = arith.mulf %80, %49 : vector<2x256xf32>
    %82 = arith.addf %78, %81 : vector<2x256xf32>
    %c6 = arith.constant 6 : index
    %83 = memref.load %arg2[%c6] : memref<144xf32, #tpu.memory_space<smem>>
    %84 = vector.broadcast %83 : f32 to vector<2x256xf32>
    %85 = arith.mulf %84, %53 : vector<2x256xf32>
    %86 = arith.addf %82, %85 : vector<2x256xf32>
    %c7 = arith.constant 7 : index
    %87 = memref.load %arg2[%c7] : memref<144xf32, #tpu.memory_space<smem>>
    %88 = vector.broadcast %87 : f32 to vector<2x256xf32>
    %89 = arith.mulf %88, %54 : vector<2x256xf32>
    %90 = arith.addf %86, %89 : vector<2x256xf32>
    %c8 = arith.constant 8 : index
    %91 = memref.load %arg2[%c8] : memref<144xf32, #tpu.memory_space<smem>>
    %92 = vector.broadcast %91 : f32 to vector<2x256xf32>
    %93 = arith.mulf %92, %58 : vector<2x256xf32>
    %94 = arith.addf %90, %93 : vector<2x256xf32>
    %c36 = arith.constant 36 : index
    %95 = memref.load %arg2[%c36] : memref<144xf32, #tpu.memory_space<smem>>
    %96 = vector.broadcast %95 : f32 to vector<2x256xf32>
    %97 = arith.mulf %96, %42 : vector<2x256xf32>
    %98 = arith.addf %28, %97 : vector<2x256xf32>
    %c37 = arith.constant 37 : index
    %99 = memref.load %arg2[%c37] : memref<144xf32, #tpu.memory_space<smem>>
    %100 = vector.broadcast %99 : f32 to vector<2x256xf32>
    %101 = arith.mulf %100, %43 : vector<2x256xf32>
    %102 = arith.addf %98, %101 : vector<2x256xf32>
    %c38 = arith.constant 38 : index
    %103 = memref.load %arg2[%c38] : memref<144xf32, #tpu.memory_space<smem>>
    %104 = vector.broadcast %103 : f32 to vector<2x256xf32>
    %105 = arith.mulf %104, %47 : vector<2x256xf32>
    %106 = arith.addf %102, %105 : vector<2x256xf32>
    %c39 = arith.constant 39 : index
    %107 = memref.load %arg2[%c39] : memref<144xf32, #tpu.memory_space<smem>>
    %108 = vector.broadcast %107 : f32 to vector<2x256xf32>
    %109 = arith.mulf %108, %48 : vector<2x256xf32>
    %110 = arith.addf %106, %109 : vector<2x256xf32>
    %c40 = arith.constant 40 : index
    %111 = memref.load %arg2[%c40] : memref<144xf32, #tpu.memory_space<smem>>
    %112 = vector.broadcast %111 : f32 to vector<2x256xf32>
    %113 = arith.mulf %112, %20 : vector<2x256xf32>
    %114 = arith.addf %110, %113 : vector<2x256xf32>
    %c41 = arith.constant 41 : index
    %115 = memref.load %arg2[%c41] : memref<144xf32, #tpu.memory_space<smem>>
    %116 = vector.broadcast %115 : f32 to vector<2x256xf32>
    %117 = arith.mulf %116, %49 : vector<2x256xf32>
    %118 = arith.addf %114, %117 : vector<2x256xf32>
    %c42 = arith.constant 42 : index
    %119 = memref.load %arg2[%c42] : memref<144xf32, #tpu.memory_space<smem>>
    %120 = vector.broadcast %119 : f32 to vector<2x256xf32>
    %121 = arith.mulf %120, %53 : vector<2x256xf32>
    %122 = arith.addf %118, %121 : vector<2x256xf32>
    %c43 = arith.constant 43 : index
    %123 = memref.load %arg2[%c43] : memref<144xf32, #tpu.memory_space<smem>>
    %124 = vector.broadcast %123 : f32 to vector<2x256xf32>
    %125 = arith.mulf %124, %54 : vector<2x256xf32>
    %126 = arith.addf %122, %125 : vector<2x256xf32>
    %c44 = arith.constant 44 : index
    %127 = memref.load %arg2[%c44] : memref<144xf32, #tpu.memory_space<smem>>
    %128 = vector.broadcast %127 : f32 to vector<2x256xf32>
    %129 = arith.mulf %128, %58 : vector<2x256xf32>
    %130 = arith.addf %126, %129 : vector<2x256xf32>
    %c72 = arith.constant 72 : index
    %131 = memref.load %arg2[%c72] : memref<144xf32, #tpu.memory_space<smem>>
    %132 = vector.broadcast %131 : f32 to vector<2x256xf32>
    %133 = arith.mulf %132, %42 : vector<2x256xf32>
    %134 = arith.addf %29, %133 : vector<2x256xf32>
    %c73 = arith.constant 73 : index
    %135 = memref.load %arg2[%c73] : memref<144xf32, #tpu.memory_space<smem>>
    %136 = vector.broadcast %135 : f32 to vector<2x256xf32>
    %137 = arith.mulf %136, %43 : vector<2x256xf32>
    %138 = arith.addf %134, %137 : vector<2x256xf32>
    %c74 = arith.constant 74 : index
    %139 = memref.load %arg2[%c74] : memref<144xf32, #tpu.memory_space<smem>>
    %140 = vector.broadcast %139 : f32 to vector<2x256xf32>
    %141 = arith.mulf %140, %47 : vector<2x256xf32>
    %142 = arith.addf %138, %141 : vector<2x256xf32>
    %c75 = arith.constant 75 : index
    %143 = memref.load %arg2[%c75] : memref<144xf32, #tpu.memory_space<smem>>
    %144 = vector.broadcast %143 : f32 to vector<2x256xf32>
    %145 = arith.mulf %144, %48 : vector<2x256xf32>
    %146 = arith.addf %142, %145 : vector<2x256xf32>
    %c76 = arith.constant 76 : index
    %147 = memref.load %arg2[%c76] : memref<144xf32, #tpu.memory_space<smem>>
    %148 = vector.broadcast %147 : f32 to vector<2x256xf32>
    %149 = arith.mulf %148, %20 : vector<2x256xf32>
    %150 = arith.addf %146, %149 : vector<2x256xf32>
    %c77 = arith.constant 77 : index
    %151 = memref.load %arg2[%c77] : memref<144xf32, #tpu.memory_space<smem>>
    %152 = vector.broadcast %151 : f32 to vector<2x256xf32>
    %153 = arith.mulf %152, %49 : vector<2x256xf32>
    %154 = arith.addf %150, %153 : vector<2x256xf32>
    %c78 = arith.constant 78 : index
    %155 = memref.load %arg2[%c78] : memref<144xf32, #tpu.memory_space<smem>>
    %156 = vector.broadcast %155 : f32 to vector<2x256xf32>
    %157 = arith.mulf %156, %53 : vector<2x256xf32>
    %158 = arith.addf %154, %157 : vector<2x256xf32>
    %c79 = arith.constant 79 : index
    %159 = memref.load %arg2[%c79] : memref<144xf32, #tpu.memory_space<smem>>
    %160 = vector.broadcast %159 : f32 to vector<2x256xf32>
    %161 = arith.mulf %160, %54 : vector<2x256xf32>
    %162 = arith.addf %158, %161 : vector<2x256xf32>
    %c80 = arith.constant 80 : index
    %163 = memref.load %arg2[%c80] : memref<144xf32, #tpu.memory_space<smem>>
    %164 = vector.broadcast %163 : f32 to vector<2x256xf32>
    %165 = arith.mulf %164, %58 : vector<2x256xf32>
    %166 = arith.addf %162, %165 : vector<2x256xf32>
    %c108 = arith.constant 108 : index
    %167 = memref.load %arg2[%c108] : memref<144xf32, #tpu.memory_space<smem>>
    %168 = vector.broadcast %167 : f32 to vector<2x256xf32>
    %169 = arith.mulf %168, %42 : vector<2x256xf32>
    %170 = arith.addf %30, %169 : vector<2x256xf32>
    %c109 = arith.constant 109 : index
    %171 = memref.load %arg2[%c109] : memref<144xf32, #tpu.memory_space<smem>>
    %172 = vector.broadcast %171 : f32 to vector<2x256xf32>
    %173 = arith.mulf %172, %43 : vector<2x256xf32>
    %174 = arith.addf %170, %173 : vector<2x256xf32>
    %c110 = arith.constant 110 : index
    %175 = memref.load %arg2[%c110] : memref<144xf32, #tpu.memory_space<smem>>
    %176 = vector.broadcast %175 : f32 to vector<2x256xf32>
    %177 = arith.mulf %176, %47 : vector<2x256xf32>
    %178 = arith.addf %174, %177 : vector<2x256xf32>
    %c111 = arith.constant 111 : index
    %179 = memref.load %arg2[%c111] : memref<144xf32, #tpu.memory_space<smem>>
    %180 = vector.broadcast %179 : f32 to vector<2x256xf32>
    %181 = arith.mulf %180, %48 : vector<2x256xf32>
    %182 = arith.addf %178, %181 : vector<2x256xf32>
    %c112 = arith.constant 112 : index
    %183 = memref.load %arg2[%c112] : memref<144xf32, #tpu.memory_space<smem>>
    %184 = vector.broadcast %183 : f32 to vector<2x256xf32>
    %185 = arith.mulf %184, %20 : vector<2x256xf32>
    %186 = arith.addf %182, %185 : vector<2x256xf32>
    %c113 = arith.constant 113 : index
    %187 = memref.load %arg2[%c113] : memref<144xf32, #tpu.memory_space<smem>>
    %188 = vector.broadcast %187 : f32 to vector<2x256xf32>
    %189 = arith.mulf %188, %49 : vector<2x256xf32>
    %190 = arith.addf %186, %189 : vector<2x256xf32>
    %c114 = arith.constant 114 : index
    %191 = memref.load %arg2[%c114] : memref<144xf32, #tpu.memory_space<smem>>
    %192 = vector.broadcast %191 : f32 to vector<2x256xf32>
    %193 = arith.mulf %192, %53 : vector<2x256xf32>
    %194 = arith.addf %190, %193 : vector<2x256xf32>
    %c115 = arith.constant 115 : index
    %195 = memref.load %arg2[%c115] : memref<144xf32, #tpu.memory_space<smem>>
    %196 = vector.broadcast %195 : f32 to vector<2x256xf32>
    %197 = arith.mulf %196, %54 : vector<2x256xf32>
    %198 = arith.addf %194, %197 : vector<2x256xf32>
    %c116 = arith.constant 116 : index
    %199 = memref.load %arg2[%c116] : memref<144xf32, #tpu.memory_space<smem>>
    %200 = vector.broadcast %199 : f32 to vector<2x256xf32>
    %201 = arith.mulf %200, %58 : vector<2x256xf32>
    %202 = arith.addf %198, %201 : vector<2x256xf32>
    %c17_i32_19 = arith.constant 17 : i32
    %203 = tpu.dynamic_rotate %22 by %c17_i32_19 dim 1 : vector<2x256xf32>, i32 -> vector<2x256xf32>
    %c16_i32_20 = arith.constant 16 : i32
    %204 = tpu.dynamic_rotate %22 by %c16_i32_20 dim 1 : vector<2x256xf32>, i32 -> vector<2x256xf32>
    %c15_i32_21 = arith.constant 15 : i32
    %205 = tpu.dynamic_rotate %22 by %c15_i32_21 dim 1 : vector<2x256xf32>, i32 -> vector<2x256xf32>
    %c1_i32_22 = arith.constant 1 : i32
    %206 = tpu.dynamic_rotate %22 by %c1_i32_22 dim 1 : vector<2x256xf32>, i32 -> vector<2x256xf32>
    %c255_i32_23 = arith.constant 255 : i32
    %207 = tpu.dynamic_rotate %22 by %c255_i32_23 dim 1 : vector<2x256xf32>, i32 -> vector<2x256xf32>
    %c241_i32_24 = arith.constant 241 : i32
    %208 = tpu.dynamic_rotate %22 by %c241_i32_24 dim 1 : vector<2x256xf32>, i32 -> vector<2x256xf32>
    %c240_i32_25 = arith.constant 240 : i32
    %209 = tpu.dynamic_rotate %22 by %c240_i32_25 dim 1 : vector<2x256xf32>, i32 -> vector<2x256xf32>
    %c239_i32_26 = arith.constant 239 : i32
    %210 = tpu.dynamic_rotate %22 by %c239_i32_26 dim 1 : vector<2x256xf32>, i32 -> vector<2x256xf32>
    %211 = arith.select %6, %205, %203 : vector<2x256xi1>, vector<2x256xf32>
    %212 = arith.select %14, %208, %211 : vector<2x256xi1>, vector<2x256xf32>
    %213 = arith.andi %14, %6 : vector<2x256xi1>
    %214 = arith.select %213, %210, %212 : vector<2x256xi1>, vector<2x256xf32>
    %215 = arith.select %14, %209, %204 : vector<2x256xi1>, vector<2x256xf32>
    %216 = arith.select %10, %203, %205 : vector<2x256xi1>, vector<2x256xf32>
    %217 = arith.select %14, %210, %216 : vector<2x256xi1>, vector<2x256xf32>
    %218 = arith.andi %14, %10 : vector<2x256xi1>
    %219 = arith.select %218, %208, %217 : vector<2x256xi1>, vector<2x256xf32>
    %220 = arith.select %6, %207, %206 : vector<2x256xi1>, vector<2x256xf32>
    %221 = arith.select %10, %206, %207 : vector<2x256xi1>, vector<2x256xf32>
    %222 = arith.select %6, %210, %208 : vector<2x256xi1>, vector<2x256xf32>
    %223 = arith.select %18, %203, %222 : vector<2x256xi1>, vector<2x256xf32>
    %224 = arith.andi %18, %6 : vector<2x256xi1>
    %225 = arith.select %224, %205, %223 : vector<2x256xi1>, vector<2x256xf32>
    %226 = arith.select %18, %204, %209 : vector<2x256xi1>, vector<2x256xf32>
    %227 = arith.select %10, %208, %210 : vector<2x256xi1>, vector<2x256xf32>
    %228 = arith.select %18, %205, %227 : vector<2x256xi1>, vector<2x256xf32>
    %229 = arith.andi %18, %10 : vector<2x256xi1>
    %230 = arith.select %229, %203, %228 : vector<2x256xi1>, vector<2x256xf32>
    %c9 = arith.constant 9 : index
    %231 = memref.load %arg2[%c9] : memref<144xf32, #tpu.memory_space<smem>>
    %232 = vector.broadcast %231 : f32 to vector<2x256xf32>
    %233 = arith.mulf %232, %214 : vector<2x256xf32>
    %234 = arith.addf %94, %233 : vector<2x256xf32>
    %c10 = arith.constant 10 : index
    %235 = memref.load %arg2[%c10] : memref<144xf32, #tpu.memory_space<smem>>
    %236 = vector.broadcast %235 : f32 to vector<2x256xf32>
    %237 = arith.mulf %236, %215 : vector<2x256xf32>
    %238 = arith.addf %234, %237 : vector<2x256xf32>
    %c11 = arith.constant 11 : index
    %239 = memref.load %arg2[%c11] : memref<144xf32, #tpu.memory_space<smem>>
    %240 = vector.broadcast %239 : f32 to vector<2x256xf32>
    %241 = arith.mulf %240, %219 : vector<2x256xf32>
    %242 = arith.addf %238, %241 : vector<2x256xf32>
    %c12 = arith.constant 12 : index
    %243 = memref.load %arg2[%c12] : memref<144xf32, #tpu.memory_space<smem>>
    %244 = vector.broadcast %243 : f32 to vector<2x256xf32>
    %245 = arith.mulf %244, %220 : vector<2x256xf32>
    %246 = arith.addf %242, %245 : vector<2x256xf32>
    %c13 = arith.constant 13 : index
    %247 = memref.load %arg2[%c13] : memref<144xf32, #tpu.memory_space<smem>>
    %248 = vector.broadcast %247 : f32 to vector<2x256xf32>
    %249 = arith.mulf %248, %22 : vector<2x256xf32>
    %250 = arith.addf %246, %249 : vector<2x256xf32>
    %c14 = arith.constant 14 : index
    %251 = memref.load %arg2[%c14] : memref<144xf32, #tpu.memory_space<smem>>
    %252 = vector.broadcast %251 : f32 to vector<2x256xf32>
    %253 = arith.mulf %252, %221 : vector<2x256xf32>
    %254 = arith.addf %250, %253 : vector<2x256xf32>
    %c15 = arith.constant 15 : index
    %255 = memref.load %arg2[%c15] : memref<144xf32, #tpu.memory_space<smem>>
    %256 = vector.broadcast %255 : f32 to vector<2x256xf32>
    %257 = arith.mulf %256, %225 : vector<2x256xf32>
    %258 = arith.addf %254, %257 : vector<2x256xf32>
    %c16 = arith.constant 16 : index
    %259 = memref.load %arg2[%c16] : memref<144xf32, #tpu.memory_space<smem>>
    %260 = vector.broadcast %259 : f32 to vector<2x256xf32>
    %261 = arith.mulf %260, %226 : vector<2x256xf32>
    %262 = arith.addf %258, %261 : vector<2x256xf32>
    %c17 = arith.constant 17 : index
    %263 = memref.load %arg2[%c17] : memref<144xf32, #tpu.memory_space<smem>>
    %264 = vector.broadcast %263 : f32 to vector<2x256xf32>
    %265 = arith.mulf %264, %230 : vector<2x256xf32>
    %266 = arith.addf %262, %265 : vector<2x256xf32>
    %c45 = arith.constant 45 : index
    %267 = memref.load %arg2[%c45] : memref<144xf32, #tpu.memory_space<smem>>
    %268 = vector.broadcast %267 : f32 to vector<2x256xf32>
    %269 = arith.mulf %268, %214 : vector<2x256xf32>
    %270 = arith.addf %130, %269 : vector<2x256xf32>
    %c46 = arith.constant 46 : index
    %271 = memref.load %arg2[%c46] : memref<144xf32, #tpu.memory_space<smem>>
    %272 = vector.broadcast %271 : f32 to vector<2x256xf32>
    %273 = arith.mulf %272, %215 : vector<2x256xf32>
    %274 = arith.addf %270, %273 : vector<2x256xf32>
    %c47 = arith.constant 47 : index
    %275 = memref.load %arg2[%c47] : memref<144xf32, #tpu.memory_space<smem>>
    %276 = vector.broadcast %275 : f32 to vector<2x256xf32>
    %277 = arith.mulf %276, %219 : vector<2x256xf32>
    %278 = arith.addf %274, %277 : vector<2x256xf32>
    %c48 = arith.constant 48 : index
    %279 = memref.load %arg2[%c48] : memref<144xf32, #tpu.memory_space<smem>>
    %280 = vector.broadcast %279 : f32 to vector<2x256xf32>
    %281 = arith.mulf %280, %220 : vector<2x256xf32>
    %282 = arith.addf %278, %281 : vector<2x256xf32>
    %c49 = arith.constant 49 : index
    %283 = memref.load %arg2[%c49] : memref<144xf32, #tpu.memory_space<smem>>
    %284 = vector.broadcast %283 : f32 to vector<2x256xf32>
    %285 = arith.mulf %284, %22 : vector<2x256xf32>
    %286 = arith.addf %282, %285 : vector<2x256xf32>
    %c50 = arith.constant 50 : index
    %287 = memref.load %arg2[%c50] : memref<144xf32, #tpu.memory_space<smem>>
    %288 = vector.broadcast %287 : f32 to vector<2x256xf32>
    %289 = arith.mulf %288, %221 : vector<2x256xf32>
    %290 = arith.addf %286, %289 : vector<2x256xf32>
    %c51 = arith.constant 51 : index
    %291 = memref.load %arg2[%c51] : memref<144xf32, #tpu.memory_space<smem>>
    %292 = vector.broadcast %291 : f32 to vector<2x256xf32>
    %293 = arith.mulf %292, %225 : vector<2x256xf32>
    %294 = arith.addf %290, %293 : vector<2x256xf32>
    %c52 = arith.constant 52 : index
    %295 = memref.load %arg2[%c52] : memref<144xf32, #tpu.memory_space<smem>>
    %296 = vector.broadcast %295 : f32 to vector<2x256xf32>
    %297 = arith.mulf %296, %226 : vector<2x256xf32>
    %298 = arith.addf %294, %297 : vector<2x256xf32>
    %c53 = arith.constant 53 : index
    %299 = memref.load %arg2[%c53] : memref<144xf32, #tpu.memory_space<smem>>
    %300 = vector.broadcast %299 : f32 to vector<2x256xf32>
    %301 = arith.mulf %300, %230 : vector<2x256xf32>
    %302 = arith.addf %298, %301 : vector<2x256xf32>
    %c81 = arith.constant 81 : index
    %303 = memref.load %arg2[%c81] : memref<144xf32, #tpu.memory_space<smem>>
    %304 = vector.broadcast %303 : f32 to vector<2x256xf32>
    %305 = arith.mulf %304, %214 : vector<2x256xf32>
    %306 = arith.addf %166, %305 : vector<2x256xf32>
    %c82 = arith.constant 82 : index
    %307 = memref.load %arg2[%c82] : memref<144xf32, #tpu.memory_space<smem>>
    %308 = vector.broadcast %307 : f32 to vector<2x256xf32>
    %309 = arith.mulf %308, %215 : vector<2x256xf32>
    %310 = arith.addf %306, %309 : vector<2x256xf32>
    %c83 = arith.constant 83 : index
    %311 = memref.load %arg2[%c83] : memref<144xf32, #tpu.memory_space<smem>>
    %312 = vector.broadcast %311 : f32 to vector<2x256xf32>
    %313 = arith.mulf %312, %219 : vector<2x256xf32>
    %314 = arith.addf %310, %313 : vector<2x256xf32>
    %c84 = arith.constant 84 : index
    %315 = memref.load %arg2[%c84] : memref<144xf32, #tpu.memory_space<smem>>
    %316 = vector.broadcast %315 : f32 to vector<2x256xf32>
    %317 = arith.mulf %316, %220 : vector<2x256xf32>
    %318 = arith.addf %314, %317 : vector<2x256xf32>
    %c85 = arith.constant 85 : index
    %319 = memref.load %arg2[%c85] : memref<144xf32, #tpu.memory_space<smem>>
    %320 = vector.broadcast %319 : f32 to vector<2x256xf32>
    %321 = arith.mulf %320, %22 : vector<2x256xf32>
    %322 = arith.addf %318, %321 : vector<2x256xf32>
    %c86 = arith.constant 86 : index
    %323 = memref.load %arg2[%c86] : memref<144xf32, #tpu.memory_space<smem>>
    %324 = vector.broadcast %323 : f32 to vector<2x256xf32>
    %325 = arith.mulf %324, %221 : vector<2x256xf32>
    %326 = arith.addf %322, %325 : vector<2x256xf32>
    %c87 = arith.constant 87 : index
    %327 = memref.load %arg2[%c87] : memref<144xf32, #tpu.memory_space<smem>>
    %328 = vector.broadcast %327 : f32 to vector<2x256xf32>
    %329 = arith.mulf %328, %225 : vector<2x256xf32>
    %330 = arith.addf %326, %329 : vector<2x256xf32>
    %c88 = arith.constant 88 : index
    %331 = memref.load %arg2[%c88] : memref<144xf32, #tpu.memory_space<smem>>
    %332 = vector.broadcast %331 : f32 to vector<2x256xf32>
    %333 = arith.mulf %332, %226 : vector<2x256xf32>
    %334 = arith.addf %330, %333 : vector<2x256xf32>
    %c89 = arith.constant 89 : index
    %335 = memref.load %arg2[%c89] : memref<144xf32, #tpu.memory_space<smem>>
    %336 = vector.broadcast %335 : f32 to vector<2x256xf32>
    %337 = arith.mulf %336, %230 : vector<2x256xf32>
    %338 = arith.addf %334, %337 : vector<2x256xf32>
    %c117 = arith.constant 117 : index
    %339 = memref.load %arg2[%c117] : memref<144xf32, #tpu.memory_space<smem>>
    %340 = vector.broadcast %339 : f32 to vector<2x256xf32>
    %341 = arith.mulf %340, %214 : vector<2x256xf32>
    %342 = arith.addf %202, %341 : vector<2x256xf32>
    %c118 = arith.constant 118 : index
    %343 = memref.load %arg2[%c118] : memref<144xf32, #tpu.memory_space<smem>>
    %344 = vector.broadcast %343 : f32 to vector<2x256xf32>
    %345 = arith.mulf %344, %215 : vector<2x256xf32>
    %346 = arith.addf %342, %345 : vector<2x256xf32>
    %c119 = arith.constant 119 : index
    %347 = memref.load %arg2[%c119] : memref<144xf32, #tpu.memory_space<smem>>
    %348 = vector.broadcast %347 : f32 to vector<2x256xf32>
    %349 = arith.mulf %348, %219 : vector<2x256xf32>
    %350 = arith.addf %346, %349 : vector<2x256xf32>
    %c120 = arith.constant 120 : index
    %351 = memref.load %arg2[%c120] : memref<144xf32, #tpu.memory_space<smem>>
    %352 = vector.broadcast %351 : f32 to vector<2x256xf32>
    %353 = arith.mulf %352, %220 : vector<2x256xf32>
    %354 = arith.addf %350, %353 : vector<2x256xf32>
    %c121 = arith.constant 121 : index
    %355 = memref.load %arg2[%c121] : memref<144xf32, #tpu.memory_space<smem>>
    %356 = vector.broadcast %355 : f32 to vector<2x256xf32>
    %357 = arith.mulf %356, %22 : vector<2x256xf32>
    %358 = arith.addf %354, %357 : vector<2x256xf32>
    %c122 = arith.constant 122 : index
    %359 = memref.load %arg2[%c122] : memref<144xf32, #tpu.memory_space<smem>>
    %360 = vector.broadcast %359 : f32 to vector<2x256xf32>
    %361 = arith.mulf %360, %221 : vector<2x256xf32>
    %362 = arith.addf %358, %361 : vector<2x256xf32>
    %c123 = arith.constant 123 : index
    %363 = memref.load %arg2[%c123] : memref<144xf32, #tpu.memory_space<smem>>
    %364 = vector.broadcast %363 : f32 to vector<2x256xf32>
    %365 = arith.mulf %364, %225 : vector<2x256xf32>
    %366 = arith.addf %362, %365 : vector<2x256xf32>
    %c124 = arith.constant 124 : index
    %367 = memref.load %arg2[%c124] : memref<144xf32, #tpu.memory_space<smem>>
    %368 = vector.broadcast %367 : f32 to vector<2x256xf32>
    %369 = arith.mulf %368, %226 : vector<2x256xf32>
    %370 = arith.addf %366, %369 : vector<2x256xf32>
    %c125 = arith.constant 125 : index
    %371 = memref.load %arg2[%c125] : memref<144xf32, #tpu.memory_space<smem>>
    %372 = vector.broadcast %371 : f32 to vector<2x256xf32>
    %373 = arith.mulf %372, %230 : vector<2x256xf32>
    %374 = arith.addf %370, %373 : vector<2x256xf32>
    %c17_i32_27 = arith.constant 17 : i32
    %375 = tpu.dynamic_rotate %24 by %c17_i32_27 dim 1 : vector<2x256xf32>, i32 -> vector<2x256xf32>
    %c16_i32_28 = arith.constant 16 : i32
    %376 = tpu.dynamic_rotate %24 by %c16_i32_28 dim 1 : vector<2x256xf32>, i32 -> vector<2x256xf32>
    %c15_i32_29 = arith.constant 15 : i32
    %377 = tpu.dynamic_rotate %24 by %c15_i32_29 dim 1 : vector<2x256xf32>, i32 -> vector<2x256xf32>
    %c1_i32_30 = arith.constant 1 : i32
    %378 = tpu.dynamic_rotate %24 by %c1_i32_30 dim 1 : vector<2x256xf32>, i32 -> vector<2x256xf32>
    %c255_i32_31 = arith.constant 255 : i32
    %379 = tpu.dynamic_rotate %24 by %c255_i32_31 dim 1 : vector<2x256xf32>, i32 -> vector<2x256xf32>
    %c241_i32_32 = arith.constant 241 : i32
    %380 = tpu.dynamic_rotate %24 by %c241_i32_32 dim 1 : vector<2x256xf32>, i32 -> vector<2x256xf32>
    %c240_i32_33 = arith.constant 240 : i32
    %381 = tpu.dynamic_rotate %24 by %c240_i32_33 dim 1 : vector<2x256xf32>, i32 -> vector<2x256xf32>
    %c239_i32_34 = arith.constant 239 : i32
    %382 = tpu.dynamic_rotate %24 by %c239_i32_34 dim 1 : vector<2x256xf32>, i32 -> vector<2x256xf32>
    %383 = arith.select %6, %377, %375 : vector<2x256xi1>, vector<2x256xf32>
    %384 = arith.select %14, %380, %383 : vector<2x256xi1>, vector<2x256xf32>
    %385 = arith.andi %14, %6 : vector<2x256xi1>
    %386 = arith.select %385, %382, %384 : vector<2x256xi1>, vector<2x256xf32>
    %387 = arith.select %14, %381, %376 : vector<2x256xi1>, vector<2x256xf32>
    %388 = arith.select %10, %375, %377 : vector<2x256xi1>, vector<2x256xf32>
    %389 = arith.select %14, %382, %388 : vector<2x256xi1>, vector<2x256xf32>
    %390 = arith.andi %14, %10 : vector<2x256xi1>
    %391 = arith.select %390, %380, %389 : vector<2x256xi1>, vector<2x256xf32>
    %392 = arith.select %6, %379, %378 : vector<2x256xi1>, vector<2x256xf32>
    %393 = arith.select %10, %378, %379 : vector<2x256xi1>, vector<2x256xf32>
    %394 = arith.select %6, %382, %380 : vector<2x256xi1>, vector<2x256xf32>
    %395 = arith.select %18, %375, %394 : vector<2x256xi1>, vector<2x256xf32>
    %396 = arith.andi %18, %6 : vector<2x256xi1>
    %397 = arith.select %396, %377, %395 : vector<2x256xi1>, vector<2x256xf32>
    %398 = arith.select %18, %376, %381 : vector<2x256xi1>, vector<2x256xf32>
    %399 = arith.select %10, %380, %382 : vector<2x256xi1>, vector<2x256xf32>
    %400 = arith.select %18, %377, %399 : vector<2x256xi1>, vector<2x256xf32>
    %401 = arith.andi %18, %10 : vector<2x256xi1>
    %402 = arith.select %401, %375, %400 : vector<2x256xi1>, vector<2x256xf32>
    %c18 = arith.constant 18 : index
    %403 = memref.load %arg2[%c18] : memref<144xf32, #tpu.memory_space<smem>>
    %404 = vector.broadcast %403 : f32 to vector<2x256xf32>
    %405 = arith.mulf %404, %386 : vector<2x256xf32>
    %406 = arith.addf %266, %405 : vector<2x256xf32>
    %c19 = arith.constant 19 : index
    %407 = memref.load %arg2[%c19] : memref<144xf32, #tpu.memory_space<smem>>
    %408 = vector.broadcast %407 : f32 to vector<2x256xf32>
    %409 = arith.mulf %408, %387 : vector<2x256xf32>
    %410 = arith.addf %406, %409 : vector<2x256xf32>
    %c20 = arith.constant 20 : index
    %411 = memref.load %arg2[%c20] : memref<144xf32, #tpu.memory_space<smem>>
    %412 = vector.broadcast %411 : f32 to vector<2x256xf32>
    %413 = arith.mulf %412, %391 : vector<2x256xf32>
    %414 = arith.addf %410, %413 : vector<2x256xf32>
    %c21 = arith.constant 21 : index
    %415 = memref.load %arg2[%c21] : memref<144xf32, #tpu.memory_space<smem>>
    %416 = vector.broadcast %415 : f32 to vector<2x256xf32>
    %417 = arith.mulf %416, %392 : vector<2x256xf32>
    %418 = arith.addf %414, %417 : vector<2x256xf32>
    %c22 = arith.constant 22 : index
    %419 = memref.load %arg2[%c22] : memref<144xf32, #tpu.memory_space<smem>>
    %420 = vector.broadcast %419 : f32 to vector<2x256xf32>
    %421 = arith.mulf %420, %24 : vector<2x256xf32>
    %422 = arith.addf %418, %421 : vector<2x256xf32>
    %c23 = arith.constant 23 : index
    %423 = memref.load %arg2[%c23] : memref<144xf32, #tpu.memory_space<smem>>
    %424 = vector.broadcast %423 : f32 to vector<2x256xf32>
    %425 = arith.mulf %424, %393 : vector<2x256xf32>
    %426 = arith.addf %422, %425 : vector<2x256xf32>
    %c24 = arith.constant 24 : index
    %427 = memref.load %arg2[%c24] : memref<144xf32, #tpu.memory_space<smem>>
    %428 = vector.broadcast %427 : f32 to vector<2x256xf32>
    %429 = arith.mulf %428, %397 : vector<2x256xf32>
    %430 = arith.addf %426, %429 : vector<2x256xf32>
    %c25 = arith.constant 25 : index
    %431 = memref.load %arg2[%c25] : memref<144xf32, #tpu.memory_space<smem>>
    %432 = vector.broadcast %431 : f32 to vector<2x256xf32>
    %433 = arith.mulf %432, %398 : vector<2x256xf32>
    %434 = arith.addf %430, %433 : vector<2x256xf32>
    %c26 = arith.constant 26 : index
    %435 = memref.load %arg2[%c26] : memref<144xf32, #tpu.memory_space<smem>>
    %436 = vector.broadcast %435 : f32 to vector<2x256xf32>
    %437 = arith.mulf %436, %402 : vector<2x256xf32>
    %438 = arith.addf %434, %437 : vector<2x256xf32>
    %c54 = arith.constant 54 : index
    %439 = memref.load %arg2[%c54] : memref<144xf32, #tpu.memory_space<smem>>
    %440 = vector.broadcast %439 : f32 to vector<2x256xf32>
    %441 = arith.mulf %440, %386 : vector<2x256xf32>
    %442 = arith.addf %302, %441 : vector<2x256xf32>
    %c55 = arith.constant 55 : index
    %443 = memref.load %arg2[%c55] : memref<144xf32, #tpu.memory_space<smem>>
    %444 = vector.broadcast %443 : f32 to vector<2x256xf32>
    %445 = arith.mulf %444, %387 : vector<2x256xf32>
    %446 = arith.addf %442, %445 : vector<2x256xf32>
    %c56 = arith.constant 56 : index
    %447 = memref.load %arg2[%c56] : memref<144xf32, #tpu.memory_space<smem>>
    %448 = vector.broadcast %447 : f32 to vector<2x256xf32>
    %449 = arith.mulf %448, %391 : vector<2x256xf32>
    %450 = arith.addf %446, %449 : vector<2x256xf32>
    %c57 = arith.constant 57 : index
    %451 = memref.load %arg2[%c57] : memref<144xf32, #tpu.memory_space<smem>>
    %452 = vector.broadcast %451 : f32 to vector<2x256xf32>
    %453 = arith.mulf %452, %392 : vector<2x256xf32>
    %454 = arith.addf %450, %453 : vector<2x256xf32>
    %c58 = arith.constant 58 : index
    %455 = memref.load %arg2[%c58] : memref<144xf32, #tpu.memory_space<smem>>
    %456 = vector.broadcast %455 : f32 to vector<2x256xf32>
    %457 = arith.mulf %456, %24 : vector<2x256xf32>
    %458 = arith.addf %454, %457 : vector<2x256xf32>
    %c59 = arith.constant 59 : index
    %459 = memref.load %arg2[%c59] : memref<144xf32, #tpu.memory_space<smem>>
    %460 = vector.broadcast %459 : f32 to vector<2x256xf32>
    %461 = arith.mulf %460, %393 : vector<2x256xf32>
    %462 = arith.addf %458, %461 : vector<2x256xf32>
    %c60 = arith.constant 60 : index
    %463 = memref.load %arg2[%c60] : memref<144xf32, #tpu.memory_space<smem>>
    %464 = vector.broadcast %463 : f32 to vector<2x256xf32>
    %465 = arith.mulf %464, %397 : vector<2x256xf32>
    %466 = arith.addf %462, %465 : vector<2x256xf32>
    %c61 = arith.constant 61 : index
    %467 = memref.load %arg2[%c61] : memref<144xf32, #tpu.memory_space<smem>>
    %468 = vector.broadcast %467 : f32 to vector<2x256xf32>
    %469 = arith.mulf %468, %398 : vector<2x256xf32>
    %470 = arith.addf %466, %469 : vector<2x256xf32>
    %c62 = arith.constant 62 : index
    %471 = memref.load %arg2[%c62] : memref<144xf32, #tpu.memory_space<smem>>
    %472 = vector.broadcast %471 : f32 to vector<2x256xf32>
    %473 = arith.mulf %472, %402 : vector<2x256xf32>
    %474 = arith.addf %470, %473 : vector<2x256xf32>
    %c90 = arith.constant 90 : index
    %475 = memref.load %arg2[%c90] : memref<144xf32, #tpu.memory_space<smem>>
    %476 = vector.broadcast %475 : f32 to vector<2x256xf32>
    %477 = arith.mulf %476, %386 : vector<2x256xf32>
    %478 = arith.addf %338, %477 : vector<2x256xf32>
    %c91 = arith.constant 91 : index
    %479 = memref.load %arg2[%c91] : memref<144xf32, #tpu.memory_space<smem>>
    %480 = vector.broadcast %479 : f32 to vector<2x256xf32>
    %481 = arith.mulf %480, %387 : vector<2x256xf32>
    %482 = arith.addf %478, %481 : vector<2x256xf32>
    %c92 = arith.constant 92 : index
    %483 = memref.load %arg2[%c92] : memref<144xf32, #tpu.memory_space<smem>>
    %484 = vector.broadcast %483 : f32 to vector<2x256xf32>
    %485 = arith.mulf %484, %391 : vector<2x256xf32>
    %486 = arith.addf %482, %485 : vector<2x256xf32>
    %c93 = arith.constant 93 : index
    %487 = memref.load %arg2[%c93] : memref<144xf32, #tpu.memory_space<smem>>
    %488 = vector.broadcast %487 : f32 to vector<2x256xf32>
    %489 = arith.mulf %488, %392 : vector<2x256xf32>
    %490 = arith.addf %486, %489 : vector<2x256xf32>
    %c94 = arith.constant 94 : index
    %491 = memref.load %arg2[%c94] : memref<144xf32, #tpu.memory_space<smem>>
    %492 = vector.broadcast %491 : f32 to vector<2x256xf32>
    %493 = arith.mulf %492, %24 : vector<2x256xf32>
    %494 = arith.addf %490, %493 : vector<2x256xf32>
    %c95 = arith.constant 95 : index
    %495 = memref.load %arg2[%c95] : memref<144xf32, #tpu.memory_space<smem>>
    %496 = vector.broadcast %495 : f32 to vector<2x256xf32>
    %497 = arith.mulf %496, %393 : vector<2x256xf32>
    %498 = arith.addf %494, %497 : vector<2x256xf32>
    %c96 = arith.constant 96 : index
    %499 = memref.load %arg2[%c96] : memref<144xf32, #tpu.memory_space<smem>>
    %500 = vector.broadcast %499 : f32 to vector<2x256xf32>
    %501 = arith.mulf %500, %397 : vector<2x256xf32>
    %502 = arith.addf %498, %501 : vector<2x256xf32>
    %c97 = arith.constant 97 : index
    %503 = memref.load %arg2[%c97] : memref<144xf32, #tpu.memory_space<smem>>
    %504 = vector.broadcast %503 : f32 to vector<2x256xf32>
    %505 = arith.mulf %504, %398 : vector<2x256xf32>
    %506 = arith.addf %502, %505 : vector<2x256xf32>
    %c98 = arith.constant 98 : index
    %507 = memref.load %arg2[%c98] : memref<144xf32, #tpu.memory_space<smem>>
    %508 = vector.broadcast %507 : f32 to vector<2x256xf32>
    %509 = arith.mulf %508, %402 : vector<2x256xf32>
    %510 = arith.addf %506, %509 : vector<2x256xf32>
    %c126 = arith.constant 126 : index
    %511 = memref.load %arg2[%c126] : memref<144xf32, #tpu.memory_space<smem>>
    %512 = vector.broadcast %511 : f32 to vector<2x256xf32>
    %513 = arith.mulf %512, %386 : vector<2x256xf32>
    %514 = arith.addf %374, %513 : vector<2x256xf32>
    %c127 = arith.constant 127 : index
    %515 = memref.load %arg2[%c127] : memref<144xf32, #tpu.memory_space<smem>>
    %516 = vector.broadcast %515 : f32 to vector<2x256xf32>
    %517 = arith.mulf %516, %387 : vector<2x256xf32>
    %518 = arith.addf %514, %517 : vector<2x256xf32>
    %c128 = arith.constant 128 : index
    %519 = memref.load %arg2[%c128] : memref<144xf32, #tpu.memory_space<smem>>
    %520 = vector.broadcast %519 : f32 to vector<2x256xf32>
    %521 = arith.mulf %520, %391 : vector<2x256xf32>
    %522 = arith.addf %518, %521 : vector<2x256xf32>
    %c129 = arith.constant 129 : index
    %523 = memref.load %arg2[%c129] : memref<144xf32, #tpu.memory_space<smem>>
    %524 = vector.broadcast %523 : f32 to vector<2x256xf32>
    %525 = arith.mulf %524, %392 : vector<2x256xf32>
    %526 = arith.addf %522, %525 : vector<2x256xf32>
    %c130 = arith.constant 130 : index
    %527 = memref.load %arg2[%c130] : memref<144xf32, #tpu.memory_space<smem>>
    %528 = vector.broadcast %527 : f32 to vector<2x256xf32>
    %529 = arith.mulf %528, %24 : vector<2x256xf32>
    %530 = arith.addf %526, %529 : vector<2x256xf32>
    %c131 = arith.constant 131 : index
    %531 = memref.load %arg2[%c131] : memref<144xf32, #tpu.memory_space<smem>>
    %532 = vector.broadcast %531 : f32 to vector<2x256xf32>
    %533 = arith.mulf %532, %393 : vector<2x256xf32>
    %534 = arith.addf %530, %533 : vector<2x256xf32>
    %c132 = arith.constant 132 : index
    %535 = memref.load %arg2[%c132] : memref<144xf32, #tpu.memory_space<smem>>
    %536 = vector.broadcast %535 : f32 to vector<2x256xf32>
    %537 = arith.mulf %536, %397 : vector<2x256xf32>
    %538 = arith.addf %534, %537 : vector<2x256xf32>
    %c133 = arith.constant 133 : index
    %539 = memref.load %arg2[%c133] : memref<144xf32, #tpu.memory_space<smem>>
    %540 = vector.broadcast %539 : f32 to vector<2x256xf32>
    %541 = arith.mulf %540, %398 : vector<2x256xf32>
    %542 = arith.addf %538, %541 : vector<2x256xf32>
    %c134 = arith.constant 134 : index
    %543 = memref.load %arg2[%c134] : memref<144xf32, #tpu.memory_space<smem>>
    %544 = vector.broadcast %543 : f32 to vector<2x256xf32>
    %545 = arith.mulf %544, %402 : vector<2x256xf32>
    %546 = arith.addf %542, %545 : vector<2x256xf32>
    %c17_i32_35 = arith.constant 17 : i32
    %547 = tpu.dynamic_rotate %26 by %c17_i32_35 dim 1 : vector<2x256xf32>, i32 -> vector<2x256xf32>
    %c16_i32_36 = arith.constant 16 : i32
    %548 = tpu.dynamic_rotate %26 by %c16_i32_36 dim 1 : vector<2x256xf32>, i32 -> vector<2x256xf32>
    %c15_i32_37 = arith.constant 15 : i32
    %549 = tpu.dynamic_rotate %26 by %c15_i32_37 dim 1 : vector<2x256xf32>, i32 -> vector<2x256xf32>
    %c1_i32_38 = arith.constant 1 : i32
    %550 = tpu.dynamic_rotate %26 by %c1_i32_38 dim 1 : vector<2x256xf32>, i32 -> vector<2x256xf32>
    %c255_i32_39 = arith.constant 255 : i32
    %551 = tpu.dynamic_rotate %26 by %c255_i32_39 dim 1 : vector<2x256xf32>, i32 -> vector<2x256xf32>
    %c241_i32_40 = arith.constant 241 : i32
    %552 = tpu.dynamic_rotate %26 by %c241_i32_40 dim 1 : vector<2x256xf32>, i32 -> vector<2x256xf32>
    %c240_i32_41 = arith.constant 240 : i32
    %553 = tpu.dynamic_rotate %26 by %c240_i32_41 dim 1 : vector<2x256xf32>, i32 -> vector<2x256xf32>
    %c239_i32_42 = arith.constant 239 : i32
    %554 = tpu.dynamic_rotate %26 by %c239_i32_42 dim 1 : vector<2x256xf32>, i32 -> vector<2x256xf32>
    %555 = arith.select %6, %549, %547 : vector<2x256xi1>, vector<2x256xf32>
    %556 = arith.select %14, %552, %555 : vector<2x256xi1>, vector<2x256xf32>
    %557 = arith.andi %14, %6 : vector<2x256xi1>
    %558 = arith.select %557, %554, %556 : vector<2x256xi1>, vector<2x256xf32>
    %559 = arith.select %14, %553, %548 : vector<2x256xi1>, vector<2x256xf32>
    %560 = arith.select %10, %547, %549 : vector<2x256xi1>, vector<2x256xf32>
    %561 = arith.select %14, %554, %560 : vector<2x256xi1>, vector<2x256xf32>
    %562 = arith.andi %14, %10 : vector<2x256xi1>
    %563 = arith.select %562, %552, %561 : vector<2x256xi1>, vector<2x256xf32>
    %564 = arith.select %6, %551, %550 : vector<2x256xi1>, vector<2x256xf32>
    %565 = arith.select %10, %550, %551 : vector<2x256xi1>, vector<2x256xf32>
    %566 = arith.select %6, %554, %552 : vector<2x256xi1>, vector<2x256xf32>
    %567 = arith.select %18, %547, %566 : vector<2x256xi1>, vector<2x256xf32>
    %568 = arith.andi %18, %6 : vector<2x256xi1>
    %569 = arith.select %568, %549, %567 : vector<2x256xi1>, vector<2x256xf32>
    %570 = arith.select %18, %548, %553 : vector<2x256xi1>, vector<2x256xf32>
    %571 = arith.select %10, %552, %554 : vector<2x256xi1>, vector<2x256xf32>
    %572 = arith.select %18, %549, %571 : vector<2x256xi1>, vector<2x256xf32>
    %573 = arith.andi %18, %10 : vector<2x256xi1>
    %574 = arith.select %573, %547, %572 : vector<2x256xi1>, vector<2x256xf32>
    %c27 = arith.constant 27 : index
    %575 = memref.load %arg2[%c27] : memref<144xf32, #tpu.memory_space<smem>>
    %576 = vector.broadcast %575 : f32 to vector<2x256xf32>
    %577 = arith.mulf %576, %558 : vector<2x256xf32>
    %578 = arith.addf %438, %577 : vector<2x256xf32>
    %c28 = arith.constant 28 : index
    %579 = memref.load %arg2[%c28] : memref<144xf32, #tpu.memory_space<smem>>
    %580 = vector.broadcast %579 : f32 to vector<2x256xf32>
    %581 = arith.mulf %580, %559 : vector<2x256xf32>
    %582 = arith.addf %578, %581 : vector<2x256xf32>
    %c29 = arith.constant 29 : index
    %583 = memref.load %arg2[%c29] : memref<144xf32, #tpu.memory_space<smem>>
    %584 = vector.broadcast %583 : f32 to vector<2x256xf32>
    %585 = arith.mulf %584, %563 : vector<2x256xf32>
    %586 = arith.addf %582, %585 : vector<2x256xf32>
    %c30 = arith.constant 30 : index
    %587 = memref.load %arg2[%c30] : memref<144xf32, #tpu.memory_space<smem>>
    %588 = vector.broadcast %587 : f32 to vector<2x256xf32>
    %589 = arith.mulf %588, %564 : vector<2x256xf32>
    %590 = arith.addf %586, %589 : vector<2x256xf32>
    %c31 = arith.constant 31 : index
    %591 = memref.load %arg2[%c31] : memref<144xf32, #tpu.memory_space<smem>>
    %592 = vector.broadcast %591 : f32 to vector<2x256xf32>
    %593 = arith.mulf %592, %26 : vector<2x256xf32>
    %594 = arith.addf %590, %593 : vector<2x256xf32>
    %c32 = arith.constant 32 : index
    %595 = memref.load %arg2[%c32] : memref<144xf32, #tpu.memory_space<smem>>
    %596 = vector.broadcast %595 : f32 to vector<2x256xf32>
    %597 = arith.mulf %596, %565 : vector<2x256xf32>
    %598 = arith.addf %594, %597 : vector<2x256xf32>
    %c33 = arith.constant 33 : index
    %599 = memref.load %arg2[%c33] : memref<144xf32, #tpu.memory_space<smem>>
    %600 = vector.broadcast %599 : f32 to vector<2x256xf32>
    %601 = arith.mulf %600, %569 : vector<2x256xf32>
    %602 = arith.addf %598, %601 : vector<2x256xf32>
    %c34 = arith.constant 34 : index
    %603 = memref.load %arg2[%c34] : memref<144xf32, #tpu.memory_space<smem>>
    %604 = vector.broadcast %603 : f32 to vector<2x256xf32>
    %605 = arith.mulf %604, %570 : vector<2x256xf32>
    %606 = arith.addf %602, %605 : vector<2x256xf32>
    %c35 = arith.constant 35 : index
    %607 = memref.load %arg2[%c35] : memref<144xf32, #tpu.memory_space<smem>>
    %608 = vector.broadcast %607 : f32 to vector<2x256xf32>
    %609 = arith.mulf %608, %574 : vector<2x256xf32>
    %610 = arith.addf %606, %609 : vector<2x256xf32>
    %c63 = arith.constant 63 : index
    %611 = memref.load %arg2[%c63] : memref<144xf32, #tpu.memory_space<smem>>
    %612 = vector.broadcast %611 : f32 to vector<2x256xf32>
    %613 = arith.mulf %612, %558 : vector<2x256xf32>
    %614 = arith.addf %474, %613 : vector<2x256xf32>
    %c64 = arith.constant 64 : index
    %615 = memref.load %arg2[%c64] : memref<144xf32, #tpu.memory_space<smem>>
    %616 = vector.broadcast %615 : f32 to vector<2x256xf32>
    %617 = arith.mulf %616, %559 : vector<2x256xf32>
    %618 = arith.addf %614, %617 : vector<2x256xf32>
    %c65 = arith.constant 65 : index
    %619 = memref.load %arg2[%c65] : memref<144xf32, #tpu.memory_space<smem>>
    %620 = vector.broadcast %619 : f32 to vector<2x256xf32>
    %621 = arith.mulf %620, %563 : vector<2x256xf32>
    %622 = arith.addf %618, %621 : vector<2x256xf32>
    %c66 = arith.constant 66 : index
    %623 = memref.load %arg2[%c66] : memref<144xf32, #tpu.memory_space<smem>>
    %624 = vector.broadcast %623 : f32 to vector<2x256xf32>
    %625 = arith.mulf %624, %564 : vector<2x256xf32>
    %626 = arith.addf %622, %625 : vector<2x256xf32>
    %c67 = arith.constant 67 : index
    %627 = memref.load %arg2[%c67] : memref<144xf32, #tpu.memory_space<smem>>
    %628 = vector.broadcast %627 : f32 to vector<2x256xf32>
    %629 = arith.mulf %628, %26 : vector<2x256xf32>
    %630 = arith.addf %626, %629 : vector<2x256xf32>
    %c68 = arith.constant 68 : index
    %631 = memref.load %arg2[%c68] : memref<144xf32, #tpu.memory_space<smem>>
    %632 = vector.broadcast %631 : f32 to vector<2x256xf32>
    %633 = arith.mulf %632, %565 : vector<2x256xf32>
    %634 = arith.addf %630, %633 : vector<2x256xf32>
    %c69 = arith.constant 69 : index
    %635 = memref.load %arg2[%c69] : memref<144xf32, #tpu.memory_space<smem>>
    %636 = vector.broadcast %635 : f32 to vector<2x256xf32>
    %637 = arith.mulf %636, %569 : vector<2x256xf32>
    %638 = arith.addf %634, %637 : vector<2x256xf32>
    %c70 = arith.constant 70 : index
    %639 = memref.load %arg2[%c70] : memref<144xf32, #tpu.memory_space<smem>>
    %640 = vector.broadcast %639 : f32 to vector<2x256xf32>
    %641 = arith.mulf %640, %570 : vector<2x256xf32>
    %642 = arith.addf %638, %641 : vector<2x256xf32>
    %c71 = arith.constant 71 : index
    %643 = memref.load %arg2[%c71] : memref<144xf32, #tpu.memory_space<smem>>
    %644 = vector.broadcast %643 : f32 to vector<2x256xf32>
    %645 = arith.mulf %644, %574 : vector<2x256xf32>
    %646 = arith.addf %642, %645 : vector<2x256xf32>
    %c99 = arith.constant 99 : index
    %647 = memref.load %arg2[%c99] : memref<144xf32, #tpu.memory_space<smem>>
    %648 = vector.broadcast %647 : f32 to vector<2x256xf32>
    %649 = arith.mulf %648, %558 : vector<2x256xf32>
    %650 = arith.addf %510, %649 : vector<2x256xf32>
    %c100 = arith.constant 100 : index
    %651 = memref.load %arg2[%c100] : memref<144xf32, #tpu.memory_space<smem>>
    %652 = vector.broadcast %651 : f32 to vector<2x256xf32>
    %653 = arith.mulf %652, %559 : vector<2x256xf32>
    %654 = arith.addf %650, %653 : vector<2x256xf32>
    %c101 = arith.constant 101 : index
    %655 = memref.load %arg2[%c101] : memref<144xf32, #tpu.memory_space<smem>>
    %656 = vector.broadcast %655 : f32 to vector<2x256xf32>
    %657 = arith.mulf %656, %563 : vector<2x256xf32>
    %658 = arith.addf %654, %657 : vector<2x256xf32>
    %c102 = arith.constant 102 : index
    %659 = memref.load %arg2[%c102] : memref<144xf32, #tpu.memory_space<smem>>
    %660 = vector.broadcast %659 : f32 to vector<2x256xf32>
    %661 = arith.mulf %660, %564 : vector<2x256xf32>
    %662 = arith.addf %658, %661 : vector<2x256xf32>
    %c103 = arith.constant 103 : index
    %663 = memref.load %arg2[%c103] : memref<144xf32, #tpu.memory_space<smem>>
    %664 = vector.broadcast %663 : f32 to vector<2x256xf32>
    %665 = arith.mulf %664, %26 : vector<2x256xf32>
    %666 = arith.addf %662, %665 : vector<2x256xf32>
    %c104 = arith.constant 104 : index
    %667 = memref.load %arg2[%c104] : memref<144xf32, #tpu.memory_space<smem>>
    %668 = vector.broadcast %667 : f32 to vector<2x256xf32>
    %669 = arith.mulf %668, %565 : vector<2x256xf32>
    %670 = arith.addf %666, %669 : vector<2x256xf32>
    %c105 = arith.constant 105 : index
    %671 = memref.load %arg2[%c105] : memref<144xf32, #tpu.memory_space<smem>>
    %672 = vector.broadcast %671 : f32 to vector<2x256xf32>
    %673 = arith.mulf %672, %569 : vector<2x256xf32>
    %674 = arith.addf %670, %673 : vector<2x256xf32>
    %c106 = arith.constant 106 : index
    %675 = memref.load %arg2[%c106] : memref<144xf32, #tpu.memory_space<smem>>
    %676 = vector.broadcast %675 : f32 to vector<2x256xf32>
    %677 = arith.mulf %676, %570 : vector<2x256xf32>
    %678 = arith.addf %674, %677 : vector<2x256xf32>
    %c107 = arith.constant 107 : index
    %679 = memref.load %arg2[%c107] : memref<144xf32, #tpu.memory_space<smem>>
    %680 = vector.broadcast %679 : f32 to vector<2x256xf32>
    %681 = arith.mulf %680, %574 : vector<2x256xf32>
    %682 = arith.addf %678, %681 : vector<2x256xf32>
    %c135 = arith.constant 135 : index
    %683 = memref.load %arg2[%c135] : memref<144xf32, #tpu.memory_space<smem>>
    %684 = vector.broadcast %683 : f32 to vector<2x256xf32>
    %685 = arith.mulf %684, %558 : vector<2x256xf32>
    %686 = arith.addf %546, %685 : vector<2x256xf32>
    %c136 = arith.constant 136 : index
    %687 = memref.load %arg2[%c136] : memref<144xf32, #tpu.memory_space<smem>>
    %688 = vector.broadcast %687 : f32 to vector<2x256xf32>
    %689 = arith.mulf %688, %559 : vector<2x256xf32>
    %690 = arith.addf %686, %689 : vector<2x256xf32>
    %c137 = arith.constant 137 : index
    %691 = memref.load %arg2[%c137] : memref<144xf32, #tpu.memory_space<smem>>
    %692 = vector.broadcast %691 : f32 to vector<2x256xf32>
    %693 = arith.mulf %692, %563 : vector<2x256xf32>
    %694 = arith.addf %690, %693 : vector<2x256xf32>
    %c138 = arith.constant 138 : index
    %695 = memref.load %arg2[%c138] : memref<144xf32, #tpu.memory_space<smem>>
    %696 = vector.broadcast %695 : f32 to vector<2x256xf32>
    %697 = arith.mulf %696, %564 : vector<2x256xf32>
    %698 = arith.addf %694, %697 : vector<2x256xf32>
    %c139 = arith.constant 139 : index
    %699 = memref.load %arg2[%c139] : memref<144xf32, #tpu.memory_space<smem>>
    %700 = vector.broadcast %699 : f32 to vector<2x256xf32>
    %701 = arith.mulf %700, %26 : vector<2x256xf32>
    %702 = arith.addf %698, %701 : vector<2x256xf32>
    %c140 = arith.constant 140 : index
    %703 = memref.load %arg2[%c140] : memref<144xf32, #tpu.memory_space<smem>>
    %704 = vector.broadcast %703 : f32 to vector<2x256xf32>
    %705 = arith.mulf %704, %565 : vector<2x256xf32>
    %706 = arith.addf %702, %705 : vector<2x256xf32>
    %c141 = arith.constant 141 : index
    %707 = memref.load %arg2[%c141] : memref<144xf32, #tpu.memory_space<smem>>
    %708 = vector.broadcast %707 : f32 to vector<2x256xf32>
    %709 = arith.mulf %708, %569 : vector<2x256xf32>
    %710 = arith.addf %706, %709 : vector<2x256xf32>
    %c142 = arith.constant 142 : index
    %711 = memref.load %arg2[%c142] : memref<144xf32, #tpu.memory_space<smem>>
    %712 = vector.broadcast %711 : f32 to vector<2x256xf32>
    %713 = arith.mulf %712, %570 : vector<2x256xf32>
    %714 = arith.addf %710, %713 : vector<2x256xf32>
    %c143 = arith.constant 143 : index
    %715 = memref.load %arg2[%c143] : memref<144xf32, #tpu.memory_space<smem>>
    %716 = vector.broadcast %715 : f32 to vector<2x256xf32>
    %717 = arith.mulf %716, %574 : vector<2x256xf32>
    %718 = arith.addf %714, %717 : vector<2x256xf32>
    %cst_43 = arith.constant dense<0.000000e+00> : vector<2xf32>
    %719 = vector.multi_reduction <add>, %610, %cst_43 [1] : vector<2x256xf32> to vector<2xf32>
    %720 = vector.shape_cast %719 : vector<2xf32> to vector<2x1xf32>
    %cst_44 = arith.constant 2.560000e+02 : f32
    %721 = vector.broadcast %cst_44 : f32 to vector<2x1xf32>
    %722 = arith.divf %720, %721 : vector<2x1xf32>
    %723 = vector.broadcast %722 : vector<2x1xf32> to vector<2x256xf32>
    %724 = arith.subf %610, %723 : vector<2x256xf32>
    %725 = arith.mulf %724, %724 : vector<2x256xf32>
    %cst_45 = arith.constant dense<0.000000e+00> : vector<2xf32>
    %726 = vector.multi_reduction <add>, %725, %cst_45 [1] : vector<2x256xf32> to vector<2xf32>
    %727 = vector.shape_cast %726 : vector<2xf32> to vector<2x1xf32>
    %cst_46 = arith.constant 2.560000e+02 : f32
    %728 = vector.broadcast %cst_46 : f32 to vector<2x1xf32>
    %729 = arith.divf %727, %728 : vector<2x1xf32>
    %c0_47 = arith.constant 0 : index
    %730 = memref.load %arg3[%c0_47] : memref<4xf32, #tpu.memory_space<smem>>
    %cst_48 = arith.constant 9.99999974E-6 : f32
    %731 = vector.broadcast %cst_48 : f32 to vector<2x1xf32>
    %732 = arith.addf %729, %731 : vector<2x1xf32>
    %733 = math.rsqrt %732 : vector<2x1xf32>
    %734 = vector.broadcast %730 : f32 to vector<2x1xf32>
    %735 = arith.mulf %734, %733 : vector<2x1xf32>
    %736 = vector.broadcast %735 : vector<2x1xf32> to vector<2x256xf32>
    %737 = arith.mulf %724, %736 : vector<2x256xf32>
    %c0_49 = arith.constant 0 : index
    %738 = memref.load %arg4[%c0_49] : memref<4xf32, #tpu.memory_space<smem>>
    %739 = vector.broadcast %738 : f32 to vector<2x256xf32>
    %740 = arith.addf %737, %739 : vector<2x256xf32>
    %cst_50 = arith.constant 0.000000e+00 : f32
    %741 = vector.broadcast %cst_50 : f32 to vector<2x256xf32>
    %742 = arith.maximumf %740, %741 : vector<2x256xf32>
    %cst_51 = arith.constant dense<0.000000e+00> : vector<2xf32>
    %743 = vector.multi_reduction <add>, %646, %cst_51 [1] : vector<2x256xf32> to vector<2xf32>
    %744 = vector.shape_cast %743 : vector<2xf32> to vector<2x1xf32>
    %cst_52 = arith.constant 2.560000e+02 : f32
    %745 = vector.broadcast %cst_52 : f32 to vector<2x1xf32>
    %746 = arith.divf %744, %745 : vector<2x1xf32>
    %747 = vector.broadcast %746 : vector<2x1xf32> to vector<2x256xf32>
    %748 = arith.subf %646, %747 : vector<2x256xf32>
    %749 = arith.mulf %748, %748 : vector<2x256xf32>
    %cst_53 = arith.constant dense<0.000000e+00> : vector<2xf32>
    %750 = vector.multi_reduction <add>, %749, %cst_53 [1] : vector<2x256xf32> to vector<2xf32>
    %751 = vector.shape_cast %750 : vector<2xf32> to vector<2x1xf32>
    %cst_54 = arith.constant 2.560000e+02 : f32
    %752 = vector.broadcast %cst_54 : f32 to vector<2x1xf32>
    %753 = arith.divf %751, %752 : vector<2x1xf32>
    %c1_55 = arith.constant 1 : index
    %754 = memref.load %arg3[%c1_55] : memref<4xf32, #tpu.memory_space<smem>>
    %cst_56 = arith.constant 9.99999974E-6 : f32
    %755 = vector.broadcast %cst_56 : f32 to vector<2x1xf32>
    %756 = arith.addf %753, %755 : vector<2x1xf32>
    %757 = math.rsqrt %756 : vector<2x1xf32>
    %758 = vector.broadcast %754 : f32 to vector<2x1xf32>
    %759 = arith.mulf %758, %757 : vector<2x1xf32>
    %760 = vector.broadcast %759 : vector<2x1xf32> to vector<2x256xf32>
    %761 = arith.mulf %748, %760 : vector<2x256xf32>
    %c1_57 = arith.constant 1 : index
    %762 = memref.load %arg4[%c1_57] : memref<4xf32, #tpu.memory_space<smem>>
    %763 = vector.broadcast %762 : f32 to vector<2x256xf32>
    %764 = arith.addf %761, %763 : vector<2x256xf32>
    %cst_58 = arith.constant 0.000000e+00 : f32
    %765 = vector.broadcast %cst_58 : f32 to vector<2x256xf32>
    %766 = arith.maximumf %764, %765 : vector<2x256xf32>
    %cst_59 = arith.constant dense<0.000000e+00> : vector<2xf32>
    %767 = vector.multi_reduction <add>, %682, %cst_59 [1] : vector<2x256xf32> to vector<2xf32>
    %768 = vector.shape_cast %767 : vector<2xf32> to vector<2x1xf32>
    %cst_60 = arith.constant 2.560000e+02 : f32
    %769 = vector.broadcast %cst_60 : f32 to vector<2x1xf32>
    %770 = arith.divf %768, %769 : vector<2x1xf32>
    %771 = vector.broadcast %770 : vector<2x1xf32> to vector<2x256xf32>
    %772 = arith.subf %682, %771 : vector<2x256xf32>
    %773 = arith.mulf %772, %772 : vector<2x256xf32>
    %cst_61 = arith.constant dense<0.000000e+00> : vector<2xf32>
    %774 = vector.multi_reduction <add>, %773, %cst_61 [1] : vector<2x256xf32> to vector<2xf32>
    %775 = vector.shape_cast %774 : vector<2xf32> to vector<2x1xf32>
    %cst_62 = arith.constant 2.560000e+02 : f32
    %776 = vector.broadcast %cst_62 : f32 to vector<2x1xf32>
    %777 = arith.divf %775, %776 : vector<2x1xf32>
    %c2_63 = arith.constant 2 : index
    %778 = memref.load %arg3[%c2_63] : memref<4xf32, #tpu.memory_space<smem>>
    %cst_64 = arith.constant 9.99999974E-6 : f32
    %779 = vector.broadcast %cst_64 : f32 to vector<2x1xf32>
    %780 = arith.addf %777, %779 : vector<2x1xf32>
    %781 = math.rsqrt %780 : vector<2x1xf32>
    %782 = vector.broadcast %778 : f32 to vector<2x1xf32>
    %783 = arith.mulf %782, %781 : vector<2x1xf32>
    %784 = vector.broadcast %783 : vector<2x1xf32> to vector<2x256xf32>
    %785 = arith.mulf %772, %784 : vector<2x256xf32>
    %c2_65 = arith.constant 2 : index
    %786 = memref.load %arg4[%c2_65] : memref<4xf32, #tpu.memory_space<smem>>
    %787 = vector.broadcast %786 : f32 to vector<2x256xf32>
    %788 = arith.addf %785, %787 : vector<2x256xf32>
    %cst_66 = arith.constant 0.000000e+00 : f32
    %789 = vector.broadcast %cst_66 : f32 to vector<2x256xf32>
    %790 = arith.maximumf %788, %789 : vector<2x256xf32>
    %cst_67 = arith.constant dense<0.000000e+00> : vector<2xf32>
    %791 = vector.multi_reduction <add>, %718, %cst_67 [1] : vector<2x256xf32> to vector<2xf32>
    %792 = vector.shape_cast %791 : vector<2xf32> to vector<2x1xf32>
    %cst_68 = arith.constant 2.560000e+02 : f32
    %793 = vector.broadcast %cst_68 : f32 to vector<2x1xf32>
    %794 = arith.divf %792, %793 : vector<2x1xf32>
    %795 = vector.broadcast %794 : vector<2x1xf32> to vector<2x256xf32>
    %796 = arith.subf %718, %795 : vector<2x256xf32>
    %797 = arith.mulf %796, %796 : vector<2x256xf32>
    %cst_69 = arith.constant dense<0.000000e+00> : vector<2xf32>
    %798 = vector.multi_reduction <add>, %797, %cst_69 [1] : vector<2x256xf32> to vector<2xf32>
    %799 = vector.shape_cast %798 : vector<2xf32> to vector<2x1xf32>
    %cst_70 = arith.constant 2.560000e+02 : f32
    %800 = vector.broadcast %cst_70 : f32 to vector<2x1xf32>
    %801 = arith.divf %799, %800 : vector<2x1xf32>
    %c3_71 = arith.constant 3 : index
    %802 = memref.load %arg3[%c3_71] : memref<4xf32, #tpu.memory_space<smem>>
    %cst_72 = arith.constant 9.99999974E-6 : f32
    %803 = vector.broadcast %cst_72 : f32 to vector<2x1xf32>
    %804 = arith.addf %801, %803 : vector<2x1xf32>
    %805 = math.rsqrt %804 : vector<2x1xf32>
    %806 = vector.broadcast %802 : f32 to vector<2x1xf32>
    %807 = arith.mulf %806, %805 : vector<2x1xf32>
    %808 = vector.broadcast %807 : vector<2x1xf32> to vector<2x256xf32>
    %809 = arith.mulf %796, %808 : vector<2x256xf32>
    %c3_73 = arith.constant 3 : index
    %810 = memref.load %arg4[%c3_73] : memref<4xf32, #tpu.memory_space<smem>>
    %811 = vector.broadcast %810 : f32 to vector<2x256xf32>
    %812 = arith.addf %809, %811 : vector<2x256xf32>
    %cst_74 = arith.constant 0.000000e+00 : f32
    %813 = vector.broadcast %cst_74 : f32 to vector<2x256xf32>
    %814 = arith.maximumf %812, %813 : vector<2x256xf32>
    %cst_75 = arith.constant 0.000000e+00 : f32
    %815 = vector.broadcast %cst_75 : f32 to vector<2x256xf32>
    %cst_76 = arith.constant 0.000000e+00 : f32
    %816 = vector.broadcast %cst_76 : f32 to vector<2x256xf32>
    %cst_77 = arith.constant 0.000000e+00 : f32
    %817 = vector.broadcast %cst_77 : f32 to vector<2x256xf32>
    %cst_78 = arith.constant 0.000000e+00 : f32
    %818 = vector.broadcast %cst_78 : f32 to vector<2x256xf32>
    %c17_i32_79 = arith.constant 17 : i32
    %819 = tpu.dynamic_rotate %742 by %c17_i32_79 dim 1 : vector<2x256xf32>, i32 -> vector<2x256xf32>
    %c16_i32_80 = arith.constant 16 : i32
    %820 = tpu.dynamic_rotate %742 by %c16_i32_80 dim 1 : vector<2x256xf32>, i32 -> vector<2x256xf32>
    %c15_i32_81 = arith.constant 15 : i32
    %821 = tpu.dynamic_rotate %742 by %c15_i32_81 dim 1 : vector<2x256xf32>, i32 -> vector<2x256xf32>
    %c1_i32_82 = arith.constant 1 : i32
    %822 = tpu.dynamic_rotate %742 by %c1_i32_82 dim 1 : vector<2x256xf32>, i32 -> vector<2x256xf32>
    %c255_i32_83 = arith.constant 255 : i32
    %823 = tpu.dynamic_rotate %742 by %c255_i32_83 dim 1 : vector<2x256xf32>, i32 -> vector<2x256xf32>
    %c241_i32_84 = arith.constant 241 : i32
    %824 = tpu.dynamic_rotate %742 by %c241_i32_84 dim 1 : vector<2x256xf32>, i32 -> vector<2x256xf32>
    %c240_i32_85 = arith.constant 240 : i32
    %825 = tpu.dynamic_rotate %742 by %c240_i32_85 dim 1 : vector<2x256xf32>, i32 -> vector<2x256xf32>
    %c239_i32_86 = arith.constant 239 : i32
    %826 = tpu.dynamic_rotate %742 by %c239_i32_86 dim 1 : vector<2x256xf32>, i32 -> vector<2x256xf32>
    %827 = arith.select %6, %821, %819 : vector<2x256xi1>, vector<2x256xf32>
    %828 = arith.select %14, %824, %827 : vector<2x256xi1>, vector<2x256xf32>
    %829 = arith.andi %14, %6 : vector<2x256xi1>
    %830 = arith.select %829, %826, %828 : vector<2x256xi1>, vector<2x256xf32>
    %831 = arith.select %14, %825, %820 : vector<2x256xi1>, vector<2x256xf32>
    %832 = arith.select %10, %819, %821 : vector<2x256xi1>, vector<2x256xf32>
    %833 = arith.select %14, %826, %832 : vector<2x256xi1>, vector<2x256xf32>
    %834 = arith.andi %14, %10 : vector<2x256xi1>
    %835 = arith.select %834, %824, %833 : vector<2x256xi1>, vector<2x256xf32>
    %836 = arith.select %6, %823, %822 : vector<2x256xi1>, vector<2x256xf32>
    %837 = arith.select %10, %822, %823 : vector<2x256xi1>, vector<2x256xf32>
    %838 = arith.select %6, %826, %824 : vector<2x256xi1>, vector<2x256xf32>
    %839 = arith.select %18, %819, %838 : vector<2x256xi1>, vector<2x256xf32>
    %840 = arith.andi %18, %6 : vector<2x256xi1>
    %841 = arith.select %840, %821, %839 : vector<2x256xi1>, vector<2x256xf32>
    %842 = arith.select %18, %820, %825 : vector<2x256xi1>, vector<2x256xf32>
    %843 = arith.select %10, %824, %826 : vector<2x256xi1>, vector<2x256xf32>
    %844 = arith.select %18, %821, %843 : vector<2x256xi1>, vector<2x256xf32>
    %845 = arith.andi %18, %10 : vector<2x256xi1>
    %846 = arith.select %845, %819, %844 : vector<2x256xi1>, vector<2x256xf32>
    %c0_87 = arith.constant 0 : index
    %847 = memref.load %arg5[%c0_87] : memref<144xf32, #tpu.memory_space<smem>>
    %848 = vector.broadcast %847 : f32 to vector<2x256xf32>
    %849 = arith.mulf %848, %830 : vector<2x256xf32>
    %850 = arith.addf %815, %849 : vector<2x256xf32>
    %c1_88 = arith.constant 1 : index
    %851 = memref.load %arg5[%c1_88] : memref<144xf32, #tpu.memory_space<smem>>
    %852 = vector.broadcast %851 : f32 to vector<2x256xf32>
    %853 = arith.mulf %852, %831 : vector<2x256xf32>
    %854 = arith.addf %850, %853 : vector<2x256xf32>
    %c2_89 = arith.constant 2 : index
    %855 = memref.load %arg5[%c2_89] : memref<144xf32, #tpu.memory_space<smem>>
    %856 = vector.broadcast %855 : f32 to vector<2x256xf32>
    %857 = arith.mulf %856, %835 : vector<2x256xf32>
    %858 = arith.addf %854, %857 : vector<2x256xf32>
    %c3_90 = arith.constant 3 : index
    %859 = memref.load %arg5[%c3_90] : memref<144xf32, #tpu.memory_space<smem>>
    %860 = vector.broadcast %859 : f32 to vector<2x256xf32>
    %861 = arith.mulf %860, %836 : vector<2x256xf32>
    %862 = arith.addf %858, %861 : vector<2x256xf32>
    %c4_91 = arith.constant 4 : index
    %863 = memref.load %arg5[%c4_91] : memref<144xf32, #tpu.memory_space<smem>>
    %864 = vector.broadcast %863 : f32 to vector<2x256xf32>
    %865 = arith.mulf %864, %742 : vector<2x256xf32>
    %866 = arith.addf %862, %865 : vector<2x256xf32>
    %c5_92 = arith.constant 5 : index
    %867 = memref.load %arg5[%c5_92] : memref<144xf32, #tpu.memory_space<smem>>
    %868 = vector.broadcast %867 : f32 to vector<2x256xf32>
    %869 = arith.mulf %868, %837 : vector<2x256xf32>
    %870 = arith.addf %866, %869 : vector<2x256xf32>
    %c6_93 = arith.constant 6 : index
    %871 = memref.load %arg5[%c6_93] : memref<144xf32, #tpu.memory_space<smem>>
    %872 = vector.broadcast %871 : f32 to vector<2x256xf32>
    %873 = arith.mulf %872, %841 : vector<2x256xf32>
    %874 = arith.addf %870, %873 : vector<2x256xf32>
    %c7_94 = arith.constant 7 : index
    %875 = memref.load %arg5[%c7_94] : memref<144xf32, #tpu.memory_space<smem>>
    %876 = vector.broadcast %875 : f32 to vector<2x256xf32>
    %877 = arith.mulf %876, %842 : vector<2x256xf32>
    %878 = arith.addf %874, %877 : vector<2x256xf32>
    %c8_95 = arith.constant 8 : index
    %879 = memref.load %arg5[%c8_95] : memref<144xf32, #tpu.memory_space<smem>>
    %880 = vector.broadcast %879 : f32 to vector<2x256xf32>
    %881 = arith.mulf %880, %846 : vector<2x256xf32>
    %882 = arith.addf %878, %881 : vector<2x256xf32>
    %c36_96 = arith.constant 36 : index
    %883 = memref.load %arg5[%c36_96] : memref<144xf32, #tpu.memory_space<smem>>
    %884 = vector.broadcast %883 : f32 to vector<2x256xf32>
    %885 = arith.mulf %884, %830 : vector<2x256xf32>
    %886 = arith.addf %816, %885 : vector<2x256xf32>
    %c37_97 = arith.constant 37 : index
    %887 = memref.load %arg5[%c37_97] : memref<144xf32, #tpu.memory_space<smem>>
    %888 = vector.broadcast %887 : f32 to vector<2x256xf32>
    %889 = arith.mulf %888, %831 : vector<2x256xf32>
    %890 = arith.addf %886, %889 : vector<2x256xf32>
    %c38_98 = arith.constant 38 : index
    %891 = memref.load %arg5[%c38_98] : memref<144xf32, #tpu.memory_space<smem>>
    %892 = vector.broadcast %891 : f32 to vector<2x256xf32>
    %893 = arith.mulf %892, %835 : vector<2x256xf32>
    %894 = arith.addf %890, %893 : vector<2x256xf32>
    %c39_99 = arith.constant 39 : index
    %895 = memref.load %arg5[%c39_99] : memref<144xf32, #tpu.memory_space<smem>>
    %896 = vector.broadcast %895 : f32 to vector<2x256xf32>
    %897 = arith.mulf %896, %836 : vector<2x256xf32>
    %898 = arith.addf %894, %897 : vector<2x256xf32>
    %c40_100 = arith.constant 40 : index
    %899 = memref.load %arg5[%c40_100] : memref<144xf32, #tpu.memory_space<smem>>
    %900 = vector.broadcast %899 : f32 to vector<2x256xf32>
    %901 = arith.mulf %900, %742 : vector<2x256xf32>
    %902 = arith.addf %898, %901 : vector<2x256xf32>
    %c41_101 = arith.constant 41 : index
    %903 = memref.load %arg5[%c41_101] : memref<144xf32, #tpu.memory_space<smem>>
    %904 = vector.broadcast %903 : f32 to vector<2x256xf32>
    %905 = arith.mulf %904, %837 : vector<2x256xf32>
    %906 = arith.addf %902, %905 : vector<2x256xf32>
    %c42_102 = arith.constant 42 : index
    %907 = memref.load %arg5[%c42_102] : memref<144xf32, #tpu.memory_space<smem>>
    %908 = vector.broadcast %907 : f32 to vector<2x256xf32>
    %909 = arith.mulf %908, %841 : vector<2x256xf32>
    %910 = arith.addf %906, %909 : vector<2x256xf32>
    %c43_103 = arith.constant 43 : index
    %911 = memref.load %arg5[%c43_103] : memref<144xf32, #tpu.memory_space<smem>>
    %912 = vector.broadcast %911 : f32 to vector<2x256xf32>
    %913 = arith.mulf %912, %842 : vector<2x256xf32>
    %914 = arith.addf %910, %913 : vector<2x256xf32>
    %c44_104 = arith.constant 44 : index
    %915 = memref.load %arg5[%c44_104] : memref<144xf32, #tpu.memory_space<smem>>
    %916 = vector.broadcast %915 : f32 to vector<2x256xf32>
    %917 = arith.mulf %916, %846 : vector<2x256xf32>
    %918 = arith.addf %914, %917 : vector<2x256xf32>
    %c72_105 = arith.constant 72 : index
    %919 = memref.load %arg5[%c72_105] : memref<144xf32, #tpu.memory_space<smem>>
    %920 = vector.broadcast %919 : f32 to vector<2x256xf32>
    %921 = arith.mulf %920, %830 : vector<2x256xf32>
    %922 = arith.addf %817, %921 : vector<2x256xf32>
    %c73_106 = arith.constant 73 : index
    %923 = memref.load %arg5[%c73_106] : memref<144xf32, #tpu.memory_space<smem>>
    %924 = vector.broadcast %923 : f32 to vector<2x256xf32>
    %925 = arith.mulf %924, %831 : vector<2x256xf32>
    %926 = arith.addf %922, %925 : vector<2x256xf32>
    %c74_107 = arith.constant 74 : index
    %927 = memref.load %arg5[%c74_107] : memref<144xf32, #tpu.memory_space<smem>>
    %928 = vector.broadcast %927 : f32 to vector<2x256xf32>
    %929 = arith.mulf %928, %835 : vector<2x256xf32>
    %930 = arith.addf %926, %929 : vector<2x256xf32>
    %c75_108 = arith.constant 75 : index
    %931 = memref.load %arg5[%c75_108] : memref<144xf32, #tpu.memory_space<smem>>
    %932 = vector.broadcast %931 : f32 to vector<2x256xf32>
    %933 = arith.mulf %932, %836 : vector<2x256xf32>
    %934 = arith.addf %930, %933 : vector<2x256xf32>
    %c76_109 = arith.constant 76 : index
    %935 = memref.load %arg5[%c76_109] : memref<144xf32, #tpu.memory_space<smem>>
    %936 = vector.broadcast %935 : f32 to vector<2x256xf32>
    %937 = arith.mulf %936, %742 : vector<2x256xf32>
    %938 = arith.addf %934, %937 : vector<2x256xf32>
    %c77_110 = arith.constant 77 : index
    %939 = memref.load %arg5[%c77_110] : memref<144xf32, #tpu.memory_space<smem>>
    %940 = vector.broadcast %939 : f32 to vector<2x256xf32>
    %941 = arith.mulf %940, %837 : vector<2x256xf32>
    %942 = arith.addf %938, %941 : vector<2x256xf32>
    %c78_111 = arith.constant 78 : index
    %943 = memref.load %arg5[%c78_111] : memref<144xf32, #tpu.memory_space<smem>>
    %944 = vector.broadcast %943 : f32 to vector<2x256xf32>
    %945 = arith.mulf %944, %841 : vector<2x256xf32>
    %946 = arith.addf %942, %945 : vector<2x256xf32>
    %c79_112 = arith.constant 79 : index
    %947 = memref.load %arg5[%c79_112] : memref<144xf32, #tpu.memory_space<smem>>
    %948 = vector.broadcast %947 : f32 to vector<2x256xf32>
    %949 = arith.mulf %948, %842 : vector<2x256xf32>
    %950 = arith.addf %946, %949 : vector<2x256xf32>
    %c80_113 = arith.constant 80 : index
    %951 = memref.load %arg5[%c80_113] : memref<144xf32, #tpu.memory_space<smem>>
    %952 = vector.broadcast %951 : f32 to vector<2x256xf32>
    %953 = arith.mulf %952, %846 : vector<2x256xf32>
    %954 = arith.addf %950, %953 : vector<2x256xf32>
    %c108_114 = arith.constant 108 : index
    %955 = memref.load %arg5[%c108_114] : memref<144xf32, #tpu.memory_space<smem>>
    %956 = vector.broadcast %955 : f32 to vector<2x256xf32>
    %957 = arith.mulf %956, %830 : vector<2x256xf32>
    %958 = arith.addf %818, %957 : vector<2x256xf32>
    %c109_115 = arith.constant 109 : index
    %959 = memref.load %arg5[%c109_115] : memref<144xf32, #tpu.memory_space<smem>>
    %960 = vector.broadcast %959 : f32 to vector<2x256xf32>
    %961 = arith.mulf %960, %831 : vector<2x256xf32>
    %962 = arith.addf %958, %961 : vector<2x256xf32>
    %c110_116 = arith.constant 110 : index
    %963 = memref.load %arg5[%c110_116] : memref<144xf32, #tpu.memory_space<smem>>
    %964 = vector.broadcast %963 : f32 to vector<2x256xf32>
    %965 = arith.mulf %964, %835 : vector<2x256xf32>
    %966 = arith.addf %962, %965 : vector<2x256xf32>
    %c111_117 = arith.constant 111 : index
    %967 = memref.load %arg5[%c111_117] : memref<144xf32, #tpu.memory_space<smem>>
    %968 = vector.broadcast %967 : f32 to vector<2x256xf32>
    %969 = arith.mulf %968, %836 : vector<2x256xf32>
    %970 = arith.addf %966, %969 : vector<2x256xf32>
    %c112_118 = arith.constant 112 : index
    %971 = memref.load %arg5[%c112_118] : memref<144xf32, #tpu.memory_space<smem>>
    %972 = vector.broadcast %971 : f32 to vector<2x256xf32>
    %973 = arith.mulf %972, %742 : vector<2x256xf32>
    %974 = arith.addf %970, %973 : vector<2x256xf32>
    %c113_119 = arith.constant 113 : index
    %975 = memref.load %arg5[%c113_119] : memref<144xf32, #tpu.memory_space<smem>>
    %976 = vector.broadcast %975 : f32 to vector<2x256xf32>
    %977 = arith.mulf %976, %837 : vector<2x256xf32>
    %978 = arith.addf %974, %977 : vector<2x256xf32>
    %c114_120 = arith.constant 114 : index
    %979 = memref.load %arg5[%c114_120] : memref<144xf32, #tpu.memory_space<smem>>
    %980 = vector.broadcast %979 : f32 to vector<2x256xf32>
    %981 = arith.mulf %980, %841 : vector<2x256xf32>
    %982 = arith.addf %978, %981 : vector<2x256xf32>
    %c115_121 = arith.constant 115 : index
    %983 = memref.load %arg5[%c115_121] : memref<144xf32, #tpu.memory_space<smem>>
    %984 = vector.broadcast %983 : f32 to vector<2x256xf32>
    %985 = arith.mulf %984, %842 : vector<2x256xf32>
    %986 = arith.addf %982, %985 : vector<2x256xf32>
    %c116_122 = arith.constant 116 : index
    %987 = memref.load %arg5[%c116_122] : memref<144xf32, #tpu.memory_space<smem>>
    %988 = vector.broadcast %987 : f32 to vector<2x256xf32>
    %989 = arith.mulf %988, %846 : vector<2x256xf32>
    %990 = arith.addf %986, %989 : vector<2x256xf32>
    %c17_i32_123 = arith.constant 17 : i32
    %991 = tpu.dynamic_rotate %766 by %c17_i32_123 dim 1 : vector<2x256xf32>, i32 -> vector<2x256xf32>
    %c16_i32_124 = arith.constant 16 : i32
    %992 = tpu.dynamic_rotate %766 by %c16_i32_124 dim 1 : vector<2x256xf32>, i32 -> vector<2x256xf32>
    %c15_i32_125 = arith.constant 15 : i32
    %993 = tpu.dynamic_rotate %766 by %c15_i32_125 dim 1 : vector<2x256xf32>, i32 -> vector<2x256xf32>
    %c1_i32_126 = arith.constant 1 : i32
    %994 = tpu.dynamic_rotate %766 by %c1_i32_126 dim 1 : vector<2x256xf32>, i32 -> vector<2x256xf32>
    %c255_i32_127 = arith.constant 255 : i32
    %995 = tpu.dynamic_rotate %766 by %c255_i32_127 dim 1 : vector<2x256xf32>, i32 -> vector<2x256xf32>
    %c241_i32_128 = arith.constant 241 : i32
    %996 = tpu.dynamic_rotate %766 by %c241_i32_128 dim 1 : vector<2x256xf32>, i32 -> vector<2x256xf32>
    %c240_i32_129 = arith.constant 240 : i32
    %997 = tpu.dynamic_rotate %766 by %c240_i32_129 dim 1 : vector<2x256xf32>, i32 -> vector<2x256xf32>
    %c239_i32_130 = arith.constant 239 : i32
    %998 = tpu.dynamic_rotate %766 by %c239_i32_130 dim 1 : vector<2x256xf32>, i32 -> vector<2x256xf32>
    %999 = arith.select %6, %993, %991 : vector<2x256xi1>, vector<2x256xf32>
    %1000 = arith.select %14, %996, %999 : vector<2x256xi1>, vector<2x256xf32>
    %1001 = arith.andi %14, %6 : vector<2x256xi1>
    %1002 = arith.select %1001, %998, %1000 : vector<2x256xi1>, vector<2x256xf32>
    %1003 = arith.select %14, %997, %992 : vector<2x256xi1>, vector<2x256xf32>
    %1004 = arith.select %10, %991, %993 : vector<2x256xi1>, vector<2x256xf32>
    %1005 = arith.select %14, %998, %1004 : vector<2x256xi1>, vector<2x256xf32>
    %1006 = arith.andi %14, %10 : vector<2x256xi1>
    %1007 = arith.select %1006, %996, %1005 : vector<2x256xi1>, vector<2x256xf32>
    %1008 = arith.select %6, %995, %994 : vector<2x256xi1>, vector<2x256xf32>
    %1009 = arith.select %10, %994, %995 : vector<2x256xi1>, vector<2x256xf32>
    %1010 = arith.select %6, %998, %996 : vector<2x256xi1>, vector<2x256xf32>
    %1011 = arith.select %18, %991, %1010 : vector<2x256xi1>, vector<2x256xf32>
    %1012 = arith.andi %18, %6 : vector<2x256xi1>
    %1013 = arith.select %1012, %993, %1011 : vector<2x256xi1>, vector<2x256xf32>
    %1014 = arith.select %18, %992, %997 : vector<2x256xi1>, vector<2x256xf32>
    %1015 = arith.select %10, %996, %998 : vector<2x256xi1>, vector<2x256xf32>
    %1016 = arith.select %18, %993, %1015 : vector<2x256xi1>, vector<2x256xf32>
    %1017 = arith.andi %18, %10 : vector<2x256xi1>
    %1018 = arith.select %1017, %991, %1016 : vector<2x256xi1>, vector<2x256xf32>
    %c9_131 = arith.constant 9 : index
    %1019 = memref.load %arg5[%c9_131] : memref<144xf32, #tpu.memory_space<smem>>
    %1020 = vector.broadcast %1019 : f32 to vector<2x256xf32>
    %1021 = arith.mulf %1020, %1002 : vector<2x256xf32>
    %1022 = arith.addf %882, %1021 : vector<2x256xf32>
    %c10_132 = arith.constant 10 : index
    %1023 = memref.load %arg5[%c10_132] : memref<144xf32, #tpu.memory_space<smem>>
    %1024 = vector.broadcast %1023 : f32 to vector<2x256xf32>
    %1025 = arith.mulf %1024, %1003 : vector<2x256xf32>
    %1026 = arith.addf %1022, %1025 : vector<2x256xf32>
    %c11_133 = arith.constant 11 : index
    %1027 = memref.load %arg5[%c11_133] : memref<144xf32, #tpu.memory_space<smem>>
    %1028 = vector.broadcast %1027 : f32 to vector<2x256xf32>
    %1029 = arith.mulf %1028, %1007 : vector<2x256xf32>
    %1030 = arith.addf %1026, %1029 : vector<2x256xf32>
    %c12_134 = arith.constant 12 : index
    %1031 = memref.load %arg5[%c12_134] : memref<144xf32, #tpu.memory_space<smem>>
    %1032 = vector.broadcast %1031 : f32 to vector<2x256xf32>
    %1033 = arith.mulf %1032, %1008 : vector<2x256xf32>
    %1034 = arith.addf %1030, %1033 : vector<2x256xf32>
    %c13_135 = arith.constant 13 : index
    %1035 = memref.load %arg5[%c13_135] : memref<144xf32, #tpu.memory_space<smem>>
    %1036 = vector.broadcast %1035 : f32 to vector<2x256xf32>
    %1037 = arith.mulf %1036, %766 : vector<2x256xf32>
    %1038 = arith.addf %1034, %1037 : vector<2x256xf32>
    %c14_136 = arith.constant 14 : index
    %1039 = memref.load %arg5[%c14_136] : memref<144xf32, #tpu.memory_space<smem>>
    %1040 = vector.broadcast %1039 : f32 to vector<2x256xf32>
    %1041 = arith.mulf %1040, %1009 : vector<2x256xf32>
    %1042 = arith.addf %1038, %1041 : vector<2x256xf32>
    %c15_137 = arith.constant 15 : index
    %1043 = memref.load %arg5[%c15_137] : memref<144xf32, #tpu.memory_space<smem>>
    %1044 = vector.broadcast %1043 : f32 to vector<2x256xf32>
    %1045 = arith.mulf %1044, %1013 : vector<2x256xf32>
    %1046 = arith.addf %1042, %1045 : vector<2x256xf32>
    %c16_138 = arith.constant 16 : index
    %1047 = memref.load %arg5[%c16_138] : memref<144xf32, #tpu.memory_space<smem>>
    %1048 = vector.broadcast %1047 : f32 to vector<2x256xf32>
    %1049 = arith.mulf %1048, %1014 : vector<2x256xf32>
    %1050 = arith.addf %1046, %1049 : vector<2x256xf32>
    %c17_139 = arith.constant 17 : index
    %1051 = memref.load %arg5[%c17_139] : memref<144xf32, #tpu.memory_space<smem>>
    %1052 = vector.broadcast %1051 : f32 to vector<2x256xf32>
    %1053 = arith.mulf %1052, %1018 : vector<2x256xf32>
    %1054 = arith.addf %1050, %1053 : vector<2x256xf32>
    %c45_140 = arith.constant 45 : index
    %1055 = memref.load %arg5[%c45_140] : memref<144xf32, #tpu.memory_space<smem>>
    %1056 = vector.broadcast %1055 : f32 to vector<2x256xf32>
    %1057 = arith.mulf %1056, %1002 : vector<2x256xf32>
    %1058 = arith.addf %918, %1057 : vector<2x256xf32>
    %c46_141 = arith.constant 46 : index
    %1059 = memref.load %arg5[%c46_141] : memref<144xf32, #tpu.memory_space<smem>>
    %1060 = vector.broadcast %1059 : f32 to vector<2x256xf32>
    %1061 = arith.mulf %1060, %1003 : vector<2x256xf32>
    %1062 = arith.addf %1058, %1061 : vector<2x256xf32>
    %c47_142 = arith.constant 47 : index
    %1063 = memref.load %arg5[%c47_142] : memref<144xf32, #tpu.memory_space<smem>>
    %1064 = vector.broadcast %1063 : f32 to vector<2x256xf32>
    %1065 = arith.mulf %1064, %1007 : vector<2x256xf32>
    %1066 = arith.addf %1062, %1065 : vector<2x256xf32>
    %c48_143 = arith.constant 48 : index
    %1067 = memref.load %arg5[%c48_143] : memref<144xf32, #tpu.memory_space<smem>>
    %1068 = vector.broadcast %1067 : f32 to vector<2x256xf32>
    %1069 = arith.mulf %1068, %1008 : vector<2x256xf32>
    %1070 = arith.addf %1066, %1069 : vector<2x256xf32>
    %c49_144 = arith.constant 49 : index
    %1071 = memref.load %arg5[%c49_144] : memref<144xf32, #tpu.memory_space<smem>>
    %1072 = vector.broadcast %1071 : f32 to vector<2x256xf32>
    %1073 = arith.mulf %1072, %766 : vector<2x256xf32>
    %1074 = arith.addf %1070, %1073 : vector<2x256xf32>
    %c50_145 = arith.constant 50 : index
    %1075 = memref.load %arg5[%c50_145] : memref<144xf32, #tpu.memory_space<smem>>
    %1076 = vector.broadcast %1075 : f32 to vector<2x256xf32>
    %1077 = arith.mulf %1076, %1009 : vector<2x256xf32>
    %1078 = arith.addf %1074, %1077 : vector<2x256xf32>
    %c51_146 = arith.constant 51 : index
    %1079 = memref.load %arg5[%c51_146] : memref<144xf32, #tpu.memory_space<smem>>
    %1080 = vector.broadcast %1079 : f32 to vector<2x256xf32>
    %1081 = arith.mulf %1080, %1013 : vector<2x256xf32>
    %1082 = arith.addf %1078, %1081 : vector<2x256xf32>
    %c52_147 = arith.constant 52 : index
    %1083 = memref.load %arg5[%c52_147] : memref<144xf32, #tpu.memory_space<smem>>
    %1084 = vector.broadcast %1083 : f32 to vector<2x256xf32>
    %1085 = arith.mulf %1084, %1014 : vector<2x256xf32>
    %1086 = arith.addf %1082, %1085 : vector<2x256xf32>
    %c53_148 = arith.constant 53 : index
    %1087 = memref.load %arg5[%c53_148] : memref<144xf32, #tpu.memory_space<smem>>
    %1088 = vector.broadcast %1087 : f32 to vector<2x256xf32>
    %1089 = arith.mulf %1088, %1018 : vector<2x256xf32>
    %1090 = arith.addf %1086, %1089 : vector<2x256xf32>
    %c81_149 = arith.constant 81 : index
    %1091 = memref.load %arg5[%c81_149] : memref<144xf32, #tpu.memory_space<smem>>
    %1092 = vector.broadcast %1091 : f32 to vector<2x256xf32>
    %1093 = arith.mulf %1092, %1002 : vector<2x256xf32>
    %1094 = arith.addf %954, %1093 : vector<2x256xf32>
    %c82_150 = arith.constant 82 : index
    %1095 = memref.load %arg5[%c82_150] : memref<144xf32, #tpu.memory_space<smem>>
    %1096 = vector.broadcast %1095 : f32 to vector<2x256xf32>
    %1097 = arith.mulf %1096, %1003 : vector<2x256xf32>
    %1098 = arith.addf %1094, %1097 : vector<2x256xf32>
    %c83_151 = arith.constant 83 : index
    %1099 = memref.load %arg5[%c83_151] : memref<144xf32, #tpu.memory_space<smem>>
    %1100 = vector.broadcast %1099 : f32 to vector<2x256xf32>
    %1101 = arith.mulf %1100, %1007 : vector<2x256xf32>
    %1102 = arith.addf %1098, %1101 : vector<2x256xf32>
    %c84_152 = arith.constant 84 : index
    %1103 = memref.load %arg5[%c84_152] : memref<144xf32, #tpu.memory_space<smem>>
    %1104 = vector.broadcast %1103 : f32 to vector<2x256xf32>
    %1105 = arith.mulf %1104, %1008 : vector<2x256xf32>
    %1106 = arith.addf %1102, %1105 : vector<2x256xf32>
    %c85_153 = arith.constant 85 : index
    %1107 = memref.load %arg5[%c85_153] : memref<144xf32, #tpu.memory_space<smem>>
    %1108 = vector.broadcast %1107 : f32 to vector<2x256xf32>
    %1109 = arith.mulf %1108, %766 : vector<2x256xf32>
    %1110 = arith.addf %1106, %1109 : vector<2x256xf32>
    %c86_154 = arith.constant 86 : index
    %1111 = memref.load %arg5[%c86_154] : memref<144xf32, #tpu.memory_space<smem>>
    %1112 = vector.broadcast %1111 : f32 to vector<2x256xf32>
    %1113 = arith.mulf %1112, %1009 : vector<2x256xf32>
    %1114 = arith.addf %1110, %1113 : vector<2x256xf32>
    %c87_155 = arith.constant 87 : index
    %1115 = memref.load %arg5[%c87_155] : memref<144xf32, #tpu.memory_space<smem>>
    %1116 = vector.broadcast %1115 : f32 to vector<2x256xf32>
    %1117 = arith.mulf %1116, %1013 : vector<2x256xf32>
    %1118 = arith.addf %1114, %1117 : vector<2x256xf32>
    %c88_156 = arith.constant 88 : index
    %1119 = memref.load %arg5[%c88_156] : memref<144xf32, #tpu.memory_space<smem>>
    %1120 = vector.broadcast %1119 : f32 to vector<2x256xf32>
    %1121 = arith.mulf %1120, %1014 : vector<2x256xf32>
    %1122 = arith.addf %1118, %1121 : vector<2x256xf32>
    %c89_157 = arith.constant 89 : index
    %1123 = memref.load %arg5[%c89_157] : memref<144xf32, #tpu.memory_space<smem>>
    %1124 = vector.broadcast %1123 : f32 to vector<2x256xf32>
    %1125 = arith.mulf %1124, %1018 : vector<2x256xf32>
    %1126 = arith.addf %1122, %1125 : vector<2x256xf32>
    %c117_158 = arith.constant 117 : index
    %1127 = memref.load %arg5[%c117_158] : memref<144xf32, #tpu.memory_space<smem>>
    %1128 = vector.broadcast %1127 : f32 to vector<2x256xf32>
    %1129 = arith.mulf %1128, %1002 : vector<2x256xf32>
    %1130 = arith.addf %990, %1129 : vector<2x256xf32>
    %c118_159 = arith.constant 118 : index
    %1131 = memref.load %arg5[%c118_159] : memref<144xf32, #tpu.memory_space<smem>>
    %1132 = vector.broadcast %1131 : f32 to vector<2x256xf32>
    %1133 = arith.mulf %1132, %1003 : vector<2x256xf32>
    %1134 = arith.addf %1130, %1133 : vector<2x256xf32>
    %c119_160 = arith.constant 119 : index
    %1135 = memref.load %arg5[%c119_160] : memref<144xf32, #tpu.memory_space<smem>>
    %1136 = vector.broadcast %1135 : f32 to vector<2x256xf32>
    %1137 = arith.mulf %1136, %1007 : vector<2x256xf32>
    %1138 = arith.addf %1134, %1137 : vector<2x256xf32>
    %c120_161 = arith.constant 120 : index
    %1139 = memref.load %arg5[%c120_161] : memref<144xf32, #tpu.memory_space<smem>>
    %1140 = vector.broadcast %1139 : f32 to vector<2x256xf32>
    %1141 = arith.mulf %1140, %1008 : vector<2x256xf32>
    %1142 = arith.addf %1138, %1141 : vector<2x256xf32>
    %c121_162 = arith.constant 121 : index
    %1143 = memref.load %arg5[%c121_162] : memref<144xf32, #tpu.memory_space<smem>>
    %1144 = vector.broadcast %1143 : f32 to vector<2x256xf32>
    %1145 = arith.mulf %1144, %766 : vector<2x256xf32>
    %1146 = arith.addf %1142, %1145 : vector<2x256xf32>
    %c122_163 = arith.constant 122 : index
    %1147 = memref.load %arg5[%c122_163] : memref<144xf32, #tpu.memory_space<smem>>
    %1148 = vector.broadcast %1147 : f32 to vector<2x256xf32>
    %1149 = arith.mulf %1148, %1009 : vector<2x256xf32>
    %1150 = arith.addf %1146, %1149 : vector<2x256xf32>
    %c123_164 = arith.constant 123 : index
    %1151 = memref.load %arg5[%c123_164] : memref<144xf32, #tpu.memory_space<smem>>
    %1152 = vector.broadcast %1151 : f32 to vector<2x256xf32>
    %1153 = arith.mulf %1152, %1013 : vector<2x256xf32>
    %1154 = arith.addf %1150, %1153 : vector<2x256xf32>
    %c124_165 = arith.constant 124 : index
    %1155 = memref.load %arg5[%c124_165] : memref<144xf32, #tpu.memory_space<smem>>
    %1156 = vector.broadcast %1155 : f32 to vector<2x256xf32>
    %1157 = arith.mulf %1156, %1014 : vector<2x256xf32>
    %1158 = arith.addf %1154, %1157 : vector<2x256xf32>
    %c125_166 = arith.constant 125 : index
    %1159 = memref.load %arg5[%c125_166] : memref<144xf32, #tpu.memory_space<smem>>
    %1160 = vector.broadcast %1159 : f32 to vector<2x256xf32>
    %1161 = arith.mulf %1160, %1018 : vector<2x256xf32>
    %1162 = arith.addf %1158, %1161 : vector<2x256xf32>
    %c17_i32_167 = arith.constant 17 : i32
    %1163 = tpu.dynamic_rotate %790 by %c17_i32_167 dim 1 : vector<2x256xf32>, i32 -> vector<2x256xf32>
    %c16_i32_168 = arith.constant 16 : i32
    %1164 = tpu.dynamic_rotate %790 by %c16_i32_168 dim 1 : vector<2x256xf32>, i32 -> vector<2x256xf32>
    %c15_i32_169 = arith.constant 15 : i32
    %1165 = tpu.dynamic_rotate %790 by %c15_i32_169 dim 1 : vector<2x256xf32>, i32 -> vector<2x256xf32>
    %c1_i32_170 = arith.constant 1 : i32
    %1166 = tpu.dynamic_rotate %790 by %c1_i32_170 dim 1 : vector<2x256xf32>, i32 -> vector<2x256xf32>
    %c255_i32_171 = arith.constant 255 : i32
    %1167 = tpu.dynamic_rotate %790 by %c255_i32_171 dim 1 : vector<2x256xf32>, i32 -> vector<2x256xf32>
    %c241_i32_172 = arith.constant 241 : i32
    %1168 = tpu.dynamic_rotate %790 by %c241_i32_172 dim 1 : vector<2x256xf32>, i32 -> vector<2x256xf32>
    %c240_i32_173 = arith.constant 240 : i32
    %1169 = tpu.dynamic_rotate %790 by %c240_i32_173 dim 1 : vector<2x256xf32>, i32 -> vector<2x256xf32>
    %c239_i32_174 = arith.constant 239 : i32
    %1170 = tpu.dynamic_rotate %790 by %c239_i32_174 dim 1 : vector<2x256xf32>, i32 -> vector<2x256xf32>
    %1171 = arith.select %6, %1165, %1163 : vector<2x256xi1>, vector<2x256xf32>
    %1172 = arith.select %14, %1168, %1171 : vector<2x256xi1>, vector<2x256xf32>
    %1173 = arith.andi %14, %6 : vector<2x256xi1>
    %1174 = arith.select %1173, %1170, %1172 : vector<2x256xi1>, vector<2x256xf32>
    %1175 = arith.select %14, %1169, %1164 : vector<2x256xi1>, vector<2x256xf32>
    %1176 = arith.select %10, %1163, %1165 : vector<2x256xi1>, vector<2x256xf32>
    %1177 = arith.select %14, %1170, %1176 : vector<2x256xi1>, vector<2x256xf32>
    %1178 = arith.andi %14, %10 : vector<2x256xi1>
    %1179 = arith.select %1178, %1168, %1177 : vector<2x256xi1>, vector<2x256xf32>
    %1180 = arith.select %6, %1167, %1166 : vector<2x256xi1>, vector<2x256xf32>
    %1181 = arith.select %10, %1166, %1167 : vector<2x256xi1>, vector<2x256xf32>
    %1182 = arith.select %6, %1170, %1168 : vector<2x256xi1>, vector<2x256xf32>
    %1183 = arith.select %18, %1163, %1182 : vector<2x256xi1>, vector<2x256xf32>
    %1184 = arith.andi %18, %6 : vector<2x256xi1>
    %1185 = arith.select %1184, %1165, %1183 : vector<2x256xi1>, vector<2x256xf32>
    %1186 = arith.select %18, %1164, %1169 : vector<2x256xi1>, vector<2x256xf32>
    %1187 = arith.select %10, %1168, %1170 : vector<2x256xi1>, vector<2x256xf32>
    %1188 = arith.select %18, %1165, %1187 : vector<2x256xi1>, vector<2x256xf32>
    %1189 = arith.andi %18, %10 : vector<2x256xi1>
    %1190 = arith.select %1189, %1163, %1188 : vector<2x256xi1>, vector<2x256xf32>
    %c18_175 = arith.constant 18 : index
    %1191 = memref.load %arg5[%c18_175] : memref<144xf32, #tpu.memory_space<smem>>
    %1192 = vector.broadcast %1191 : f32 to vector<2x256xf32>
    %1193 = arith.mulf %1192, %1174 : vector<2x256xf32>
    %1194 = arith.addf %1054, %1193 : vector<2x256xf32>
    %c19_176 = arith.constant 19 : index
    %1195 = memref.load %arg5[%c19_176] : memref<144xf32, #tpu.memory_space<smem>>
    %1196 = vector.broadcast %1195 : f32 to vector<2x256xf32>
    %1197 = arith.mulf %1196, %1175 : vector<2x256xf32>
    %1198 = arith.addf %1194, %1197 : vector<2x256xf32>
    %c20_177 = arith.constant 20 : index
    %1199 = memref.load %arg5[%c20_177] : memref<144xf32, #tpu.memory_space<smem>>
    %1200 = vector.broadcast %1199 : f32 to vector<2x256xf32>
    %1201 = arith.mulf %1200, %1179 : vector<2x256xf32>
    %1202 = arith.addf %1198, %1201 : vector<2x256xf32>
    %c21_178 = arith.constant 21 : index
    %1203 = memref.load %arg5[%c21_178] : memref<144xf32, #tpu.memory_space<smem>>
    %1204 = vector.broadcast %1203 : f32 to vector<2x256xf32>
    %1205 = arith.mulf %1204, %1180 : vector<2x256xf32>
    %1206 = arith.addf %1202, %1205 : vector<2x256xf32>
    %c22_179 = arith.constant 22 : index
    %1207 = memref.load %arg5[%c22_179] : memref<144xf32, #tpu.memory_space<smem>>
    %1208 = vector.broadcast %1207 : f32 to vector<2x256xf32>
    %1209 = arith.mulf %1208, %790 : vector<2x256xf32>
    %1210 = arith.addf %1206, %1209 : vector<2x256xf32>
    %c23_180 = arith.constant 23 : index
    %1211 = memref.load %arg5[%c23_180] : memref<144xf32, #tpu.memory_space<smem>>
    %1212 = vector.broadcast %1211 : f32 to vector<2x256xf32>
    %1213 = arith.mulf %1212, %1181 : vector<2x256xf32>
    %1214 = arith.addf %1210, %1213 : vector<2x256xf32>
    %c24_181 = arith.constant 24 : index
    %1215 = memref.load %arg5[%c24_181] : memref<144xf32, #tpu.memory_space<smem>>
    %1216 = vector.broadcast %1215 : f32 to vector<2x256xf32>
    %1217 = arith.mulf %1216, %1185 : vector<2x256xf32>
    %1218 = arith.addf %1214, %1217 : vector<2x256xf32>
    %c25_182 = arith.constant 25 : index
    %1219 = memref.load %arg5[%c25_182] : memref<144xf32, #tpu.memory_space<smem>>
    %1220 = vector.broadcast %1219 : f32 to vector<2x256xf32>
    %1221 = arith.mulf %1220, %1186 : vector<2x256xf32>
    %1222 = arith.addf %1218, %1221 : vector<2x256xf32>
    %c26_183 = arith.constant 26 : index
    %1223 = memref.load %arg5[%c26_183] : memref<144xf32, #tpu.memory_space<smem>>
    %1224 = vector.broadcast %1223 : f32 to vector<2x256xf32>
    %1225 = arith.mulf %1224, %1190 : vector<2x256xf32>
    %1226 = arith.addf %1222, %1225 : vector<2x256xf32>
    %c54_184 = arith.constant 54 : index
    %1227 = memref.load %arg5[%c54_184] : memref<144xf32, #tpu.memory_space<smem>>
    %1228 = vector.broadcast %1227 : f32 to vector<2x256xf32>
    %1229 = arith.mulf %1228, %1174 : vector<2x256xf32>
    %1230 = arith.addf %1090, %1229 : vector<2x256xf32>
    %c55_185 = arith.constant 55 : index
    %1231 = memref.load %arg5[%c55_185] : memref<144xf32, #tpu.memory_space<smem>>
    %1232 = vector.broadcast %1231 : f32 to vector<2x256xf32>
    %1233 = arith.mulf %1232, %1175 : vector<2x256xf32>
    %1234 = arith.addf %1230, %1233 : vector<2x256xf32>
    %c56_186 = arith.constant 56 : index
    %1235 = memref.load %arg5[%c56_186] : memref<144xf32, #tpu.memory_space<smem>>
    %1236 = vector.broadcast %1235 : f32 to vector<2x256xf32>
    %1237 = arith.mulf %1236, %1179 : vector<2x256xf32>
    %1238 = arith.addf %1234, %1237 : vector<2x256xf32>
    %c57_187 = arith.constant 57 : index
    %1239 = memref.load %arg5[%c57_187] : memref<144xf32, #tpu.memory_space<smem>>
    %1240 = vector.broadcast %1239 : f32 to vector<2x256xf32>
    %1241 = arith.mulf %1240, %1180 : vector<2x256xf32>
    %1242 = arith.addf %1238, %1241 : vector<2x256xf32>
    %c58_188 = arith.constant 58 : index
    %1243 = memref.load %arg5[%c58_188] : memref<144xf32, #tpu.memory_space<smem>>
    %1244 = vector.broadcast %1243 : f32 to vector<2x256xf32>
    %1245 = arith.mulf %1244, %790 : vector<2x256xf32>
    %1246 = arith.addf %1242, %1245 : vector<2x256xf32>
    %c59_189 = arith.constant 59 : index
    %1247 = memref.load %arg5[%c59_189] : memref<144xf32, #tpu.memory_space<smem>>
    %1248 = vector.broadcast %1247 : f32 to vector<2x256xf32>
    %1249 = arith.mulf %1248, %1181 : vector<2x256xf32>
    %1250 = arith.addf %1246, %1249 : vector<2x256xf32>
    %c60_190 = arith.constant 60 : index
    %1251 = memref.load %arg5[%c60_190] : memref<144xf32, #tpu.memory_space<smem>>
    %1252 = vector.broadcast %1251 : f32 to vector<2x256xf32>
    %1253 = arith.mulf %1252, %1185 : vector<2x256xf32>
    %1254 = arith.addf %1250, %1253 : vector<2x256xf32>
    %c61_191 = arith.constant 61 : index
    %1255 = memref.load %arg5[%c61_191] : memref<144xf32, #tpu.memory_space<smem>>
    %1256 = vector.broadcast %1255 : f32 to vector<2x256xf32>
    %1257 = arith.mulf %1256, %1186 : vector<2x256xf32>
    %1258 = arith.addf %1254, %1257 : vector<2x256xf32>
    %c62_192 = arith.constant 62 : index
    %1259 = memref.load %arg5[%c62_192] : memref<144xf32, #tpu.memory_space<smem>>
    %1260 = vector.broadcast %1259 : f32 to vector<2x256xf32>
    %1261 = arith.mulf %1260, %1190 : vector<2x256xf32>
    %1262 = arith.addf %1258, %1261 : vector<2x256xf32>
    %c90_193 = arith.constant 90 : index
    %1263 = memref.load %arg5[%c90_193] : memref<144xf32, #tpu.memory_space<smem>>
    %1264 = vector.broadcast %1263 : f32 to vector<2x256xf32>
    %1265 = arith.mulf %1264, %1174 : vector<2x256xf32>
    %1266 = arith.addf %1126, %1265 : vector<2x256xf32>
    %c91_194 = arith.constant 91 : index
    %1267 = memref.load %arg5[%c91_194] : memref<144xf32, #tpu.memory_space<smem>>
    %1268 = vector.broadcast %1267 : f32 to vector<2x256xf32>
    %1269 = arith.mulf %1268, %1175 : vector<2x256xf32>
    %1270 = arith.addf %1266, %1269 : vector<2x256xf32>
    %c92_195 = arith.constant 92 : index
    %1271 = memref.load %arg5[%c92_195] : memref<144xf32, #tpu.memory_space<smem>>
    %1272 = vector.broadcast %1271 : f32 to vector<2x256xf32>
    %1273 = arith.mulf %1272, %1179 : vector<2x256xf32>
    %1274 = arith.addf %1270, %1273 : vector<2x256xf32>
    %c93_196 = arith.constant 93 : index
    %1275 = memref.load %arg5[%c93_196] : memref<144xf32, #tpu.memory_space<smem>>
    %1276 = vector.broadcast %1275 : f32 to vector<2x256xf32>
    %1277 = arith.mulf %1276, %1180 : vector<2x256xf32>
    %1278 = arith.addf %1274, %1277 : vector<2x256xf32>
    %c94_197 = arith.constant 94 : index
    %1279 = memref.load %arg5[%c94_197] : memref<144xf32, #tpu.memory_space<smem>>
    %1280 = vector.broadcast %1279 : f32 to vector<2x256xf32>
    %1281 = arith.mulf %1280, %790 : vector<2x256xf32>
    %1282 = arith.addf %1278, %1281 : vector<2x256xf32>
    %c95_198 = arith.constant 95 : index
    %1283 = memref.load %arg5[%c95_198] : memref<144xf32, #tpu.memory_space<smem>>
    %1284 = vector.broadcast %1283 : f32 to vector<2x256xf32>
    %1285 = arith.mulf %1284, %1181 : vector<2x256xf32>
    %1286 = arith.addf %1282, %1285 : vector<2x256xf32>
    %c96_199 = arith.constant 96 : index
    %1287 = memref.load %arg5[%c96_199] : memref<144xf32, #tpu.memory_space<smem>>
    %1288 = vector.broadcast %1287 : f32 to vector<2x256xf32>
    %1289 = arith.mulf %1288, %1185 : vector<2x256xf32>
    %1290 = arith.addf %1286, %1289 : vector<2x256xf32>
    %c97_200 = arith.constant 97 : index
    %1291 = memref.load %arg5[%c97_200] : memref<144xf32, #tpu.memory_space<smem>>
    %1292 = vector.broadcast %1291 : f32 to vector<2x256xf32>
    %1293 = arith.mulf %1292, %1186 : vector<2x256xf32>
    %1294 = arith.addf %1290, %1293 : vector<2x256xf32>
    %c98_201 = arith.constant 98 : index
    %1295 = memref.load %arg5[%c98_201] : memref<144xf32, #tpu.memory_space<smem>>
    %1296 = vector.broadcast %1295 : f32 to vector<2x256xf32>
    %1297 = arith.mulf %1296, %1190 : vector<2x256xf32>
    %1298 = arith.addf %1294, %1297 : vector<2x256xf32>
    %c126_202 = arith.constant 126 : index
    %1299 = memref.load %arg5[%c126_202] : memref<144xf32, #tpu.memory_space<smem>>
    %1300 = vector.broadcast %1299 : f32 to vector<2x256xf32>
    %1301 = arith.mulf %1300, %1174 : vector<2x256xf32>
    %1302 = arith.addf %1162, %1301 : vector<2x256xf32>
    %c127_203 = arith.constant 127 : index
    %1303 = memref.load %arg5[%c127_203] : memref<144xf32, #tpu.memory_space<smem>>
    %1304 = vector.broadcast %1303 : f32 to vector<2x256xf32>
    %1305 = arith.mulf %1304, %1175 : vector<2x256xf32>
    %1306 = arith.addf %1302, %1305 : vector<2x256xf32>
    %c128_204 = arith.constant 128 : index
    %1307 = memref.load %arg5[%c128_204] : memref<144xf32, #tpu.memory_space<smem>>
    %1308 = vector.broadcast %1307 : f32 to vector<2x256xf32>
    %1309 = arith.mulf %1308, %1179 : vector<2x256xf32>
    %1310 = arith.addf %1306, %1309 : vector<2x256xf32>
    %c129_205 = arith.constant 129 : index
    %1311 = memref.load %arg5[%c129_205] : memref<144xf32, #tpu.memory_space<smem>>
    %1312 = vector.broadcast %1311 : f32 to vector<2x256xf32>
    %1313 = arith.mulf %1312, %1180 : vector<2x256xf32>
    %1314 = arith.addf %1310, %1313 : vector<2x256xf32>
    %c130_206 = arith.constant 130 : index
    %1315 = memref.load %arg5[%c130_206] : memref<144xf32, #tpu.memory_space<smem>>
    %1316 = vector.broadcast %1315 : f32 to vector<2x256xf32>
    %1317 = arith.mulf %1316, %790 : vector<2x256xf32>
    %1318 = arith.addf %1314, %1317 : vector<2x256xf32>
    %c131_207 = arith.constant 131 : index
    %1319 = memref.load %arg5[%c131_207] : memref<144xf32, #tpu.memory_space<smem>>
    %1320 = vector.broadcast %1319 : f32 to vector<2x256xf32>
    %1321 = arith.mulf %1320, %1181 : vector<2x256xf32>
    %1322 = arith.addf %1318, %1321 : vector<2x256xf32>
    %c132_208 = arith.constant 132 : index
    %1323 = memref.load %arg5[%c132_208] : memref<144xf32, #tpu.memory_space<smem>>
    %1324 = vector.broadcast %1323 : f32 to vector<2x256xf32>
    %1325 = arith.mulf %1324, %1185 : vector<2x256xf32>
    %1326 = arith.addf %1322, %1325 : vector<2x256xf32>
    %c133_209 = arith.constant 133 : index
    %1327 = memref.load %arg5[%c133_209] : memref<144xf32, #tpu.memory_space<smem>>
    %1328 = vector.broadcast %1327 : f32 to vector<2x256xf32>
    %1329 = arith.mulf %1328, %1186 : vector<2x256xf32>
    %1330 = arith.addf %1326, %1329 : vector<2x256xf32>
    %c134_210 = arith.constant 134 : index
    %1331 = memref.load %arg5[%c134_210] : memref<144xf32, #tpu.memory_space<smem>>
    %1332 = vector.broadcast %1331 : f32 to vector<2x256xf32>
    %1333 = arith.mulf %1332, %1190 : vector<2x256xf32>
    %1334 = arith.addf %1330, %1333 : vector<2x256xf32>
    %c17_i32_211 = arith.constant 17 : i32
    %1335 = tpu.dynamic_rotate %814 by %c17_i32_211 dim 1 : vector<2x256xf32>, i32 -> vector<2x256xf32>
    %c16_i32_212 = arith.constant 16 : i32
    %1336 = tpu.dynamic_rotate %814 by %c16_i32_212 dim 1 : vector<2x256xf32>, i32 -> vector<2x256xf32>
    %c15_i32_213 = arith.constant 15 : i32
    %1337 = tpu.dynamic_rotate %814 by %c15_i32_213 dim 1 : vector<2x256xf32>, i32 -> vector<2x256xf32>
    %c1_i32_214 = arith.constant 1 : i32
    %1338 = tpu.dynamic_rotate %814 by %c1_i32_214 dim 1 : vector<2x256xf32>, i32 -> vector<2x256xf32>
    %c255_i32_215 = arith.constant 255 : i32
    %1339 = tpu.dynamic_rotate %814 by %c255_i32_215 dim 1 : vector<2x256xf32>, i32 -> vector<2x256xf32>
    %c241_i32_216 = arith.constant 241 : i32
    %1340 = tpu.dynamic_rotate %814 by %c241_i32_216 dim 1 : vector<2x256xf32>, i32 -> vector<2x256xf32>
    %c240_i32_217 = arith.constant 240 : i32
    %1341 = tpu.dynamic_rotate %814 by %c240_i32_217 dim 1 : vector<2x256xf32>, i32 -> vector<2x256xf32>
    %c239_i32_218 = arith.constant 239 : i32
    %1342 = tpu.dynamic_rotate %814 by %c239_i32_218 dim 1 : vector<2x256xf32>, i32 -> vector<2x256xf32>
    %1343 = arith.select %6, %1337, %1335 : vector<2x256xi1>, vector<2x256xf32>
    %1344 = arith.select %14, %1340, %1343 : vector<2x256xi1>, vector<2x256xf32>
    %1345 = arith.andi %14, %6 : vector<2x256xi1>
    %1346 = arith.select %1345, %1342, %1344 : vector<2x256xi1>, vector<2x256xf32>
    %1347 = arith.select %14, %1341, %1336 : vector<2x256xi1>, vector<2x256xf32>
    %1348 = arith.select %10, %1335, %1337 : vector<2x256xi1>, vector<2x256xf32>
    %1349 = arith.select %14, %1342, %1348 : vector<2x256xi1>, vector<2x256xf32>
    %1350 = arith.andi %14, %10 : vector<2x256xi1>
    %1351 = arith.select %1350, %1340, %1349 : vector<2x256xi1>, vector<2x256xf32>
    %1352 = arith.select %6, %1339, %1338 : vector<2x256xi1>, vector<2x256xf32>
    %1353 = arith.select %10, %1338, %1339 : vector<2x256xi1>, vector<2x256xf32>
    %1354 = arith.select %6, %1342, %1340 : vector<2x256xi1>, vector<2x256xf32>
    %1355 = arith.select %18, %1335, %1354 : vector<2x256xi1>, vector<2x256xf32>
    %1356 = arith.andi %18, %6 : vector<2x256xi1>
    %1357 = arith.select %1356, %1337, %1355 : vector<2x256xi1>, vector<2x256xf32>
    %1358 = arith.select %18, %1336, %1341 : vector<2x256xi1>, vector<2x256xf32>
    %1359 = arith.select %10, %1340, %1342 : vector<2x256xi1>, vector<2x256xf32>
    %1360 = arith.select %18, %1337, %1359 : vector<2x256xi1>, vector<2x256xf32>
    %1361 = arith.andi %18, %10 : vector<2x256xi1>
    %1362 = arith.select %1361, %1335, %1360 : vector<2x256xi1>, vector<2x256xf32>
    %c27_219 = arith.constant 27 : index
    %1363 = memref.load %arg5[%c27_219] : memref<144xf32, #tpu.memory_space<smem>>
    %1364 = vector.broadcast %1363 : f32 to vector<2x256xf32>
    %1365 = arith.mulf %1364, %1346 : vector<2x256xf32>
    %1366 = arith.addf %1226, %1365 : vector<2x256xf32>
    %c28_220 = arith.constant 28 : index
    %1367 = memref.load %arg5[%c28_220] : memref<144xf32, #tpu.memory_space<smem>>
    %1368 = vector.broadcast %1367 : f32 to vector<2x256xf32>
    %1369 = arith.mulf %1368, %1347 : vector<2x256xf32>
    %1370 = arith.addf %1366, %1369 : vector<2x256xf32>
    %c29_221 = arith.constant 29 : index
    %1371 = memref.load %arg5[%c29_221] : memref<144xf32, #tpu.memory_space<smem>>
    %1372 = vector.broadcast %1371 : f32 to vector<2x256xf32>
    %1373 = arith.mulf %1372, %1351 : vector<2x256xf32>
    %1374 = arith.addf %1370, %1373 : vector<2x256xf32>
    %c30_222 = arith.constant 30 : index
    %1375 = memref.load %arg5[%c30_222] : memref<144xf32, #tpu.memory_space<smem>>
    %1376 = vector.broadcast %1375 : f32 to vector<2x256xf32>
    %1377 = arith.mulf %1376, %1352 : vector<2x256xf32>
    %1378 = arith.addf %1374, %1377 : vector<2x256xf32>
    %c31_223 = arith.constant 31 : index
    %1379 = memref.load %arg5[%c31_223] : memref<144xf32, #tpu.memory_space<smem>>
    %1380 = vector.broadcast %1379 : f32 to vector<2x256xf32>
    %1381 = arith.mulf %1380, %814 : vector<2x256xf32>
    %1382 = arith.addf %1378, %1381 : vector<2x256xf32>
    %c32_224 = arith.constant 32 : index
    %1383 = memref.load %arg5[%c32_224] : memref<144xf32, #tpu.memory_space<smem>>
    %1384 = vector.broadcast %1383 : f32 to vector<2x256xf32>
    %1385 = arith.mulf %1384, %1353 : vector<2x256xf32>
    %1386 = arith.addf %1382, %1385 : vector<2x256xf32>
    %c33_225 = arith.constant 33 : index
    %1387 = memref.load %arg5[%c33_225] : memref<144xf32, #tpu.memory_space<smem>>
    %1388 = vector.broadcast %1387 : f32 to vector<2x256xf32>
    %1389 = arith.mulf %1388, %1357 : vector<2x256xf32>
    %1390 = arith.addf %1386, %1389 : vector<2x256xf32>
    %c34_226 = arith.constant 34 : index
    %1391 = memref.load %arg5[%c34_226] : memref<144xf32, #tpu.memory_space<smem>>
    %1392 = vector.broadcast %1391 : f32 to vector<2x256xf32>
    %1393 = arith.mulf %1392, %1358 : vector<2x256xf32>
    %1394 = arith.addf %1390, %1393 : vector<2x256xf32>
    %c35_227 = arith.constant 35 : index
    %1395 = memref.load %arg5[%c35_227] : memref<144xf32, #tpu.memory_space<smem>>
    %1396 = vector.broadcast %1395 : f32 to vector<2x256xf32>
    %1397 = arith.mulf %1396, %1362 : vector<2x256xf32>
    %1398 = arith.addf %1394, %1397 : vector<2x256xf32>
    %c63_228 = arith.constant 63 : index
    %1399 = memref.load %arg5[%c63_228] : memref<144xf32, #tpu.memory_space<smem>>
    %1400 = vector.broadcast %1399 : f32 to vector<2x256xf32>
    %1401 = arith.mulf %1400, %1346 : vector<2x256xf32>
    %1402 = arith.addf %1262, %1401 : vector<2x256xf32>
    %c64_229 = arith.constant 64 : index
    %1403 = memref.load %arg5[%c64_229] : memref<144xf32, #tpu.memory_space<smem>>
    %1404 = vector.broadcast %1403 : f32 to vector<2x256xf32>
    %1405 = arith.mulf %1404, %1347 : vector<2x256xf32>
    %1406 = arith.addf %1402, %1405 : vector<2x256xf32>
    %c65_230 = arith.constant 65 : index
    %1407 = memref.load %arg5[%c65_230] : memref<144xf32, #tpu.memory_space<smem>>
    %1408 = vector.broadcast %1407 : f32 to vector<2x256xf32>
    %1409 = arith.mulf %1408, %1351 : vector<2x256xf32>
    %1410 = arith.addf %1406, %1409 : vector<2x256xf32>
    %c66_231 = arith.constant 66 : index
    %1411 = memref.load %arg5[%c66_231] : memref<144xf32, #tpu.memory_space<smem>>
    %1412 = vector.broadcast %1411 : f32 to vector<2x256xf32>
    %1413 = arith.mulf %1412, %1352 : vector<2x256xf32>
    %1414 = arith.addf %1410, %1413 : vector<2x256xf32>
    %c67_232 = arith.constant 67 : index
    %1415 = memref.load %arg5[%c67_232] : memref<144xf32, #tpu.memory_space<smem>>
    %1416 = vector.broadcast %1415 : f32 to vector<2x256xf32>
    %1417 = arith.mulf %1416, %814 : vector<2x256xf32>
    %1418 = arith.addf %1414, %1417 : vector<2x256xf32>
    %c68_233 = arith.constant 68 : index
    %1419 = memref.load %arg5[%c68_233] : memref<144xf32, #tpu.memory_space<smem>>
    %1420 = vector.broadcast %1419 : f32 to vector<2x256xf32>
    %1421 = arith.mulf %1420, %1353 : vector<2x256xf32>
    %1422 = arith.addf %1418, %1421 : vector<2x256xf32>
    %c69_234 = arith.constant 69 : index
    %1423 = memref.load %arg5[%c69_234] : memref<144xf32, #tpu.memory_space<smem>>
    %1424 = vector.broadcast %1423 : f32 to vector<2x256xf32>
    %1425 = arith.mulf %1424, %1357 : vector<2x256xf32>
    %1426 = arith.addf %1422, %1425 : vector<2x256xf32>
    %c70_235 = arith.constant 70 : index
    %1427 = memref.load %arg5[%c70_235] : memref<144xf32, #tpu.memory_space<smem>>
    %1428 = vector.broadcast %1427 : f32 to vector<2x256xf32>
    %1429 = arith.mulf %1428, %1358 : vector<2x256xf32>
    %1430 = arith.addf %1426, %1429 : vector<2x256xf32>
    %c71_236 = arith.constant 71 : index
    %1431 = memref.load %arg5[%c71_236] : memref<144xf32, #tpu.memory_space<smem>>
    %1432 = vector.broadcast %1431 : f32 to vector<2x256xf32>
    %1433 = arith.mulf %1432, %1362 : vector<2x256xf32>
    %1434 = arith.addf %1430, %1433 : vector<2x256xf32>
    %c99_237 = arith.constant 99 : index
    %1435 = memref.load %arg5[%c99_237] : memref<144xf32, #tpu.memory_space<smem>>
    %1436 = vector.broadcast %1435 : f32 to vector<2x256xf32>
    %1437 = arith.mulf %1436, %1346 : vector<2x256xf32>
    %1438 = arith.addf %1298, %1437 : vector<2x256xf32>
    %c100_238 = arith.constant 100 : index
    %1439 = memref.load %arg5[%c100_238] : memref<144xf32, #tpu.memory_space<smem>>
    %1440 = vector.broadcast %1439 : f32 to vector<2x256xf32>
    %1441 = arith.mulf %1440, %1347 : vector<2x256xf32>
    %1442 = arith.addf %1438, %1441 : vector<2x256xf32>
    %c101_239 = arith.constant 101 : index
    %1443 = memref.load %arg5[%c101_239] : memref<144xf32, #tpu.memory_space<smem>>
    %1444 = vector.broadcast %1443 : f32 to vector<2x256xf32>
    %1445 = arith.mulf %1444, %1351 : vector<2x256xf32>
    %1446 = arith.addf %1442, %1445 : vector<2x256xf32>
    %c102_240 = arith.constant 102 : index
    %1447 = memref.load %arg5[%c102_240] : memref<144xf32, #tpu.memory_space<smem>>
    %1448 = vector.broadcast %1447 : f32 to vector<2x256xf32>
    %1449 = arith.mulf %1448, %1352 : vector<2x256xf32>
    %1450 = arith.addf %1446, %1449 : vector<2x256xf32>
    %c103_241 = arith.constant 103 : index
    %1451 = memref.load %arg5[%c103_241] : memref<144xf32, #tpu.memory_space<smem>>
    %1452 = vector.broadcast %1451 : f32 to vector<2x256xf32>
    %1453 = arith.mulf %1452, %814 : vector<2x256xf32>
    %1454 = arith.addf %1450, %1453 : vector<2x256xf32>
    %c104_242 = arith.constant 104 : index
    %1455 = memref.load %arg5[%c104_242] : memref<144xf32, #tpu.memory_space<smem>>
    %1456 = vector.broadcast %1455 : f32 to vector<2x256xf32>
    %1457 = arith.mulf %1456, %1353 : vector<2x256xf32>
    %1458 = arith.addf %1454, %1457 : vector<2x256xf32>
    %c105_243 = arith.constant 105 : index
    %1459 = memref.load %arg5[%c105_243] : memref<144xf32, #tpu.memory_space<smem>>
    %1460 = vector.broadcast %1459 : f32 to vector<2x256xf32>
    %1461 = arith.mulf %1460, %1357 : vector<2x256xf32>
    %1462 = arith.addf %1458, %1461 : vector<2x256xf32>
    %c106_244 = arith.constant 106 : index
    %1463 = memref.load %arg5[%c106_244] : memref<144xf32, #tpu.memory_space<smem>>
    %1464 = vector.broadcast %1463 : f32 to vector<2x256xf32>
    %1465 = arith.mulf %1464, %1358 : vector<2x256xf32>
    %1466 = arith.addf %1462, %1465 : vector<2x256xf32>
    %c107_245 = arith.constant 107 : index
    %1467 = memref.load %arg5[%c107_245] : memref<144xf32, #tpu.memory_space<smem>>
    %1468 = vector.broadcast %1467 : f32 to vector<2x256xf32>
    %1469 = arith.mulf %1468, %1362 : vector<2x256xf32>
    %1470 = arith.addf %1466, %1469 : vector<2x256xf32>
    %c135_246 = arith.constant 135 : index
    %1471 = memref.load %arg5[%c135_246] : memref<144xf32, #tpu.memory_space<smem>>
    %1472 = vector.broadcast %1471 : f32 to vector<2x256xf32>
    %1473 = arith.mulf %1472, %1346 : vector<2x256xf32>
    %1474 = arith.addf %1334, %1473 : vector<2x256xf32>
    %c136_247 = arith.constant 136 : index
    %1475 = memref.load %arg5[%c136_247] : memref<144xf32, #tpu.memory_space<smem>>
    %1476 = vector.broadcast %1475 : f32 to vector<2x256xf32>
    %1477 = arith.mulf %1476, %1347 : vector<2x256xf32>
    %1478 = arith.addf %1474, %1477 : vector<2x256xf32>
    %c137_248 = arith.constant 137 : index
    %1479 = memref.load %arg5[%c137_248] : memref<144xf32, #tpu.memory_space<smem>>
    %1480 = vector.broadcast %1479 : f32 to vector<2x256xf32>
    %1481 = arith.mulf %1480, %1351 : vector<2x256xf32>
    %1482 = arith.addf %1478, %1481 : vector<2x256xf32>
    %c138_249 = arith.constant 138 : index
    %1483 = memref.load %arg5[%c138_249] : memref<144xf32, #tpu.memory_space<smem>>
    %1484 = vector.broadcast %1483 : f32 to vector<2x256xf32>
    %1485 = arith.mulf %1484, %1352 : vector<2x256xf32>
    %1486 = arith.addf %1482, %1485 : vector<2x256xf32>
    %c139_250 = arith.constant 139 : index
    %1487 = memref.load %arg5[%c139_250] : memref<144xf32, #tpu.memory_space<smem>>
    %1488 = vector.broadcast %1487 : f32 to vector<2x256xf32>
    %1489 = arith.mulf %1488, %814 : vector<2x256xf32>
    %1490 = arith.addf %1486, %1489 : vector<2x256xf32>
    %c140_251 = arith.constant 140 : index
    %1491 = memref.load %arg5[%c140_251] : memref<144xf32, #tpu.memory_space<smem>>
    %1492 = vector.broadcast %1491 : f32 to vector<2x256xf32>
    %1493 = arith.mulf %1492, %1353 : vector<2x256xf32>
    %1494 = arith.addf %1490, %1493 : vector<2x256xf32>
    %c141_252 = arith.constant 141 : index
    %1495 = memref.load %arg5[%c141_252] : memref<144xf32, #tpu.memory_space<smem>>
    %1496 = vector.broadcast %1495 : f32 to vector<2x256xf32>
    %1497 = arith.mulf %1496, %1357 : vector<2x256xf32>
    %1498 = arith.addf %1494, %1497 : vector<2x256xf32>
    %c142_253 = arith.constant 142 : index
    %1499 = memref.load %arg5[%c142_253] : memref<144xf32, #tpu.memory_space<smem>>
    %1500 = vector.broadcast %1499 : f32 to vector<2x256xf32>
    %1501 = arith.mulf %1500, %1358 : vector<2x256xf32>
    %1502 = arith.addf %1498, %1501 : vector<2x256xf32>
    %c143_254 = arith.constant 143 : index
    %1503 = memref.load %arg5[%c143_254] : memref<144xf32, #tpu.memory_space<smem>>
    %1504 = vector.broadcast %1503 : f32 to vector<2x256xf32>
    %1505 = arith.mulf %1504, %1362 : vector<2x256xf32>
    %1506 = arith.addf %1502, %1505 : vector<2x256xf32>
    %cst_255 = arith.constant dense<0.000000e+00> : vector<2xf32>
    %1507 = vector.multi_reduction <add>, %1398, %cst_255 [1] : vector<2x256xf32> to vector<2xf32>
    %1508 = vector.shape_cast %1507 : vector<2xf32> to vector<2x1xf32>
    %cst_256 = arith.constant 2.560000e+02 : f32
    %1509 = vector.broadcast %cst_256 : f32 to vector<2x1xf32>
    %1510 = arith.divf %1508, %1509 : vector<2x1xf32>
    %1511 = vector.broadcast %1510 : vector<2x1xf32> to vector<2x256xf32>
    %1512 = arith.subf %1398, %1511 : vector<2x256xf32>
    %1513 = arith.mulf %1512, %1512 : vector<2x256xf32>
    %cst_257 = arith.constant dense<0.000000e+00> : vector<2xf32>
    %1514 = vector.multi_reduction <add>, %1513, %cst_257 [1] : vector<2x256xf32> to vector<2xf32>
    %1515 = vector.shape_cast %1514 : vector<2xf32> to vector<2x1xf32>
    %cst_258 = arith.constant 2.560000e+02 : f32
    %1516 = vector.broadcast %cst_258 : f32 to vector<2x1xf32>
    %1517 = arith.divf %1515, %1516 : vector<2x1xf32>
    %c0_259 = arith.constant 0 : index
    %1518 = memref.load %arg6[%c0_259] : memref<4xf32, #tpu.memory_space<smem>>
    %cst_260 = arith.constant 9.99999974E-6 : f32
    %1519 = vector.broadcast %cst_260 : f32 to vector<2x1xf32>
    %1520 = arith.addf %1517, %1519 : vector<2x1xf32>
    %1521 = math.rsqrt %1520 : vector<2x1xf32>
    %1522 = vector.broadcast %1518 : f32 to vector<2x1xf32>
    %1523 = arith.mulf %1522, %1521 : vector<2x1xf32>
    %1524 = vector.broadcast %1523 : vector<2x1xf32> to vector<2x256xf32>
    %1525 = arith.mulf %1512, %1524 : vector<2x256xf32>
    %c0_261 = arith.constant 0 : index
    %1526 = memref.load %arg7[%c0_261] : memref<4xf32, #tpu.memory_space<smem>>
    %1527 = vector.broadcast %1526 : f32 to vector<2x256xf32>
    %1528 = arith.addf %1525, %1527 : vector<2x256xf32>
    %cst_262 = arith.constant dense<0.000000e+00> : vector<2xf32>
    %1529 = vector.multi_reduction <add>, %1434, %cst_262 [1] : vector<2x256xf32> to vector<2xf32>
    %1530 = vector.shape_cast %1529 : vector<2xf32> to vector<2x1xf32>
    %cst_263 = arith.constant 2.560000e+02 : f32
    %1531 = vector.broadcast %cst_263 : f32 to vector<2x1xf32>
    %1532 = arith.divf %1530, %1531 : vector<2x1xf32>
    %1533 = vector.broadcast %1532 : vector<2x1xf32> to vector<2x256xf32>
    %1534 = arith.subf %1434, %1533 : vector<2x256xf32>
    %1535 = arith.mulf %1534, %1534 : vector<2x256xf32>
    %cst_264 = arith.constant dense<0.000000e+00> : vector<2xf32>
    %1536 = vector.multi_reduction <add>, %1535, %cst_264 [1] : vector<2x256xf32> to vector<2xf32>
    %1537 = vector.shape_cast %1536 : vector<2xf32> to vector<2x1xf32>
    %cst_265 = arith.constant 2.560000e+02 : f32
    %1538 = vector.broadcast %cst_265 : f32 to vector<2x1xf32>
    %1539 = arith.divf %1537, %1538 : vector<2x1xf32>
    %c1_266 = arith.constant 1 : index
    %1540 = memref.load %arg6[%c1_266] : memref<4xf32, #tpu.memory_space<smem>>
    %cst_267 = arith.constant 9.99999974E-6 : f32
    %1541 = vector.broadcast %cst_267 : f32 to vector<2x1xf32>
    %1542 = arith.addf %1539, %1541 : vector<2x1xf32>
    %1543 = math.rsqrt %1542 : vector<2x1xf32>
    %1544 = vector.broadcast %1540 : f32 to vector<2x1xf32>
    %1545 = arith.mulf %1544, %1543 : vector<2x1xf32>
    %1546 = vector.broadcast %1545 : vector<2x1xf32> to vector<2x256xf32>
    %1547 = arith.mulf %1534, %1546 : vector<2x256xf32>
    %c1_268 = arith.constant 1 : index
    %1548 = memref.load %arg7[%c1_268] : memref<4xf32, #tpu.memory_space<smem>>
    %1549 = vector.broadcast %1548 : f32 to vector<2x256xf32>
    %1550 = arith.addf %1547, %1549 : vector<2x256xf32>
    %cst_269 = arith.constant dense<0.000000e+00> : vector<2xf32>
    %1551 = vector.multi_reduction <add>, %1470, %cst_269 [1] : vector<2x256xf32> to vector<2xf32>
    %1552 = vector.shape_cast %1551 : vector<2xf32> to vector<2x1xf32>
    %cst_270 = arith.constant 2.560000e+02 : f32
    %1553 = vector.broadcast %cst_270 : f32 to vector<2x1xf32>
    %1554 = arith.divf %1552, %1553 : vector<2x1xf32>
    %1555 = vector.broadcast %1554 : vector<2x1xf32> to vector<2x256xf32>
    %1556 = arith.subf %1470, %1555 : vector<2x256xf32>
    %1557 = arith.mulf %1556, %1556 : vector<2x256xf32>
    %cst_271 = arith.constant dense<0.000000e+00> : vector<2xf32>
    %1558 = vector.multi_reduction <add>, %1557, %cst_271 [1] : vector<2x256xf32> to vector<2xf32>
    %1559 = vector.shape_cast %1558 : vector<2xf32> to vector<2x1xf32>
    %cst_272 = arith.constant 2.560000e+02 : f32
    %1560 = vector.broadcast %cst_272 : f32 to vector<2x1xf32>
    %1561 = arith.divf %1559, %1560 : vector<2x1xf32>
    %c2_273 = arith.constant 2 : index
    %1562 = memref.load %arg6[%c2_273] : memref<4xf32, #tpu.memory_space<smem>>
    %cst_274 = arith.constant 9.99999974E-6 : f32
    %1563 = vector.broadcast %cst_274 : f32 to vector<2x1xf32>
    %1564 = arith.addf %1561, %1563 : vector<2x1xf32>
    %1565 = math.rsqrt %1564 : vector<2x1xf32>
    %1566 = vector.broadcast %1562 : f32 to vector<2x1xf32>
    %1567 = arith.mulf %1566, %1565 : vector<2x1xf32>
    %1568 = vector.broadcast %1567 : vector<2x1xf32> to vector<2x256xf32>
    %1569 = arith.mulf %1556, %1568 : vector<2x256xf32>
    %c2_275 = arith.constant 2 : index
    %1570 = memref.load %arg7[%c2_275] : memref<4xf32, #tpu.memory_space<smem>>
    %1571 = vector.broadcast %1570 : f32 to vector<2x256xf32>
    %1572 = arith.addf %1569, %1571 : vector<2x256xf32>
    %cst_276 = arith.constant dense<0.000000e+00> : vector<2xf32>
    %1573 = vector.multi_reduction <add>, %1506, %cst_276 [1] : vector<2x256xf32> to vector<2xf32>
    %1574 = vector.shape_cast %1573 : vector<2xf32> to vector<2x1xf32>
    %cst_277 = arith.constant 2.560000e+02 : f32
    %1575 = vector.broadcast %cst_277 : f32 to vector<2x1xf32>
    %1576 = arith.divf %1574, %1575 : vector<2x1xf32>
    %1577 = vector.broadcast %1576 : vector<2x1xf32> to vector<2x256xf32>
    %1578 = arith.subf %1506, %1577 : vector<2x256xf32>
    %1579 = arith.mulf %1578, %1578 : vector<2x256xf32>
    %cst_278 = arith.constant dense<0.000000e+00> : vector<2xf32>
    %1580 = vector.multi_reduction <add>, %1579, %cst_278 [1] : vector<2x256xf32> to vector<2xf32>
    %1581 = vector.shape_cast %1580 : vector<2xf32> to vector<2x1xf32>
    %cst_279 = arith.constant 2.560000e+02 : f32
    %1582 = vector.broadcast %cst_279 : f32 to vector<2x1xf32>
    %1583 = arith.divf %1581, %1582 : vector<2x1xf32>
    %c3_280 = arith.constant 3 : index
    %1584 = memref.load %arg6[%c3_280] : memref<4xf32, #tpu.memory_space<smem>>
    %cst_281 = arith.constant 9.99999974E-6 : f32
    %1585 = vector.broadcast %cst_281 : f32 to vector<2x1xf32>
    %1586 = arith.addf %1583, %1585 : vector<2x1xf32>
    %1587 = math.rsqrt %1586 : vector<2x1xf32>
    %1588 = vector.broadcast %1584 : f32 to vector<2x1xf32>
    %1589 = arith.mulf %1588, %1587 : vector<2x1xf32>
    %1590 = vector.broadcast %1589 : vector<2x1xf32> to vector<2x256xf32>
    %1591 = arith.mulf %1578, %1590 : vector<2x256xf32>
    %c3_282 = arith.constant 3 : index
    %1592 = memref.load %arg7[%c3_282] : memref<4xf32, #tpu.memory_space<smem>>
    %1593 = vector.broadcast %1592 : f32 to vector<2x256xf32>
    %1594 = arith.addf %1591, %1593 : vector<2x256xf32>
    %1595 = arith.addf %1528, %20 : vector<2x256xf32>
    %c0_283 = arith.constant 0 : index
    %c0_284 = arith.constant 0 : index
    %c0_285 = arith.constant 0 : index
    %1596 = vector.load %arg8[%c0_283, %c0_284, %c0_285] : memref<4x2x256xf32, #tpu.memory_space<vmem>>, vector<1x2x256xf32>
    %1597 = vector.shape_cast %1596 : vector<1x2x256xf32> to vector<2x256xf32>
    %1598 = vector.shape_cast %1595 : vector<2x256xf32> to vector<1x2x256xf32>
    tpu.vector_store %arg8[%c0_283, %c0_284, %c0_285], %1598 {strides = array<i32>} : memref<4x2x256xf32, #tpu.memory_space<vmem>>, vector<1x2x256xf32>,
    %1599 = arith.addf %1550, %22 : vector<2x256xf32>
    %c1_286 = arith.constant 1 : index
    %c0_287 = arith.constant 0 : index
    %c0_288 = arith.constant 0 : index
    %1600 = vector.load %arg8[%c1_286, %c0_287, %c0_288] : memref<4x2x256xf32, #tpu.memory_space<vmem>>, vector<1x2x256xf32>
    %1601 = vector.shape_cast %1600 : vector<1x2x256xf32> to vector<2x256xf32>
    %1602 = vector.shape_cast %1599 : vector<2x256xf32> to vector<1x2x256xf32>
    tpu.vector_store %arg8[%c1_286, %c0_287, %c0_288], %1602 {strides = array<i32>} : memref<4x2x256xf32, #tpu.memory_space<vmem>>, vector<1x2x256xf32>,
    %1603 = arith.addf %1572, %24 : vector<2x256xf32>
    %c2_289 = arith.constant 2 : index
    %c0_290 = arith.constant 0 : index
    %c0_291 = arith.constant 0 : index
    %1604 = vector.load %arg8[%c2_289, %c0_290, %c0_291] : memref<4x2x256xf32, #tpu.memory_space<vmem>>, vector<1x2x256xf32>
    %1605 = vector.shape_cast %1604 : vector<1x2x256xf32> to vector<2x256xf32>
    %1606 = vector.shape_cast %1603 : vector<2x256xf32> to vector<1x2x256xf32>
    tpu.vector_store %arg8[%c2_289, %c0_290, %c0_291], %1606 {strides = array<i32>} : memref<4x2x256xf32, #tpu.memory_space<vmem>>, vector<1x2x256xf32>,
    %1607 = arith.addf %1594, %26 : vector<2x256xf32>
    %c3_292 = arith.constant 3 : index
    %c0_293 = arith.constant 0 : index
    %c0_294 = arith.constant 0 : index
    %1608 = vector.load %arg8[%c3_292, %c0_293, %c0_294] : memref<4x2x256xf32, #tpu.memory_space<vmem>>, vector<1x2x256xf32>
    %1609 = vector.shape_cast %1608 : vector<1x2x256xf32> to vector<2x256xf32>
    %1610 = vector.shape_cast %1607 : vector<2x256xf32> to vector<1x2x256xf32>
    tpu.vector_store %arg8[%c3_292, %c0_293, %c0_294], %1610 {strides = array<i32>} : memref<4x2x256xf32, #tpu.memory_space<vmem>>, vector<1x2x256xf32>,
    return
  }
  func.func @transform_0(%arg0: i32) -> (i32, i32, i32) {
    %c0_i32 = arith.constant 0 : i32
    %c0_i32_0 = arith.constant 0 : i32
    %c0_i32_1 = arith.constant 0 : i32
    return %c0_i32, %arg0, %c0_i32_0 : i32, i32, i32
  }
  func.func @transform_1(%arg0: i32) -> i32 {
    %c0_i32 = arith.constant 0 : i32
    %c0_i32_0 = arith.constant 0 : i32
    return %c0_i32 : i32
  }
  func.func @transform_2(%arg0: i32) -> i32 {
    %c0_i32 = arith.constant 0 : i32
    %c0_i32_0 = arith.constant 0 : i32
    return %c0_i32 : i32
  }
  func.func @transform_3(%arg0: i32) -> i32 {
    %c0_i32 = arith.constant 0 : i32
    %c0_i32_0 = arith.constant 0 : i32
    return %c0_i32 : i32
  }
  func.func @transform_4(%arg0: i32) -> i32 {
    %c0_i32 = arith.constant 0 : i32
    %c0_i32_0 = arith.constant 0 : i32
    return %c0_i32 : i32
  }
  func.func @transform_5(%arg0: i32) -> i32 {
    %c0_i32 = arith.constant 0 : i32
    %c0_i32_0 = arith.constant 0 : i32
    return %c0_i32 : i32
  }
  func.func @transform_6(%arg0: i32) -> i32 {
    %c0_i32 = arith.constant 0 : i32
    %c0_i32_0 = arith.constant 0 : i32
    return %c0_i32 : i32
  }
  func.func @transform_7(%arg0: i32) -> (i32, i32, i32) {
    %c0_i32 = arith.constant 0 : i32
    %c0_i32_0 = arith.constant 0 : i32
    %c0_i32_1 = arith.constant 0 : i32
    return %c0_i32, %arg0, %c0_i32_0 : i32, i32, i32
  }
}

</mosaic_0001>

<llo_original>
// kernel: tpu_custom_call.1
$region0: #{tpu_custom_call.1}
  #allocation0 [shape = 'u32[]', space=smem, size = 0x4, offset = 0x4, fixed_abs, tag = 'smem constant byte address 0x4 - core index']
  #allocation1 [shape = 'u32[144,128]{1,0:T(1,128)}', space=vmem, size = 0x12000, scoped, tag = 'internal scratch']
  %s0 = inlined_call_operand.hbm [shape: f32[4,2,256], index: 0, kind: input, shape index: {}]
  %s1 = inlined_call_operand.hbm [shape: f32[144], index: 1, kind: input, shape index: {}]
  %s2 = inlined_call_operand.vmem [shape: f32[4], index: 2, kind: input, shape index: {}]
  %s3 = inlined_call_operand.vmem [shape: f32[4], index: 3, kind: input, shape index: {}]
  %s4 = inlined_call_operand.vmem [shape: f32[144], index: 4, kind: input, shape index: {}]
  %s5 = inlined_call_operand.vmem [shape: f32[4], index: 5, kind: input, shape index: {}]
  %s6 = inlined_call_operand.vmem [shape: f32[4], index: 6, kind: input, shape index: {}]
  %s7 = inlined_call_operand.hbm [shape: f32[4,2,256], index: 7, kind: output, shape index: {}]
  %s8 = sld [smem:[#allocation0]]
  $region66: #{tpu_custom_call.1} parent=0
    _
  %s10 = ssub.s32 1, %s8
  %s11 = scalar_select 0, %s10, %s8
  $region1: #{tpu_custom_call.1} parent=0
    #allocation2 [shape = 'u8[8192]{0}', space=vmem, size = 0x2000, scoped, tag = 'input window, operand 0, single buffered']
    #allocation3 [shape = 's32[1]{0}', space=sflag, size = 0x4, scoped, tag = 'scoped memory for tpu_custom_call.1']
    #allocation4 [shape = 's32[1]{0}', space=sflag, size = 0x4, scoped, tag = 'scoped memory for tpu_custom_call.1']
    #allocation5 [shape = 's32[1]{0}', space=sflag, size = 0x4, scoped, tag = 'scoped memory for tpu_custom_call.1']
    #allocation6 [shape = 's32[1]{0}', space=sflag, size = 0x4, scoped, tag = 'scoped memory for tpu_custom_call.1']
    #allocation7 [shape = 'u8[1024]{0}', space=smem, size = 0x400, scoped, tag = 'input window, operand 1, single buffered']
    #allocation8 [shape = 'u8[512]{0}', space=smem, size = 0x200, scoped, tag = 'input window, operand 2, single buffered']
    #allocation9 [shape = 'u8[512]{0}', space=smem, size = 0x200, scoped, tag = 'input window, operand 3, single buffered']
    #allocation10 [shape = 's32[1]{0}', space=sflag, size = 0x4, scoped, tag = 'scoped memory for tpu_custom_call.1']
    #allocation11 [shape = 'u8[1024]{0}', space=smem, size = 0x400, scoped, tag = 'input window, operand 4, single buffered']
    #allocation12 [shape = 'u8[512]{0}', space=smem, size = 0x200, scoped, tag = 'input window, operand 5, single buffered']
    #allocation13 [shape = 's32[1]{0}', space=sflag, size = 0x4, scoped, tag = 'scoped memory for tpu_custom_call.1']
    #allocation14 [shape = 'u8[512]{0}', space=smem, size = 0x200, scoped, tag = 'input window, operand 6, single buffered']
    #allocation15 [shape = 'u8[8192]{0}', space=vmem, size = 0x2000, scoped, tag = 'output window, operand 0, single buffered']
    %12 = vsyncpa [#allocation3], 0
    %13 = vsyncpa [#allocation5], 0
    %14 = vsyncpa [#allocation6], 0
    %15 = vsyncpa [#allocation10], 0
    %16 = vsyncpa [#allocation13], 0
    %17 = vsyncpa [#allocation4], 0
    // Predicated region
    $region2: #{tpu_custom_call.1} parent=1 // pred_check
      _
    $region3: #{tpu_custom_call.1} parent=1 // pred_check_branch
      %19 = sbr.rel (0) target = $region5
    $region4: #{tpu_custom_call.1} parent=1 // pred_region
      %s21 = ssub.s32 256, 256
      %22 = vsyncadd [#allocation3], %s21
      %s23 = sshll.u32 [#allocation2], 4
      %s24 = int_to_ptr.vmem [resolvable:$true] %s23
      %29 = dma.hbm_to_vmem [thread:$0]  %s0, 256, %s24, [#allocation3], 64, 64, 4
    $region5: #{tpu_custom_call.1} parent=1 // pred_fallthru
      _
    // Predicated region
    $region6: #{tpu_custom_call.1} parent=1 // pred_check
      _
    $region7: #{tpu_custom_call.1} parent=1 // pred_check_branch
      %31 = sbr.rel (0) target = $region9
    $region8: #{tpu_custom_call.1} parent=1 // pred_region
      %s33 = ssub.s32 32, 32
      %34 = vsyncadd [#allocation5], %s33
      %37 = dma.hbm_to_smem %s1, 32, [#allocation7], [#allocation5]
    $region9: #{tpu_custom_call.1} parent=1 // pred_fallthru
      _
    // Predicated region
    $region10: #{tpu_custom_call.1} parent=1 // pred_check
      _
    $region11: #{tpu_custom_call.1} parent=1 // pred_check_branch
      %39 = sbr.rel (0) target = $region13
    $region12: #{tpu_custom_call.1} parent=1 // pred_region
      %s41 = ssub.s32 16, 16
      %42 = vsyncadd [#allocation6], %s41
      %s44 = sshll.u32 %s2, 4
      %s45 = int_to_ptr.vmem [resolvable:$true] %s44
      %47 = dma.vmem_to_smem %s45, 16, [#allocation8], [#allocation6]
    $region13: #{tpu_custom_call.1} parent=1 // pred_fallthru
      _
    // Predicated region
    $region14: #{tpu_custom_call.1} parent=1 // pred_check
      _
    $region15: #{tpu_custom_call.1} parent=1 // pred_check_branch
      %49 = sbr.rel (0) target = $region17
    $region16: #{tpu_custom_call.1} parent=1 // pred_region
      %s51 = ssub.s32 16, 16
      %52 = vsyncadd [#allocation10], %s51
      %s54 = sshll.u32 %s3, 4
      %s55 = int_to_ptr.vmem [resolvable:$true] %s54
      %57 = dma.vmem_to_smem %s55, 16, [#allocation9], [#allocation10]
    $region17: #{tpu_custom_call.1} parent=1 // pred_fallthru
      _
    // Predicated region
    $region18: #{tpu_custom_call.1} parent=1 // pred_check
      _
    $region19: #{tpu_custom_call.1} parent=1 // pred_check_branch
      %59 = sbr.rel (0) target = $region21
    $region20: #{tpu_custom_call.1} parent=1 // pred_region
      %s61 = ssub.s32 32, 32
      %62 = vsyncadd [#allocation10], %s61
      %s64 = sshll.u32 %s4, 4
      %s65 = int_to_ptr.vmem [resolvable:$true] %s64
      %67 = dma.vmem_to_smem %s65, 32, [#allocation11], [#allocation10]
    $region21: #{tpu_custom_call.1} parent=1 // pred_fallthru
      _
    // Predicated region
    $region22: #{tpu_custom_call.1} parent=1 // pred_check
      _
    $region23: #{tpu_custom_call.1} parent=1 // pred_check_branch
      %69 = sbr.rel (0) target = $region25
    $region24: #{tpu_custom_call.1} parent=1 // pred_region
      %s71 = ssub.s32 16, 16
      %72 = vsyncadd [#allocation13], %s71
      %s74 = sshll.u32 %s5, 4
      %s75 = int_to_ptr.vmem [resolvable:$true] %s74
      %77 = dma.vmem_to_smem %s75, 16, [#allocation12], [#allocation13]
    $region25: #{tpu_custom_call.1} parent=1 // pred_fallthru
      _
    // Predicated region
    $region26: #{tpu_custom_call.1} parent=1 // pred_check
      _
    $region27: #{tpu_custom_call.1} parent=1 // pred_check_branch
      %79 = sbr.rel (0) target = $region29
    $region28: #{tpu_custom_call.1} parent=1 // pred_region
      %s81 = ssub.s32 16, 16
      %82 = vsyncadd [#allocation13], %s81
      %s84 = sshll.u32 %s6, 4
      %s85 = int_to_ptr.vmem [resolvable:$true] %s84
      %87 = dma.vmem_to_smem %s85, 16, [#allocation14], [#allocation13]
    $region29: #{tpu_custom_call.1} parent=1 // pred_fallthru
      _
    // Predicated region
    $region30: #{tpu_custom_call.1} parent=1 // pred_check
      _
    $region31: #{tpu_custom_call.1} parent=1 // pred_check_branch
      %89 = sbr.rel (0) target = $region33
    $region32: #{tpu_custom_call.1} parent=1 // pred_region
      %90 = dma.done [#allocation3], 256
    $region33: #{tpu_custom_call.1} parent=1 // pred_fallthru
      _
    // Predicated region
    $region34: #{tpu_custom_call.1} parent=1 // pred_check
      _
    $region35: #{tpu_custom_call.1} parent=1 // pred_check_branch
      %92 = sbr.rel (0) target = $region37
    $region36: #{tpu_custom_call.1} parent=1 // pred_region
      %93 = dma.done [#allocation5], 32
    $region37: #{tpu_custom_call.1} parent=1 // pred_fallthru
      _
    // Predicated region
    $region38: #{tpu_custom_call.1} parent=1 // pred_check
      _
    $region39: #{tpu_custom_call.1} parent=1 // pred_check_branch
      %95 = sbr.rel (0) target = $region41
    $region40: #{tpu_custom_call.1} parent=1 // pred_region
      %96 = dma.done [#allocation6], 16
    $region41: #{tpu_custom_call.1} parent=1 // pred_fallthru
      _
    // Predicated region
    $region42: #{tpu_custom_call.1} parent=1 // pred_check
      _
    $region43: #{tpu_custom_call.1} parent=1 // pred_check_branch
      %98 = sbr.rel (0) target = $region45
    $region44: #{tpu_custom_call.1} parent=1 // pred_region
      %99 = dma.done [#allocation10], 16
    $region45: #{tpu_custom_call.1} parent=1 // pred_fallthru
      _
    // Predicated region
    $region46: #{tpu_custom_call.1} parent=1 // pred_check
      _
    $region47: #{tpu_custom_call.1} parent=1 // pred_check_branch
      %101 = sbr.rel (0) target = $region49
    $region48: #{tpu_custom_call.1} parent=1 // pred_region
      %102 = dma.done [#allocation10], 32
    $region49: #{tpu_custom_call.1} parent=1 // pred_fallthru
      _
    // Predicated region
    $region50: #{tpu_custom_call.1} parent=1 // pred_check
      _
    $region51: #{tpu_custom_call.1} parent=1 // pred_check_branch
      %104 = sbr.rel (0) target = $region53
    $region52: #{tpu_custom_call.1} parent=1 // pred_region
      %105 = dma.done [#allocation13], 16
    $region53: #{tpu_custom_call.1} parent=1 // pred_fallthru
      _
    // Predicated region
    $region54: #{tpu_custom_call.1} parent=1 // pred_check
      _
    $region55: #{tpu_custom_call.1} parent=1 // pred_check_branch
      %107 = sbr.rel (0) target = $region57
    $region56: #{tpu_custom_call.1} parent=1 // pred_region
      %108 = dma.done [#allocation13], 16
    $region57: #{tpu_custom_call.1} parent=1 // pred_fallthru
      _
    %109 = sfence
    %v110 = vlaneseq
    %v111 = vand.u32 %v110, 127
    %v112 = vadd.s32 %v111, 128
    %v113 = vand.u32 %v111, 15
    %v114 = vand.u32 %v112, 15
    %vm115 = vcmp.eq.s32.totalorder %v113, 0
    %vm116 = vcmp.eq.s32.totalorder %v114, 0
    %v117 = vsel %vm115, 1, 0
    %v118 = vsel %vm116, 1, 0
    %vm119 = vcmp.eq.s32.totalorder %v117, 1
    %vm120 = vcmp.eq.s32.totalorder %v118, 1
    %vm121 = vcmp.eq.s32.totalorder %v113, 15
    %vm122 = vcmp.eq.s32.totalorder %v114, 15
    %v123 = vsel %vm121, 1, 0
    %v124 = vsel %vm122, 1, 0
    %vm125 = vcmp.eq.s32.totalorder %v123, 1
    %vm126 = vcmp.eq.s32.totalorder %v124, 1
    %vm127 = vcmp.lt.s32.totalorder %v111, 16
    %vm128 = vcmp.lt.s32.totalorder %v112, 16
    %v129 = vsel %vm127, 1, 0
    %v130 = vsel %vm128, 1, 0
    %vm131 = vcmp.eq.s32.totalorder %v129, 1
    %vm132 = vcmp.eq.s32.totalorder %v130, 1
    %vm133 = vcmp.ge.s32.totalorder %v111, 240
    %vm134 = vcmp.ge.s32.totalorder %v112, 240
    %v135 = vsel %vm133, 1, 0
    %v136 = vsel %vm134, 1, 0
    %vm137 = vcmp.eq.s32.totalorder %v135, 1
    %vm138 = vcmp.eq.s32.totalorder %v136, 1
    %v139 = vld [vmem:[#allocation2] sm:$0xf]
    %s140 = scalar_lea.vmem [#allocation2], 4
    %v141 = vld [vmem:[%s140] sm:$0xf]
    %s142 = scalar_lea.vmem [#allocation2], 8
    %v143 = vld [vmem:[%s142] sm:$0xf]
    %s144 = scalar_lea.vmem [#allocation2], 12
    %v145 = vld [vmem:[%s144] sm:$0xf]
    %v148 = vunpack.c.l.s4 1983009808
    %v149 = vunpack.c.0.s8 %v148
    %v150 = vlaneseq
    %v151 = vshrl.u32 %v150, 7
    %v152 = vsub.s32 %v149, %v151
    %v153 = vrot.slane %v139, %v152
    %v154 = vcombine.high %v153, %v153
    %157 = vrot.lane.b32.xlu0 %v153, 17
    %v158 = vpop.permute.xlu0 %157
    %159 = vrot.lane.b32.xlu0 %v154, 17
    %v160 = vpop.permute.xlu0 %159
    %vm161 = vcmp.lt.s32.totalorder %v111, 17
    %v162 = vsel %vm161, %v158, %v160
    %v163 = vsel %vm161, %v160, %v158
    %164 = vrot.lane.b32.xlu0 %v153, 16
    %v165 = vpop.permute.xlu0 %164
    %166 = vrot.lane.b32.xlu0 %v154, 16
    %v167 = vpop.permute.xlu0 %166
    %v168 = vsel %vm127, %v165, %v167
    %v169 = vsel %vm127, %v167, %v165
    %170 = vrot.lane.b32.xlu0 %v153, 15
    %v171 = vpop.permute.xlu0 %170
    %172 = vrot.lane.b32.xlu0 %v154, 15
    %v173 = vpop.permute.xlu0 %172
    %vm174 = vcmp.lt.s32.totalorder %v111, 15
    %v175 = vsel %vm174, %v171, %v173
    %v176 = vsel %vm174, %v173, %v171
    %177 = vrot.lane.b32.xlu0 %v153, 1
    %v178 = vpop.permute.xlu0 %177
    %179 = vrot.lane.b32.xlu0 %v154, 1
    %v180 = vpop.permute.xlu0 %179
    %vm181 = vcmp.lt.s32.totalorder %v111, 1
    %v182 = vsel %vm181, %v178, %v180
    %v183 = vsel %vm181, %v180, %v178
    %184 = vrot.lane.b32.xlu0 %v153, 127
    %v185 = vpop.permute.xlu0 %184
    %186 = vrot.lane.b32.xlu0 %v154, 127
    %v187 = vpop.permute.xlu0 %186
    %vm188 = vcmp.lt.s32.totalorder %v111, 127
    %v189 = vsel %vm188, %v185, %v187
    %v190 = vsel %vm188, %v187, %v185
    %191 = vrot.lane.b32.xlu0 %v153, 113
    %v192 = vpop.permute.xlu0 %191
    %193 = vrot.lane.b32.xlu0 %v154, 113
    %v194 = vpop.permute.xlu0 %193
    %vm195 = vcmp.lt.s32.totalorder %v111, 113
    %v196 = vsel %vm195, %v192, %v194
    %v197 = vsel %vm195, %v194, %v192
    %198 = vrot.lane.b32.xlu0 %v153, 112
    %v199 = vpop.permute.xlu0 %198
    %200 = vrot.lane.b32.xlu0 %v154, 112
    %v201 = vpop.permute.xlu0 %200
    %vm202 = vcmp.lt.s32.totalorder %v111, 112
    %v203 = vsel %vm202, %v199, %v201
    %v204 = vsel %vm202, %v201, %v199
    %205 = vrot.lane.b32.xlu0 %v153, 111
    %v206 = vpop.permute.xlu0 %205
    %207 = vrot.lane.b32.xlu0 %v154, 111
    %v208 = vpop.permute.xlu0 %207
    %vm209 = vcmp.lt.s32.totalorder %v111, 111
    %v210 = vsel %vm209, %v206, %v208
    %v211 = vsel %vm209, %v208, %v206
    %v212 = vsel %vm119, %v176, %v163
    %v213 = vsel %vm120, %v175, %v162
    %v214 = vsel %vm131, %v196, %v212
    %v215 = vsel %vm132, %v197, %v213
    %vm216 = vmand %vm131, %vm119
    %vm217 = vmand %vm132, %vm120
    %v218 = vsel %vm216, %v210, %v214
    %v219 = vsel %vm217, %v211, %v215
    %v220 = vsel %vm131, %v203, %v169
    %v221 = vsel %vm132, %v204, %v168
    %v222 = vsel %vm125, %v163, %v176
    %v223 = vsel %vm126, %v162, %v175
    %v224 = vsel %vm131, %v210, %v222
    %v225 = vsel %vm132, %v211, %v223
    %vm226 = vmand %vm131, %vm125
    %vm227 = vmand %vm132, %vm126
    %v228 = vsel %vm226, %v196, %v224
    %v229 = vsel %vm227, %v197, %v225
    %v230 = vsel %vm119, %v189, %v183
    %v231 = vsel %vm120, %v190, %v182
    %v232 = vsel %vm125, %v183, %v189
    %v233 = vsel %vm126, %v182, %v190
    %v234 = vsel %vm119, %v210, %v196
    %v235 = vsel %vm120, %v211, %v197
    %v236 = vsel %vm137, %v163, %v234
    %v237 = vsel %vm138, %v162, %v235
    %vm238 = vmand %vm137, %vm119
    %vm239 = vmand %vm138, %vm120
    %v240 = vsel %vm238, %v176, %v236
    %v241 = vsel %vm239, %v175, %v237
    %v242 = vsel %vm137, %v169, %v203
    %v243 = vsel %vm138, %v168, %v204
    %v244 = vsel %vm125, %v196, %v210
    %v245 = vsel %vm126, %v197, %v211
    %v246 = vsel %vm137, %v176, %v244
    %v247 = vsel %vm138, %v175, %v245
    %vm248 = vmand %vm137, %vm125
    %vm249 = vmand %vm138, %vm126
    %v250 = vsel %vm248, %v163, %v246
    %v251 = vsel %vm249, %v162, %v247
    %s252 = sld [smem:[#allocation7]]
    %v253 = vstv %s252
    %v254 = vmul.f32 %v253, %v218
    %v255 = vmul.f32 %v253, %v219
    %v256 = vadd.f32 %v254, 0.0
    %v257 = vadd.f32 %v255, 0.0
    %s258 = sld [smem:[#allocation7 + $0x1]]
    %v259 = vstv %s258
    %v260 = vmul.f32 %v259, %v220
    %v261 = vmul.f32 %v259, %v221
    %v262 = vadd.f32 %v256, %v260
    %v263 = vadd.f32 %v257, %v261
    %s264 = sld [smem:[#allocation7 + $0x2]]
    %v265 = vstv %s264
    %v266 = vmul.f32 %v265, %v228
    %v267 = vmul.f32 %v265, %v229
    %v268 = vadd.f32 %v262, %v266
    %v269 = vadd.f32 %v263, %v267
    %s270 = sld [smem:[#allocation7 + $0x3]]
    %v271 = vstv %s270
    %v272 = vmul.f32 %v271, %v230
    %v273 = vmul.f32 %v271, %v231
    %v274 = vadd.f32 %v268, %v272
    %v275 = vadd.f32 %v269, %v273
    %s276 = sld [smem:[#allocation7 + $0x4]]
    %v277 = vstv %s276
    %v278 = vmul.f32 %v277, %v139
    %v281 = vunpack.c.l.s4 1983009808
    %v282 = vunpack.c.0.s8 %v281
    %v283 = vlaneseq
    %v284 = vshrl.u32 %v283, 7
    %v285 = vsub.s32 %v282, %v284
    %v286 = vrot.slane %v278, %v285
    %v287 = vcombine.high %v286, %v286
    %v290 = vadd.f32 %v274, %v286
    %v291 = vadd.f32 %v275, %v287
    %s292 = sld [smem:[#allocation7 + $0x5]]
    %v293 = vstv %s292
    %v294 = vmul.f32 %v293, %v232
    %v295 = vmul.f32 %v293, %v233
    %v296 = vadd.f32 %v290, %v294
    %v297 = vadd.f32 %v291, %v295
    %s298 = sld [smem:[#allocation7 + $0x6]]
    %v299 = vstv %s298
    %v300 = vmul.f32 %v299, %v240
    %v301 = vmul.f32 %v299, %v241
    %v302 = vadd.f32 %v296, %v300
    %v303 = vadd.f32 %v297, %v301
    %s304 = sld [smem:[#allocation7 + $0x7]]
    %v305 = vstv %s304
    %v306 = vmul.f32 %v305, %v242
    %v307 = vmul.f32 %v305, %v243
    %v308 = vadd.f32 %v302, %v306
    %v309 = vadd.f32 %v303, %v307
    %s310 = sld [smem:[#allocation7 + $0x8]]
    %v311 = vstv %s310
    %v312 = vmul.f32 %v311, %v250
    %v313 = vmul.f32 %v311, %v251
    %v314 = vadd.f32 %v308, %v312
    %v315 = vadd.f32 %v309, %v313
    %s316 = sld [smem:[#allocation7 + $0x24]]
    %v317 = vstv %s316
    %v318 = vmul.f32 %v317, %v218
    %v319 = vmul.f32 %v317, %v219
    %v320 = vadd.f32 %v318, 0.0
    %v321 = vadd.f32 %v319, 0.0
    %s322 = sld [smem:[#allocation7 + $0x25]]
    %v323 = vstv %s322
    %v324 = vmul.f32 %v323, %v220
    %v325 = vmul.f32 %v323, %v221
    %v326 = vadd.f32 %v320, %v324
    %v327 = vadd.f32 %v321, %v325
    %s328 = sld [smem:[#allocation7 + $0x26]]
    %v329 = vstv %s328
    %v330 = vmul.f32 %v329, %v228
    %v331 = vmul.f32 %v329, %v229
    %v332 = vadd.f32 %v326, %v330
    %v333 = vadd.f32 %v327, %v331
    %s334 = sld [smem:[#allocation7 + $0x27]]
    %v335 = vstv %s334
    %v336 = vmul.f32 %v335, %v230
    %v337 = vmul.f32 %v335, %v231
    %v338 = vadd.f32 %v332, %v336
    %v339 = vadd.f32 %v333, %v337
    %s340 = sld [smem:[#allocation7 + $0x28]]
    %v341 = vstv %s340
    %v342 = vmul.f32 %v341, %v139
    %v345 = vunpack.c.l.s4 1983009808
    %v346 = vunpack.c.0.s8 %v345
    %v347 = vlaneseq
    %v348 = vshrl.u32 %v347, 7
    %v349 = vsub.s32 %v346, %v348
    %v350 = vrot.slane %v342, %v349
    %v351 = vcombine.high %v350, %v350
    %v354 = vadd.f32 %v338, %v350
    %v355 = vadd.f32 %v339, %v351
    %s356 = sld [smem:[#allocation7 + $0x29]]
    %v357 = vstv %s356
    %v358 = vmul.f32 %v357, %v232
    %v359 = vmul.f32 %v357, %v233
    %v360 = vadd.f32 %v354, %v358
    %v361 = vadd.f32 %v355, %v359
    %s362 = sld [smem:[#allocation7 + $0x2a]]
    %v363 = vstv %s362
    %v364 = vmul.f32 %v363, %v240
    %v365 = vmul.f32 %v363, %v241
    %v366 = vadd.f32 %v360, %v364
    %v367 = vadd.f32 %v361, %v365
    %s368 = sld [smem:[#allocation7 + $0x2b]]
    %v369 = vstv %s368
    %v370 = vmul.f32 %v369, %v242
    %v371 = vmul.f32 %v369, %v243
    %v372 = vadd.f32 %v366, %v370
    %v373 = vadd.f32 %v367, %v371
    %s374 = sld [smem:[#allocation7 + $0x2c]]
    %v375 = vstv %s374
    %v376 = vmul.f32 %v375, %v250
    %v377 = vmul.f32 %v375, %v251
    %v378 = vadd.f32 %v372, %v376
    %v379 = vadd.f32 %v373, %v377
    %s380 = sld [smem:[#allocation7 + $0x48]]
    %v381 = vstv %s380
    %v382 = vmul.f32 %v381, %v218
    %v383 = vmul.f32 %v381, %v219
    %v384 = vadd.f32 %v382, 0.0
    %v385 = vadd.f32 %v383, 0.0
    %s386 = sld [smem:[#allocation7 + $0x49]]
    %v387 = vstv %s386
    %v388 = vmul.f32 %v387, %v220
    %v389 = vmul.f32 %v387, %v221
    %v390 = vadd.f32 %v384, %v388
    %v391 = vadd.f32 %v385, %v389
    %s392 = sld [smem:[#allocation7 + $0x4a]]
    %v393 = vstv %s392
    %v394 = vmul.f32 %v393, %v228
    %v395 = vmul.f32 %v393, %v229
    %v396 = vadd.f32 %v390, %v394
    %v397 = vadd.f32 %v391, %v395
    %s398 = sld [smem:[#allocation7 + $0x4b]]
    %v399 = vstv %s398
    %v400 = vmul.f32 %v399, %v230
    %v401 = vmul.f32 %v399, %v231
    %v402 = vadd.f32 %v396, %v400
    %v403 = vadd.f32 %v397, %v401
    %s404 = sld [smem:[#allocation7 + $0x4c]]
    %v405 = vstv %s404
    %v406 = vmul.f32 %v405, %v139
    %v409 = vunpack.c.l.s4 1983009808
    %v410 = vunpack.c.0.s8 %v409
    %v411 = vlaneseq
    %v412 = vshrl.u32 %v411, 7
    %v413 = vsub.s32 %v410, %v412
    %v414 = vrot.slane %v406, %v413
    %v415 = vcombine.high %v414, %v414
    %v418 = vadd.f32 %v402, %v414
    %v419 = vadd.f32 %v403, %v415
    %s420 = sld [smem:[#allocation7 + $0x4d]]
    %v421 = vstv %s420
    %v422 = vmul.f32 %v421, %v232
    %v423 = vmul.f32 %v421, %v233
    %v424 = vadd.f32 %v418, %v422
    %v425 = vadd.f32 %v419, %v423
    %s426 = sld [smem:[#allocation7 + $0x4e]]
    %v427 = vstv %s426
    %v428 = vmul.f32 %v427, %v240
    %v429 = vmul.f32 %v427, %v241
    %v430 = vadd.f32 %v424, %v428
    %v431 = vadd.f32 %v425, %v429
    %s432 = sld [smem:[#allocation7 + $0x4f]]
    %v433 = vstv %s432
    %v434 = vmul.f32 %v433, %v242
    %v435 = vmul.f32 %v433, %v243
    %v436 = vadd.f32 %v430, %v434
    %v437 = vadd.f32 %v431, %v435
    %s438 = sld [smem:[#allocation7 + $0x50]]
    %v439 = vstv %s438
    %v440 = vmul.f32 %v439, %v250
    %v441 = vmul.f32 %v439, %v251
    %v442 = vadd.f32 %v436, %v440
    %v443 = vadd.f32 %v437, %v441
    %s444 = sld [smem:[#allocation7 + $0x6c]]
    %v445 = vstv %s444
    %v446 = vmul.f32 %v445, %v218
    %v447 = vmul.f32 %v445, %v219
    %v448 = vadd.f32 %v446, 0.0
    %v449 = vadd.f32 %v447, 0.0
    %s450 = sld [smem:[#allocation7 + $0x6d]]
    %v451 = vstv %s450
    %v452 = vmul.f32 %v451, %v220
    %v453 = vmul.f32 %v451, %v221
    %v454 = vadd.f32 %v448, %v452
    %v455 = vadd.f32 %v449, %v453
    %s456 = sld [smem:[#allocation7 + $0x6e]]
    %v457 = vstv %s456
    %v458 = vmul.f32 %v457, %v228
    %v459 = vmul.f32 %v457, %v229
    %v460 = vadd.f32 %v454, %v458
    %v461 = vadd.f32 %v455, %v459
    %s462 = sld [smem:[#allocation7 + $0x6f]]
    %v463 = vstv %s462
    %v464 = vmul.f32 %v463, %v230
    %v465 = vmul.f32 %v463, %v231
    %v466 = vadd.f32 %v460, %v464
    %v467 = vadd.f32 %v461, %v465
    %s468 = sld [smem:[#allocation7 + $0x70]]
    %v469 = vstv %s468
    %v470 = vmul.f32 %v469, %v139
    %v473 = vunpack.c.l.s4 1983009808
    %v474 = vunpack.c.0.s8 %v473
    %v475 = vlaneseq
    %v476 = vshrl.u32 %v475, 7
    %v477 = vsub.s32 %v474, %v476
    %v478 = vrot.slane %v470, %v477
    %v479 = vcombine.high %v478, %v478
    %v482 = vadd.f32 %v466, %v478
    %v483 = vadd.f32 %v467, %v479
    %s484 = sld [smem:[#allocation7 + $0x71]]
    %v485 = vstv %s484
    %v486 = vmul.f32 %v485, %v232
    %v487 = vmul.f32 %v485, %v233
    %v488 = vadd.f32 %v482, %v486
    %v489 = vadd.f32 %v483, %v487
    %s490 = sld [smem:[#allocation7 + $0x72]]
    %v491 = vstv %s490
    %v492 = vmul.f32 %v491, %v240
    %v493 = vmul.f32 %v491, %v241
    %v494 = vadd.f32 %v488, %v492
    %v495 = vadd.f32 %v489, %v493
    %s496 = sld [smem:[#allocation7 + $0x73]]
    %v497 = vstv %s496
    %v498 = vmul.f32 %v497, %v242
    %v499 = vmul.f32 %v497, %v243
    %v500 = vadd.f32 %v494, %v498
    %v501 = vadd.f32 %v495, %v499
    %s502 = sld [smem:[#allocation7 + $0x74]]
    %v503 = vstv %s502
    %v504 = vmul.f32 %v503, %v250
    %v505 = vmul.f32 %v503, %v251
    %v506 = vadd.f32 %v500, %v504
    %v507 = vadd.f32 %v501, %v505
    %v510 = vunpack.c.l.s4 1983009808
    %v511 = vunpack.c.0.s8 %v510
    %v512 = vlaneseq
    %v513 = vshrl.u32 %v512, 7
    %v514 = vsub.s32 %v511, %v513
    %v515 = vrot.slane %v141, %v514
    %v516 = vcombine.high %v515, %v515
    %519 = vrot.lane.b32.xlu0 %v515, 17
    %v520 = vpop.permute.xlu0 %519
    %521 = vrot.lane.b32.xlu0 %v516, 17
    %v522 = vpop.permute.xlu0 %521
    %v523 = vsel %vm161, %v520, %v522
    %v524 = vsel %vm161, %v522, %v520
    %525 = vrot.lane.b32.xlu0 %v515, 16
    %v526 = vpop.permute.xlu0 %525
    %527 = vrot.lane.b32.xlu0 %v516, 16
    %v528 = vpop.permute.xlu0 %527
    %v529 = vsel %vm127, %v526, %v528
    %v530 = vsel %vm127, %v528, %v526
    %531 = vrot.lane.b32.xlu0 %v515, 15
    %v532 = vpop.permute.xlu0 %531
    %533 = vrot.lane.b32.xlu0 %v516, 15
    %v534 = vpop.permute.xlu0 %533
    %v535 = vsel %vm174, %v532, %v534
    %v536 = vsel %vm174, %v534, %v532
    %537 = vrot.lane.b32.xlu0 %v515, 1
    %v538 = vpop.permute.xlu0 %537
    %539 = vrot.lane.b32.xlu0 %v516, 1
    %v540 = vpop.permute.xlu0 %539
    %v541 = vsel %vm181, %v538, %v540
    %v542 = vsel %vm181, %v540, %v538
    %543 = vrot.lane.b32.xlu0 %v515, 127
    %v544 = vpop.permute.xlu0 %543
    %545 = vrot.lane.b32.xlu0 %v516, 127
    %v546 = vpop.permute.xlu0 %545
    %v547 = vsel %vm188, %v544, %v546
    %v548 = vsel %vm188, %v546, %v544
    %549 = vrot.lane.b32.xlu0 %v515, 113
    %v550 = vpop.permute.xlu0 %549
    %551 = vrot.lane.b32.xlu0 %v516, 113
    %v552 = vpop.permute.xlu0 %551
    %v553 = vsel %vm195, %v550, %v552
    %v554 = vsel %vm195, %v552, %v550
    %555 = vrot.lane.b32.xlu0 %v515, 112
    %v556 = vpop.permute.xlu0 %555
    %557 = vrot.lane.b32.xlu0 %v516, 112
    %v558 = vpop.permute.xlu0 %557
    %v559 = vsel %vm202, %v556, %v558
    %v560 = vsel %vm202, %v558, %v556
    %561 = vrot.lane.b32.xlu0 %v515, 111
    %v562 = vpop.permute.xlu0 %561
    %563 = vrot.lane.b32.xlu0 %v516, 111
    %v564 = vpop.permute.xlu0 %563
    %v565 = vsel %vm209, %v562, %v564
    %v566 = vsel %vm209, %v564, %v562
    %v567 = vsel %vm119, %v536, %v524
    %v568 = vsel %vm120, %v535, %v523
    %v569 = vsel %vm131, %v553, %v567
    %v570 = vsel %vm132, %v554, %v568
    %v571 = vsel %vm216, %v565, %v569
    %v572 = vsel %vm217, %v566, %v570
    %v573 = vsel %vm131, %v559, %v530
    %v574 = vsel %vm132, %v560, %v529
    %v575 = vsel %vm125, %v524, %v536
    %v576 = vsel %vm126, %v523, %v535
    %v577 = vsel %vm131, %v565, %v575
    %v578 = vsel %vm132, %v566, %v576
    %v579 = vsel %vm226, %v553, %v577
    %v580 = vsel %vm227, %v554, %v578
    %v581 = vsel %vm119, %v547, %v542
    %v582 = vsel %vm120, %v548, %v541
    %v583 = vsel %vm125, %v542, %v547
    %v584 = vsel %vm126, %v541, %v548
    %v585 = vsel %vm119, %v565, %v553
    %v586 = vsel %vm120, %v566, %v554
    %v587 = vsel %vm137, %v524, %v585
    %v588 = vsel %vm138, %v523, %v586
    %v589 = vsel %vm238, %v536, %v587
    %v590 = vsel %vm239, %v535, %v588
    %v591 = vsel %vm137, %v530, %v559
    %v592 = vsel %vm138, %v529, %v560
    %v593 = vsel %vm125, %v553, %v565
    %v594 = vsel %vm126, %v554, %v566
    %v595 = vsel %vm137, %v536, %v593
    %v596 = vsel %vm138, %v535, %v594
    %v597 = vsel %vm248, %v524, %v595
    %v598 = vsel %vm249, %v523, %v596
    %s599 = sld [smem:[#allocation7 + $0x9]]
    %v600 = vstv %s599
    %v601 = vmul.f32 %v600, %v571
    %v602 = vmul.f32 %v600, %v572
    %v603 = vadd.f32 %v314, %v601
    %v604 = vadd.f32 %v315, %v602
    %s605 = sld [smem:[#allocation7 + $0xa]]
    %v606 = vstv %s605
    %v607 = vmul.f32 %v606, %v573
    %v608 = vmul.f32 %v606, %v574
    %v609 = vadd.f32 %v603, %v607
    %v610 = vadd.f32 %v604, %v608
    %s611 = sld [smem:[#allocation7 + $0xb]]
    %v612 = vstv %s611
    %v613 = vmul.f32 %v612, %v579
    %v614 = vmul.f32 %v612, %v580
    %v615 = vadd.f32 %v609, %v613
    %v616 = vadd.f32 %v610, %v614
    %s617 = sld [smem:[#allocation7 + $0xc]]
    %v618 = vstv %s617
    %v619 = vmul.f32 %v618, %v581
    %v620 = vmul.f32 %v618, %v582
    %v621 = vadd.f32 %v615, %v619
    %v622 = vadd.f32 %v616, %v620
    %s623 = sld [smem:[#allocation7 + $0xd]]
    %v624 = vstv %s623
    %v625 = vmul.f32 %v624, %v141
    %v628 = vunpack.c.l.s4 1983009808
    %v629 = vunpack.c.0.s8 %v628
    %v630 = vlaneseq
    %v631 = vshrl.u32 %v630, 7
    %v632 = vsub.s32 %v629, %v631
    %v633 = vrot.slane %v625, %v632
    %v634 = vcombine.high %v633, %v633
    %v637 = vadd.f32 %v621, %v633
    %v638 = vadd.f32 %v622, %v634
    %s639 = sld [smem:[#allocation7 + $0xe]]
    %v640 = vstv %s639
    %v641 = vmul.f32 %v640, %v583
    %v642 = vmul.f32 %v640, %v584
    %v643 = vadd.f32 %v637, %v641
    %v644 = vadd.f32 %v638, %v642
    %s645 = sld [smem:[#allocation7 + $0xf]]
    %v646 = vstv %s645
    %v647 = vmul.f32 %v646, %v589
    %v648 = vmul.f32 %v646, %v590
    %v649 = vadd.f32 %v643, %v647
    %v650 = vadd.f32 %v644, %v648
    %s651 = sld [smem:[#allocation7 + $0x10]]
    %v652 = vstv %s651
    %v653 = vmul.f32 %v652, %v591
    %v654 = vmul.f32 %v652, %v592
    %v655 = vadd.f32 %v649, %v653
    %v656 = vadd.f32 %v650, %v654
    %s657 = sld [smem:[#allocation7 + $0x11]]
    %v658 = vstv %s657
    %v659 = vmul.f32 %v658, %v597
    %v660 = vmul.f32 %v658, %v598
    %v661 = vadd.f32 %v655, %v659
    %v662 = vadd.f32 %v656, %v660
    %s663 = sld [smem:[#allocation7 + $0x2d]]
    %v664 = vstv %s663
    %v665 = vmul.f32 %v664, %v571
    %v666 = vmul.f32 %v664, %v572
    %v667 = vadd.f32 %v378, %v665
    %v668 = vadd.f32 %v379, %v666
    %s669 = sld [smem:[#allocation7 + $0x2e]]
    %v670 = vstv %s669
    %v671 = vmul.f32 %v670, %v573
    %v672 = vmul.f32 %v670, %v574
    %v673 = vadd.f32 %v667, %v671
    %v674 = vadd.f32 %v668, %v672
    %s675 = sld [smem:[#allocation7 + $0x2f]]
    %v676 = vstv %s675
    %v677 = vmul.f32 %v676, %v579
    %v678 = vmul.f32 %v676, %v580
    %v679 = vadd.f32 %v673, %v677
    %v680 = vadd.f32 %v674, %v678
    %s681 = sld [smem:[#allocation7 + $0x30]]
    %v682 = vstv %s681
    %v683 = vmul.f32 %v682, %v581
    %v684 = vmul.f32 %v682, %v582
    %v685 = vadd.f32 %v679, %v683
    %v686 = vadd.f32 %v680, %v684
    %s687 = sld [smem:[#allocation7 + $0x31]]
    %v688 = vstv %s687
    %v689 = vmul.f32 %v688, %v141
    %v692 = vunpack.c.l.s4 1983009808
    %v693 = vunpack.c.0.s8 %v692
    %v694 = vlaneseq
    %v695 = vshrl.u32 %v694, 7
    %v696 = vsub.s32 %v693, %v695
    %v697 = vrot.slane %v689, %v696
    %v698 = vcombine.high %v697, %v697
    %v701 = vadd.f32 %v685, %v697
    %v702 = vadd.f32 %v686, %v698
    %s703 = sld [smem:[#allocation7 + $0x32]]
    %v704 = vstv %s703
    %v705 = vmul.f32 %v704, %v583
    %v706 = vmul.f32 %v704, %v584
    %v707 = vadd.f32 %v701, %v705
    %v708 = vadd.f32 %v702, %v706
    %s709 = sld [smem:[#allocation7 + $0x33]]
    %v710 = vstv %s709
    %v711 = vmul.f32 %v710, %v589
    %v712 = vmul.f32 %v710, %v590
    %v713 = vadd.f32 %v707, %v711
    %v714 = vadd.f32 %v708, %v712
    %s715 = sld [smem:[#allocation7 + $0x34]]
    %v716 = vstv %s715
    %v717 = vmul.f32 %v716, %v591
    %v718 = vmul.f32 %v716, %v592
    %v719 = vadd.f32 %v713, %v717
    %v720 = vadd.f32 %v714, %v718
    %s721 = sld [smem:[#allocation7 + $0x35]]
    %v722 = vstv %s721
    %v723 = vmul.f32 %v722, %v597
    %v724 = vmul.f32 %v722, %v598
    %v725 = vadd.f32 %v719, %v723
    %v726 = vadd.f32 %v720, %v724
    %s727 = sld [smem:[#allocation7 + $0x51]]
    %v728 = vstv %s727
    %v729 = vmul.f32 %v728, %v571
    %v730 = vmul.f32 %v728, %v572
    %v731 = vadd.f32 %v442, %v729
    %v732 = vadd.f32 %v443, %v730
    %s733 = sld [smem:[#allocation7 + $0x52]]
    %v734 = vstv %s733
    %v735 = vmul.f32 %v734, %v573
    %v736 = vmul.f32 %v734, %v574
    %v737 = vadd.f32 %v731, %v735
    %v738 = vadd.f32 %v732, %v736
    %s739 = sld [smem:[#allocation7 + $0x53]]
    %v740 = vstv %s739
    %v741 = vmul.f32 %v740, %v579
    %v742 = vmul.f32 %v740, %v580
    %v743 = vadd.f32 %v737, %v741
    %v744 = vadd.f32 %v738, %v742
    %s745 = sld [smem:[#allocation7 + $0x54]]
    %v746 = vstv %s745
    %v747 = vmul.f32 %v746, %v581
    %v748 = vmul.f32 %v746, %v582
    %v749 = vadd.f32 %v743, %v747
    %v750 = vadd.f32 %v744, %v748
    %s751 = sld [smem:[#allocation7 + $0x55]]
    %v752 = vstv %s751
    %v753 = vmul.f32 %v752, %v141
    %v756 = vunpack.c.l.s4 1983009808
    %v757 = vunpack.c.0.s8 %v756
    %v758 = vlaneseq
    %v759 = vshrl.u32 %v758, 7
    %v760 = vsub.s32 %v757, %v759
    %v761 = vrot.slane %v753, %v760
    %v762 = vcombine.high %v761, %v761
    %v765 = vadd.f32 %v749, %v761
    %v766 = vadd.f32 %v750, %v762
    %s767 = sld [smem:[#allocation7 + $0x56]]
    %v768 = vstv %s767
    %v769 = vmul.f32 %v768, %v583
    %v770 = vmul.f32 %v768, %v584
    %v771 = vadd.f32 %v765, %v769
    %v772 = vadd.f32 %v766, %v770
    %s773 = sld [smem:[#allocation7 + $0x57]]
    %v774 = vstv %s773
    %v775 = vmul.f32 %v774, %v589
    %v776 = vmul.f32 %v774, %v590
    %v777 = vadd.f32 %v771, %v775
    %v778 = vadd.f32 %v772, %v776
    %s779 = sld [smem:[#allocation7 + $0x58]]
    %v780 = vstv %s779
    %v781 = vmul.f32 %v780, %v591
    %v782 = vmul.f32 %v780, %v592
    %v783 = vadd.f32 %v777, %v781
    %v784 = vadd.f32 %v778, %v782
    %s785 = sld [smem:[#allocation7 + $0x59]]
    %v786 = vstv %s785
    %v787 = vmul.f32 %v786, %v597
    %v788 = vmul.f32 %v786, %v598
    %v789 = vadd.f32 %v783, %v787
    %v790 = vadd.f32 %v784, %v788
    %s791 = sld [smem:[#allocation7 + $0x75]]
    %v792 = vstv %s791
    %v793 = vmul.f32 %v792, %v571
    %v794 = vmul.f32 %v792, %v572
    %v795 = vadd.f32 %v506, %v793
    %v796 = vadd.f32 %v507, %v794
    %s797 = sld [smem:[#allocation7 + $0x76]]
    %v798 = vstv %s797
    %v799 = vmul.f32 %v798, %v573
    %v800 = vmul.f32 %v798, %v574
    %v801 = vadd.f32 %v795, %v799
    %v802 = vadd.f32 %v796, %v800
    %s803 = sld [smem:[#allocation7 + $0x77]]
    %v804 = vstv %s803
    %v805 = vmul.f32 %v804, %v579
    %v806 = vmul.f32 %v804, %v580
    %v807 = vadd.f32 %v801, %v805
    %v808 = vadd.f32 %v802, %v806
    %s809 = sld [smem:[#allocation7 + $0x78]]
    %v810 = vstv %s809
    %v811 = vmul.f32 %v810, %v581
    %v812 = vmul.f32 %v810, %v582
    %v813 = vadd.f32 %v807, %v811
    %v814 = vadd.f32 %v808, %v812
    %s815 = sld [smem:[#allocation7 + $0x79]]
    %v816 = vstv %s815
    %v817 = vmul.f32 %v816, %v141
    %v820 = vunpack.c.l.s4 1983009808
    %v821 = vunpack.c.0.s8 %v820
    %v822 = vlaneseq
    %v823 = vshrl.u32 %v822, 7
    %v824 = vsub.s32 %v821, %v823
    %v825 = vrot.slane %v817, %v824
    %v826 = vcombine.high %v825, %v825
    %v829 = vadd.f32 %v813, %v825
    %v830 = vadd.f32 %v814, %v826
    %s831 = sld [smem:[#allocation7 + $0x7a]]
    %v832 = vstv %s831
    %v833 = vmul.f32 %v832, %v583
    %v834 = vmul.f32 %v832, %v584
    %v835 = vadd.f32 %v829, %v833
    %v836 = vadd.f32 %v830, %v834
    %s837 = sld [smem:[#allocation7 + $0x7b]]
    %v838 = vstv %s837
    %v839 = vmul.f32 %v838, %v589
    %v840 = vmul.f32 %v838, %v590
    %v841 = vadd.f32 %v835, %v839
    %v842 = vadd.f32 %v836, %v840
    %s843 = sld [smem:[#allocation7 + $0x7c]]
    %v844 = vstv %s843
    %v845 = vmul.f32 %v844, %v591
    %v846 = vmul.f32 %v844, %v592
    %v847 = vadd.f32 %v841, %v845
    %v848 = vadd.f32 %v842, %v846
    %s849 = sld [smem:[#allocation7 + $0x7d]]
    %v850 = vstv %s849
    %v851 = vmul.f32 %v850, %v597
    %v852 = vmul.f32 %v850, %v598
    %v853 = vadd.f32 %v847, %v851
    %v854 = vadd.f32 %v848, %v852
    %v857 = vunpack.c.l.s4 1983009808
    %v858 = vunpack.c.0.s8 %v857
    %v859 = vlaneseq
    %v860 = vshrl.u32 %v859, 7
    %v861 = vsub.s32 %v858, %v860
    %v862 = vrot.slane %v143, %v861
    %v863 = vcombine.high %v862, %v862
    %866 = vrot.lane.b32.xlu0 %v862, 17
    %v867 = vpop.permute.xlu0 %866
    %868 = vrot.lane.b32.xlu0 %v863, 17
    %v869 = vpop.permute.xlu0 %868
    %v870 = vsel %vm161, %v867, %v869
    %v871 = vsel %vm161, %v869, %v867
    %872 = vrot.lane.b32.xlu0 %v862, 16
    %v873 = vpop.permute.xlu0 %872
    %874 = vrot.lane.b32.xlu0 %v863, 16
    %v875 = vpop.permute.xlu0 %874
    %v876 = vsel %vm127, %v873, %v875
    %v877 = vsel %vm127, %v875, %v873
    %878 = vrot.lane.b32.xlu0 %v862, 15
    %v879 = vpop.permute.xlu0 %878
    %880 = vrot.lane.b32.xlu0 %v863, 15
    %v881 = vpop.permute.xlu0 %880
    %v882 = vsel %vm174, %v879, %v881
    %v883 = vsel %vm174, %v881, %v879
    %884 = vrot.lane.b32.xlu0 %v862, 1
    %v885 = vpop.permute.xlu0 %884
    %886 = vrot.lane.b32.xlu0 %v863, 1
    %v887 = vpop.permute.xlu0 %886
    %v888 = vsel %vm181, %v885, %v887
    %v889 = vsel %vm181, %v887, %v885
    %890 = vrot.lane.b32.xlu0 %v862, 127
    %v891 = vpop.permute.xlu0 %890
    %892 = vrot.lane.b32.xlu0 %v863, 127
    %v893 = vpop.permute.xlu0 %892
    %v894 = vsel %vm188, %v891, %v893
    %v895 = vsel %vm188, %v893, %v891
    %896 = vrot.lane.b32.xlu0 %v862, 113
    %v897 = vpop.permute.xlu0 %896
    %898 = vrot.lane.b32.xlu0 %v863, 113
    %v899 = vpop.permute.xlu0 %898
    %v900 = vsel %vm195, %v897, %v899
    %v901 = vsel %vm195, %v899, %v897
    %902 = vrot.lane.b32.xlu0 %v862, 112
    %v903 = vpop.permute.xlu0 %902
    %904 = vrot.lane.b32.xlu0 %v863, 112
    %v905 = vpop.permute.xlu0 %904
    %v906 = vsel %vm202, %v903, %v905
    %v907 = vsel %vm202, %v905, %v903
    %908 = vrot.lane.b32.xlu0 %v862, 111
    %v909 = vpop.permute.xlu0 %908
    %910 = vrot.lane.b32.xlu0 %v863, 111
    %v911 = vpop.permute.xlu0 %910
    %v912 = vsel %vm209, %v909, %v911
    %v913 = vsel %vm209, %v911, %v909
    %v914 = vsel %vm119, %v883, %v871
    %v915 = vsel %vm120, %v882, %v870
    %v916 = vsel %vm131, %v900, %v914
    %v917 = vsel %vm132, %v901, %v915
    %v918 = vsel %vm216, %v912, %v916
    %v919 = vsel %vm217, %v913, %v917
    %v920 = vsel %vm131, %v906, %v877
    %v921 = vsel %vm132, %v907, %v876
    %v922 = vsel %vm125, %v871, %v883
    %v923 = vsel %vm126, %v870, %v882
    %v924 = vsel %vm131, %v912, %v922
    %v925 = vsel %vm132, %v913, %v923
    %v926 = vsel %vm226, %v900, %v924
    %v927 = vsel %vm227, %v901, %v925
    %v928 = vsel %vm119, %v894, %v889
    %v929 = vsel %vm120, %v895, %v888
    %v930 = vsel %vm125, %v889, %v894
    %v931 = vsel %vm126, %v888, %v895
    %v932 = vsel %vm119, %v912, %v900
    %v933 = vsel %vm120, %v913, %v901
    %v934 = vsel %vm137, %v871, %v932
    %v935 = vsel %vm138, %v870, %v933
    %v936 = vsel %vm238, %v883, %v934
    %v937 = vsel %vm239, %v882, %v935
    %v938 = vsel %vm137, %v877, %v906
    %v939 = vsel %vm138, %v876, %v907
    %v940 = vsel %vm125, %v900, %v912
    %v941 = vsel %vm126, %v901, %v913
    %v942 = vsel %vm137, %v883, %v940
    %v943 = vsel %vm138, %v882, %v941
    %v944 = vsel %vm248, %v871, %v942
    %v945 = vsel %vm249, %v870, %v943
    %s946 = sld [smem:[#allocation7 + $0x12]]
    %v947 = vstv %s946
    %v948 = vmul.f32 %v947, %v918
    %v949 = vmul.f32 %v947, %v919
    %v950 = vadd.f32 %v661, %v948
    %v951 = vadd.f32 %v662, %v949
    %s952 = sld [smem:[#allocation7 + $0x13]]
    %v953 = vstv %s952
    %v954 = vmul.f32 %v953, %v920
    %v955 = vmul.f32 %v953, %v921
    %v956 = vadd.f32 %v950, %v954
    %v957 = vadd.f32 %v951, %v955
    %s958 = sld [smem:[#allocation7 + $0x14]]
    %v959 = vstv %s958
    %v960 = vmul.f32 %v959, %v926
    %v961 = vmul.f32 %v959, %v927
    %v962 = vadd.f32 %v956, %v960
    %v963 = vadd.f32 %v957, %v961
    %s964 = sld [smem:[#allocation7 + $0x15]]
    %v965 = vstv %s964
    %v966 = vmul.f32 %v965, %v928
    %v967 = vmul.f32 %v965, %v929
    %v968 = vadd.f32 %v962, %v966
    %v969 = vadd.f32 %v963, %v967
    %s970 = sld [smem:[#allocation7 + $0x16]]
    %v971 = vstv %s970
    %v972 = vmul.f32 %v971, %v143
    %v975 = vunpack.c.l.s4 1983009808
    %v976 = vunpack.c.0.s8 %v975
    %v977 = vlaneseq
    %v978 = vshrl.u32 %v977, 7
    %v979 = vsub.s32 %v976, %v978
    %v980 = vrot.slane %v972, %v979
    %v981 = vcombine.high %v980, %v980
    %v984 = vadd.f32 %v968, %v980
    %v985 = vadd.f32 %v969, %v981
    %s986 = sld [smem:[#allocation7 + $0x17]]
    %v987 = vstv %s986
    %v988 = vmul.f32 %v987, %v930
    %v989 = vmul.f32 %v987, %v931
    %v990 = vadd.f32 %v984, %v988
    %v991 = vadd.f32 %v985, %v989
    %s992 = sld [smem:[#allocation7 + $0x18]]
    %v993 = vstv %s992
    %v994 = vmul.f32 %v993, %v936
    %v995 = vmul.f32 %v993, %v937
    %v996 = vadd.f32 %v990, %v994
    %v997 = vadd.f32 %v991, %v995
    %s998 = sld [smem:[#allocation7 + $0x19]]
    %v999 = vstv %s998
    %v1000 = vmul.f32 %v999, %v938
    %v1001 = vmul.f32 %v999, %v939
    %v1002 = vadd.f32 %v996, %v1000
    %v1003 = vadd.f32 %v997, %v1001
    %s1004 = sld [smem:[#allocation7 + $0x1a]]
    %v1005 = vstv %s1004
    %v1006 = vmul.f32 %v1005, %v944
    %v1007 = vmul.f32 %v1005, %v945
    %v1008 = vadd.f32 %v1002, %v1006
    %v1009 = vadd.f32 %v1003, %v1007
    %s1010 = sld [smem:[#allocation7 + $0x36]]
    %v1011 = vstv %s1010
    %v1012 = vmul.f32 %v1011, %v918
    %v1013 = vmul.f32 %v1011, %v919
    %v1014 = vadd.f32 %v725, %v1012
    %v1015 = vadd.f32 %v726, %v1013
    %s1016 = sld [smem:[#allocation7 + $0x37]]
    %v1017 = vstv %s1016
    %v1018 = vmul.f32 %v1017, %v920
    %v1019 = vmul.f32 %v1017, %v921
    %v1020 = vadd.f32 %v1014, %v1018
    %v1021 = vadd.f32 %v1015, %v1019
    %s1022 = sld [smem:[#allocation7 + $0x38]]
    %v1023 = vstv %s1022
    %v1024 = vmul.f32 %v1023, %v926
    %v1025 = vmul.f32 %v1023, %v927
    %v1026 = vadd.f32 %v1020, %v1024
    %v1027 = vadd.f32 %v1021, %v1025
    %s1028 = sld [smem:[#allocation7 + $0x39]]
    %v1029 = vstv %s1028
    %v1030 = vmul.f32 %v1029, %v928
    %v1031 = vmul.f32 %v1029, %v929
    %v1032 = vadd.f32 %v1026, %v1030
    %v1033 = vadd.f32 %v1027, %v1031
    %s1034 = sld [smem:[#allocation7 + $0x3a]]
    %v1035 = vstv %s1034
    %v1036 = vmul.f32 %v1035, %v143
    %v1039 = vunpack.c.l.s4 1983009808
    %v1040 = vunpack.c.0.s8 %v1039
    %v1041 = vlaneseq
    %v1042 = vshrl.u32 %v1041, 7
    %v1043 = vsub.s32 %v1040, %v1042
    %v1044 = vrot.slane %v1036, %v1043
    %v1045 = vcombine.high %v1044, %v1044
    %v1048 = vadd.f32 %v1032, %v1044
    %v1049 = vadd.f32 %v1033, %v1045
    %s1050 = sld [smem:[#allocation7 + $0x3b]]
    %v1051 = vstv %s1050
    %v1052 = vmul.f32 %v1051, %v930
    %v1053 = vmul.f32 %v1051, %v931
    %v1054 = vadd.f32 %v1048, %v1052
    %v1055 = vadd.f32 %v1049, %v1053
    %s1056 = sld [smem:[#allocation7 + $0x3c]]
    %v1057 = vstv %s1056
    %v1058 = vmul.f32 %v1057, %v936
    %v1059 = vmul.f32 %v1057, %v937
    %v1060 = vadd.f32 %v1054, %v1058
    %v1061 = vadd.f32 %v1055, %v1059
    %s1062 = sld [smem:[#allocation7 + $0x3d]]
    %v1063 = vstv %s1062
    %v1064 = vmul.f32 %v1063, %v938
    %v1065 = vmul.f32 %v1063, %v939
    %v1066 = vadd.f32 %v1060, %v1064
    %v1067 = vadd.f32 %v1061, %v1065
    %s1068 = sld [smem:[#allocation7 + $0x3e]]
    %v1069 = vstv %s1068
    %v1070 = vmul.f32 %v1069, %v944
    %v1071 = vmul.f32 %v1069, %v945
    %v1072 = vadd.f32 %v1066, %v1070
    %v1073 = vadd.f32 %v1067, %v1071
    %s1074 = sld [smem:[#allocation7 + $0x5a]]
    %v1075 = vstv %s1074
    %v1076 = vmul.f32 %v1075, %v918
    %v1077 = vmul.f32 %v1075, %v919
    %v1078 = vadd.f32 %v789, %v1076
    %v1079 = vadd.f32 %v790, %v1077
    %s1080 = sld [smem:[#allocation7 + $0x5b]]
    %v1081 = vstv %s1080
    %v1082 = vmul.f32 %v1081, %v920
    %v1083 = vmul.f32 %v1081, %v921
    %v1084 = vadd.f32 %v1078, %v1082
    %v1085 = vadd.f32 %v1079, %v1083
    %s1086 = sld [smem:[#allocation7 + $0x5c]]
    %v1087 = vstv %s1086
    %v1088 = vmul.f32 %v1087, %v926
    %v1089 = vmul.f32 %v1087, %v927
    %v1090 = vadd.f32 %v1084, %v1088
    %v1091 = vadd.f32 %v1085, %v1089
    %s1092 = sld [smem:[#allocation7 + $0x5d]]
    %v1093 = vstv %s1092
    %v1094 = vmul.f32 %v1093, %v928
    %v1095 = vmul.f32 %v1093, %v929
    %v1096 = vadd.f32 %v1090, %v1094
    %v1097 = vadd.f32 %v1091, %v1095
    %s1098 = sld [smem:[#allocation7 + $0x5e]]
    %v1099 = vstv %s1098
    %v1100 = vmul.f32 %v1099, %v143
    %v1103 = vunpack.c.l.s4 1983009808
    %v1104 = vunpack.c.0.s8 %v1103
    %v1105 = vlaneseq
    %v1106 = vshrl.u32 %v1105, 7
    %v1107 = vsub.s32 %v1104, %v1106
    %v1108 = vrot.slane %v1100, %v1107
    %v1109 = vcombine.high %v1108, %v1108
    %v1112 = vadd.f32 %v1096, %v1108
    %v1113 = vadd.f32 %v1097, %v1109
    %s1114 = sld [smem:[#allocation7 + $0x5f]]
    %v1115 = vstv %s1114
    %v1116 = vmul.f32 %v1115, %v930
    %v1117 = vmul.f32 %v1115, %v931
    %v1118 = vadd.f32 %v1112, %v1116
    %v1119 = vadd.f32 %v1113, %v1117
    %s1120 = sld [smem:[#allocation7 + $0x60]]
    %v1121 = vstv %s1120
    %v1122 = vmul.f32 %v1121, %v936
    %v1123 = vmul.f32 %v1121, %v937
    %v1124 = vadd.f32 %v1118, %v1122
    %v1125 = vadd.f32 %v1119, %v1123
    %s1126 = sld [smem:[#allocation7 + $0x61]]
    %v1127 = vstv %s1126
    %v1128 = vmul.f32 %v1127, %v938
    %v1129 = vmul.f32 %v1127, %v939
    %v1130 = vadd.f32 %v1124, %v1128
    %v1131 = vadd.f32 %v1125, %v1129
    %s1132 = sld [smem:[#allocation7 + $0x62]]
    %v1133 = vstv %s1132
    %v1134 = vmul.f32 %v1133, %v944
    %v1135 = vmul.f32 %v1133, %v945
    %v1136 = vadd.f32 %v1130, %v1134
    %v1137 = vadd.f32 %v1131, %v1135
    %s1138 = sld [smem:[#allocation7 + $0x7e]]
    %v1139 = vstv %s1138
    %v1140 = vmul.f32 %v1139, %v918
    %v1141 = vmul.f32 %v1139, %v919
    %v1142 = vadd.f32 %v853, %v1140
    %v1143 = vadd.f32 %v854, %v1141
    %s1144 = sld [smem:[#allocation7 + $0x7f]]
    %v1145 = vstv %s1144
    %v1146 = vmul.f32 %v1145, %v920
    %v1147 = vmul.f32 %v1145, %v921
    %v1148 = vadd.f32 %v1142, %v1146
    %v1149 = vadd.f32 %v1143, %v1147
    %s1150 = sld [smem:[#allocation7 + $0x80]]
    %v1151 = vstv %s1150
    %v1152 = vmul.f32 %v1151, %v926
    %v1153 = vmul.f32 %v1151, %v927
    %v1154 = vadd.f32 %v1148, %v1152
    %v1155 = vadd.f32 %v1149, %v1153
    %s1156 = sld [smem:[#allocation7 + $0x81]]
    %v1157 = vstv %s1156
    %v1158 = vmul.f32 %v1157, %v928
    %v1159 = vmul.f32 %v1157, %v929
    %v1160 = vadd.f32 %v1154, %v1158
    %v1161 = vadd.f32 %v1155, %v1159
    %s1162 = sld [smem:[#allocation7 + $0x82]]
    %v1163 = vstv %s1162
    %v1164 = vmul.f32 %v1163, %v143
    %v1167 = vunpack.c.l.s4 1983009808
    %v1168 = vunpack.c.0.s8 %v1167
    %v1169 = vlaneseq
    %v1170 = vshrl.u32 %v1169, 7
    %v1171 = vsub.s32 %v1168, %v1170
    %v1172 = vrot.slane %v1164, %v1171
    %v1173 = vcombine.high %v1172, %v1172
    %v1176 = vadd.f32 %v1160, %v1172
    %v1177 = vadd.f32 %v1161, %v1173
    %s1178 = sld [smem:[#allocation7 + $0x83]]
    %v1179 = vstv %s1178
    %v1180 = vmul.f32 %v1179, %v930
    %v1181 = vmul.f32 %v1179, %v931
    %v1182 = vadd.f32 %v1176, %v1180
    %v1183 = vadd.f32 %v1177, %v1181
    %s1184 = sld [smem:[#allocation7 + $0x84]]
    %v1185 = vstv %s1184
    %v1186 = vmul.f32 %v1185, %v936
    %v1187 = vmul.f32 %v1185, %v937
    %v1188 = vadd.f32 %v1182, %v1186
    %v1189 = vadd.f32 %v1183, %v1187
    %s1190 = sld [smem:[#allocation7 + $0x85]]
    %v1191 = vstv %s1190
    %v1192 = vmul.f32 %v1191, %v938
    %v1193 = vmul.f32 %v1191, %v939
    %v1194 = vadd.f32 %v1188, %v1192
    %v1195 = vadd.f32 %v1189, %v1193
    %s1196 = sld [smem:[#allocation7 + $0x86]]
    %v1197 = vstv %s1196
    %v1198 = vmul.f32 %v1197, %v944
    %v1199 = vmul.f32 %v1197, %v945
    %v1200 = vadd.f32 %v1194, %v1198
    %v1201 = vadd.f32 %v1195, %v1199
    %v1204 = vunpack.c.l.s4 1983009808
    %v1205 = vunpack.c.0.s8 %v1204
    %v1206 = vlaneseq
    %v1207 = vshrl.u32 %v1206, 7
    %v1208 = vsub.s32 %v1205, %v1207
    %v1209 = vrot.slane %v145, %v1208
    %v1210 = vcombine.high %v1209, %v1209
    %1213 = vrot.lane.b32.xlu0 %v1209, 17
    %v1214 = vpop.permute.xlu0 %1213
    %1215 = vrot.lane.b32.xlu0 %v1210, 17
    %v1216 = vpop.permute.xlu0 %1215
    %v1217 = vsel %vm161, %v1214, %v1216
    %v1218 = vsel %vm161, %v1216, %v1214
    %1219 = vrot.lane.b32.xlu0 %v1209, 16
    %v1220 = vpop.permute.xlu0 %1219
    %1221 = vrot.lane.b32.xlu0 %v1210, 16
    %v1222 = vpop.permute.xlu0 %1221
    %v1223 = vsel %vm127, %v1220, %v1222
    %v1224 = vsel %vm127, %v1222, %v1220
    %1225 = vrot.lane.b32.xlu0 %v1209, 15
    %v1226 = vpop.permute.xlu0 %1225
    %1227 = vrot.lane.b32.xlu0 %v1210, 15
    %v1228 = vpop.permute.xlu0 %1227
    %v1229 = vsel %vm174, %v1226, %v1228
    %v1230 = vsel %vm174, %v1228, %v1226
    %1231 = vrot.lane.b32.xlu0 %v1209, 1
    %v1232 = vpop.permute.xlu0 %1231
    %1233 = vrot.lane.b32.xlu0 %v1210, 1
    %v1234 = vpop.permute.xlu0 %1233
    %v1235 = vsel %vm181, %v1232, %v1234
    %v1236 = vsel %vm181, %v1234, %v1232
    %1237 = vrot.lane.b32.xlu0 %v1209, 127
    %v1238 = vpop.permute.xlu0 %1237
    %1239 = vrot.lane.b32.xlu0 %v1210, 127
    %v1240 = vpop.permute.xlu0 %1239
    %v1241 = vsel %vm188, %v1238, %v1240
    %v1242 = vsel %vm188, %v1240, %v1238
    %1243 = vrot.lane.b32.xlu0 %v1209, 113
    %v1244 = vpop.permute.xlu0 %1243
    %1245 = vrot.lane.b32.xlu0 %v1210, 113
    %v1246 = vpop.permute.xlu0 %1245
    %v1247 = vsel %vm195, %v1244, %v1246
    %v1248 = vsel %vm195, %v1246, %v1244
    %1249 = vrot.lane.b32.xlu0 %v1209, 112
    %v1250 = vpop.permute.xlu0 %1249
    %1251 = vrot.lane.b32.xlu0 %v1210, 112
    %v1252 = vpop.permute.xlu0 %1251
    %v1253 = vsel %vm202, %v1250, %v1252
    %v1254 = vsel %vm202, %v1252, %v1250
    %1255 = vrot.lane.b32.xlu0 %v1209, 111
    %v1256 = vpop.permute.xlu0 %1255
    %1257 = vrot.lane.b32.xlu0 %v1210, 111
    %v1258 = vpop.permute.xlu0 %1257
    %v1259 = vsel %vm209, %v1256, %v1258
    %v1260 = vsel %vm209, %v1258, %v1256
    %v1261 = vsel %vm119, %v1230, %v1218
    %v1262 = vsel %vm120, %v1229, %v1217
    %v1263 = vsel %vm131, %v1247, %v1261
    %v1264 = vsel %vm132, %v1248, %v1262
    %v1265 = vsel %vm216, %v1259, %v1263
    %v1266 = vsel %vm217, %v1260, %v1264
    %v1267 = vsel %vm131, %v1253, %v1224
    %v1268 = vsel %vm132, %v1254, %v1223
    %v1269 = vsel %vm125, %v1218, %v1230
    %v1270 = vsel %vm126, %v1217, %v1229
    %v1271 = vsel %vm131, %v1259, %v1269
    %v1272 = vsel %vm132, %v1260, %v1270
    %v1273 = vsel %vm226, %v1247, %v1271
    %v1274 = vsel %vm227, %v1248, %v1272
    %v1275 = vsel %vm119, %v1241, %v1236
    %v1276 = vsel %vm120, %v1242, %v1235
    %v1277 = vsel %vm125, %v1236, %v1241
    %v1278 = vsel %vm126, %v1235, %v1242
    %v1279 = vsel %vm119, %v1259, %v1247
    %v1280 = vsel %vm120, %v1260, %v1248
    %v1281 = vsel %vm137, %v1218, %v1279
    %v1282 = vsel %vm138, %v1217, %v1280
    %v1283 = vsel %vm238, %v1230, %v1281
    %v1284 = vsel %vm239, %v1229, %v1282
    %v1285 = vsel %vm137, %v1224, %v1253
    %v1286 = vsel %vm138, %v1223, %v1254
    %v1287 = vsel %vm125, %v1247, %v1259
    %v1288 = vsel %vm126, %v1248, %v1260
    %v1289 = vsel %vm137, %v1230, %v1287
    %v1290 = vsel %vm138, %v1229, %v1288
    %v1291 = vsel %vm248, %v1218, %v1289
    %v1292 = vsel %vm249, %v1217, %v1290
    %s1293 = sld [smem:[#allocation7 + $0x1b]]
    %v1294 = vstv %s1293
    %v1295 = vmul.f32 %v1294, %v1265
    %v1296 = vmul.f32 %v1294, %v1266
    %v1297 = vadd.f32 %v1008, %v1295
    %v1298 = vadd.f32 %v1009, %v1296
    %s1299 = sld [smem:[#allocation7 + $0x1c]]
    %v1300 = vstv %s1299
    %v1301 = vmul.f32 %v1300, %v1267
    %v1302 = vmul.f32 %v1300, %v1268
    %v1303 = vadd.f32 %v1297, %v1301
    %v1304 = vadd.f32 %v1298, %v1302
    %s1305 = sld [smem:[#allocation7 + $0x1d]]
    %v1306 = vstv %s1305
    %v1307 = vmul.f32 %v1306, %v1273
    %v1308 = vmul.f32 %v1306, %v1274
    %v1309 = vadd.f32 %v1303, %v1307
    %v1310 = vadd.f32 %v1304, %v1308
    %s1311 = sld [smem:[#allocation7 + $0x1e]]
    %v1312 = vstv %s1311
    %v1313 = vmul.f32 %v1312, %v1275
    %v1314 = vmul.f32 %v1312, %v1276
    %v1315 = vadd.f32 %v1309, %v1313
    %v1316 = vadd.f32 %v1310, %v1314
    %s1317 = sld [smem:[#allocation7 + $0x1f]]
    %v1318 = vstv %s1317
    %v1319 = vmul.f32 %v1318, %v145
    %v1322 = vunpack.c.l.s4 1983009808
    %v1323 = vunpack.c.0.s8 %v1322
    %v1324 = vlaneseq
    %v1325 = vshrl.u32 %v1324, 7
    %v1326 = vsub.s32 %v1323, %v1325
    %v1327 = vrot.slane %v1319, %v1326
    %v1328 = vcombine.high %v1327, %v1327
    %v1331 = vadd.f32 %v1315, %v1327
    %v1332 = vadd.f32 %v1316, %v1328
    %s1333 = sld [smem:[#allocation7 + $0x20]]
    %v1334 = vstv %s1333
    %v1335 = vmul.f32 %v1334, %v1277
    %v1336 = vmul.f32 %v1334, %v1278
    %v1337 = vadd.f32 %v1331, %v1335
    %v1338 = vadd.f32 %v1332, %v1336
    %s1339 = sld [smem:[#allocation7 + $0x21]]
    %v1340 = vstv %s1339
    %v1341 = vmul.f32 %v1340, %v1283
    %v1342 = vmul.f32 %v1340, %v1284
    %v1343 = vadd.f32 %v1337, %v1341
    %v1344 = vadd.f32 %v1338, %v1342
    %s1345 = sld [smem:[#allocation7 + $0x22]]
    %v1346 = vstv %s1345
    %v1347 = vmul.f32 %v1346, %v1285
    %v1348 = vmul.f32 %v1346, %v1286
    %v1349 = vadd.f32 %v1343, %v1347
    %v1350 = vadd.f32 %v1344, %v1348
    %s1351 = sld [smem:[#allocation7 + $0x23]]
    %v1352 = vstv %s1351
    %v1353 = vmul.f32 %v1352, %v1291
    %v1354 = vmul.f32 %v1352, %v1292
    %v1355 = vadd.f32 %v1349, %v1353
    %v1356 = vadd.f32 %v1350, %v1354
    %s1357 = sld [smem:[#allocation7 + $0x3f]]
    %v1358 = vstv %s1357
    %v1359 = vmul.f32 %v1358, %v1265
    %v1360 = vmul.f32 %v1358, %v1266
    %v1361 = vadd.f32 %v1072, %v1359
    %v1362 = vadd.f32 %v1073, %v1360
    %s1363 = sld [smem:[#allocation7 + $0x40]]
    %v1364 = vstv %s1363
    %v1365 = vmul.f32 %v1364, %v1267
    %v1366 = vmul.f32 %v1364, %v1268
    %v1367 = vadd.f32 %v1361, %v1365
    %v1368 = vadd.f32 %v1362, %v1366
    %s1369 = sld [smem:[#allocation7 + $0x41]]
    %v1370 = vstv %s1369
    %v1371 = vmul.f32 %v1370, %v1273
    %v1372 = vmul.f32 %v1370, %v1274
    %v1373 = vadd.f32 %v1367, %v1371
    %v1374 = vadd.f32 %v1368, %v1372
    %s1375 = sld [smem:[#allocation7 + $0x42]]
    %v1376 = vstv %s1375
    %v1377 = vmul.f32 %v1376, %v1275
    %v1378 = vmul.f32 %v1376, %v1276
    %v1379 = vadd.f32 %v1373, %v1377
    %v1380 = vadd.f32 %v1374, %v1378
    %s1381 = sld [smem:[#allocation7 + $0x43]]
    %v1382 = vstv %s1381
    %v1383 = vmul.f32 %v1382, %v145
    %v1386 = vunpack.c.l.s4 1983009808
    %v1387 = vunpack.c.0.s8 %v1386
    %v1388 = vlaneseq
    %v1389 = vshrl.u32 %v1388, 7
    %v1390 = vsub.s32 %v1387, %v1389
    %v1391 = vrot.slane %v1383, %v1390
    %v1392 = vcombine.high %v1391, %v1391
    %v1395 = vadd.f32 %v1379, %v1391
    %v1396 = vadd.f32 %v1380, %v1392
    %s1397 = sld [smem:[#allocation7 + $0x44]]
    %v1398 = vstv %s1397
    %v1399 = vmul.f32 %v1398, %v1277
    %v1400 = vmul.f32 %v1398, %v1278
    %v1401 = vadd.f32 %v1395, %v1399
    %v1402 = vadd.f32 %v1396, %v1400
    %s1403 = sld [smem:[#allocation7 + $0x45]]
    %v1404 = vstv %s1403
    %v1405 = vmul.f32 %v1404, %v1283
    %v1406 = vmul.f32 %v1404, %v1284
    %v1407 = vadd.f32 %v1401, %v1405
    %v1408 = vadd.f32 %v1402, %v1406
    %s1409 = sld [smem:[#allocation7 + $0x46]]
    %v1410 = vstv %s1409
    %v1411 = vmul.f32 %v1410, %v1285
    %v1412 = vmul.f32 %v1410, %v1286
    %v1413 = vadd.f32 %v1407, %v1411
    %v1414 = vadd.f32 %v1408, %v1412
    %s1415 = sld [smem:[#allocation7 + $0x47]]
    %v1416 = vstv %s1415
    %v1417 = vmul.f32 %v1416, %v1291
    %v1418 = vmul.f32 %v1416, %v1292
    %v1419 = vadd.f32 %v1413, %v1417
    %v1420 = vadd.f32 %v1414, %v1418
    %s1421 = sld [smem:[#allocation7 + $0x63]]
    %v1422 = vstv %s1421
    %v1423 = vmul.f32 %v1422, %v1265
    %v1424 = vmul.f32 %v1422, %v1266
    %v1425 = vadd.f32 %v1136, %v1423
    %v1426 = vadd.f32 %v1137, %v1424
    %s1427 = sld [smem:[#allocation7 + $0x64]]
    %v1428 = vstv %s1427
    %v1429 = vmul.f32 %v1428, %v1267
    %v1430 = vmul.f32 %v1428, %v1268
    %v1431 = vadd.f32 %v1425, %v1429
    %v1432 = vadd.f32 %v1426, %v1430
    %s1433 = sld [smem:[#allocation7 + $0x65]]
    %v1434 = vstv %s1433
    %v1435 = vmul.f32 %v1434, %v1273
    %v1436 = vmul.f32 %v1434, %v1274
    %v1437 = vadd.f32 %v1431, %v1435
    %v1438 = vadd.f32 %v1432, %v1436
    %s1439 = sld [smem:[#allocation7 + $0x66]]
    %v1440 = vstv %s1439
    %v1441 = vmul.f32 %v1440, %v1275
    %v1442 = vmul.f32 %v1440, %v1276
    %v1443 = vadd.f32 %v1437, %v1441
    %v1444 = vadd.f32 %v1438, %v1442
    %s1445 = sld [smem:[#allocation7 + $0x67]]
    %v1446 = vstv %s1445
    %v1447 = vmul.f32 %v1446, %v145
    %v1450 = vunpack.c.l.s4 1983009808
    %v1451 = vunpack.c.0.s8 %v1450
    %v1452 = vlaneseq
    %v1453 = vshrl.u32 %v1452, 7
    %v1454 = vsub.s32 %v1451, %v1453
    %v1455 = vrot.slane %v1447, %v1454
    %v1456 = vcombine.high %v1455, %v1455
    %v1459 = vadd.f32 %v1443, %v1455
    %v1460 = vadd.f32 %v1444, %v1456
    %s1461 = sld [smem:[#allocation7 + $0x68]]
    %v1462 = vstv %s1461
    %v1463 = vmul.f32 %v1462, %v1277
    %v1464 = vmul.f32 %v1462, %v1278
    %v1465 = vadd.f32 %v1459, %v1463
    %v1466 = vadd.f32 %v1460, %v1464
    %s1467 = sld [smem:[#allocation7 + $0x69]]
    %v1468 = vstv %s1467
    %v1469 = vmul.f32 %v1468, %v1283
    %v1470 = vmul.f32 %v1468, %v1284
    %v1471 = vadd.f32 %v1465, %v1469
    %v1472 = vadd.f32 %v1466, %v1470
    %s1473 = sld [smem:[#allocation7 + $0x6a]]
    %v1474 = vstv %s1473
    %v1475 = vmul.f32 %v1474, %v1285
    %v1476 = vmul.f32 %v1474, %v1286
    %v1477 = vadd.f32 %v1471, %v1475
    %v1478 = vadd.f32 %v1472, %v1476
    %s1479 = sld [smem:[#allocation7 + $0x6b]]
    %v1480 = vstv %s1479
    %v1481 = vmul.f32 %v1480, %v1291
    %v1482 = vmul.f32 %v1480, %v1292
    %v1483 = vadd.f32 %v1477, %v1481
    %v1484 = vadd.f32 %v1478, %v1482
    %s1485 = sld [smem:[#allocation7 + $0x87]]
    %v1486 = vstv %s1485
    %v1487 = vmul.f32 %v1486, %v1265
    %v1488 = vmul.f32 %v1486, %v1266
    %v1489 = vadd.f32 %v1200, %v1487
    %v1490 = vadd.f32 %v1201, %v1488
    %s1491 = sld [smem:[#allocation7 + $0x88]]
    %v1492 = vstv %s1491
    %v1493 = vmul.f32 %v1492, %v1267
    %v1494 = vmul.f32 %v1492, %v1268
    %v1495 = vadd.f32 %v1489, %v1493
    %v1496 = vadd.f32 %v1490, %v1494
    %s1497 = sld [smem:[#allocation7 + $0x89]]
    %v1498 = vstv %s1497
    %v1499 = vmul.f32 %v1498, %v1273
    %v1500 = vmul.f32 %v1498, %v1274
    %v1501 = vadd.f32 %v1495, %v1499
    %v1502 = vadd.f32 %v1496, %v1500
    %s1503 = sld [smem:[#allocation7 + $0x8a]]
    %v1504 = vstv %s1503
    %v1505 = vmul.f32 %v1504, %v1275
    %v1506 = vmul.f32 %v1504, %v1276
    %v1507 = vadd.f32 %v1501, %v1505
    %v1508 = vadd.f32 %v1502, %v1506
    %s1509 = sld [smem:[#allocation7 + $0x8b]]
    %v1510 = vstv %s1509
    %v1511 = vmul.f32 %v1510, %v145
    %v1514 = vunpack.c.l.s4 1983009808
    %v1515 = vunpack.c.0.s8 %v1514
    %v1516 = vlaneseq
    %v1517 = vshrl.u32 %v1516, 7
    %v1518 = vsub.s32 %v1515, %v1517
    %v1519 = vrot.slane %v1511, %v1518
    %v1520 = vcombine.high %v1519, %v1519
    %v1523 = vadd.f32 %v1507, %v1519
    %v1524 = vadd.f32 %v1508, %v1520
    %s1525 = sld [smem:[#allocation7 + $0x8c]]
    %v1526 = vstv %s1525
    %v1527 = vmul.f32 %v1526, %v1277
    %v1528 = vmul.f32 %v1526, %v1278
    %v1529 = vadd.f32 %v1523, %v1527
    %v1530 = vadd.f32 %v1524, %v1528
    %s1531 = sld [smem:[#allocation7 + $0x8d]]
    %v1532 = vstv %s1531
    %v1533 = vmul.f32 %v1532, %v1283
    %v1534 = vmul.f32 %v1532, %v1284
    %v1535 = vadd.f32 %v1529, %v1533
    %v1536 = vadd.f32 %v1530, %v1534
    %s1537 = sld [smem:[#allocation7 + $0x8e]]
    %v1538 = vstv %s1537
    %v1539 = vmul.f32 %v1538, %v1285
    %v1540 = vmul.f32 %v1538, %v1286
    %v1541 = vadd.f32 %v1535, %v1539
    %v1542 = vadd.f32 %v1536, %v1540
    %s1543 = sld [smem:[#allocation7 + $0x8f]]
    %v1544 = vstv %s1543
    %v1545 = vmul.f32 %v1544, %v1291
    %v1546 = vmul.f32 %v1544, %v1292
    %v1547 = vadd.f32 %v1541, %v1545
    %v1548 = vadd.f32 %v1542, %v1546
    %vm1549 = vcmask 1041408
    %v1550 = vsel %vm1549, %v1355, 0.0
    %v1551 = vsel %vm1549, %v1356, 0.0
    %v1552 = vadd.f32 %v1550, %v1551
    %1553 = vadd.xlane.f32.xlu0 %v1552
    %v1554 = vpop.xlane.xlu0 %1553
    %v1555 = vrcp.pop 256.0
    %v1556 = vmul.f32 %v1554, %v1555
    %v1557 = vsub.f32 %v1355, %v1556
    %v1558 = vsub.f32 %v1356, %v1556
    %v1559 = vmul.f32 %v1557, %v1557
    %v1560 = vmul.f32 %v1558, %v1558
    %v1561 = vsel %vm1549, %v1559, 0.0
    %v1562 = vsel %vm1549, %v1560, 0.0
    %v1563 = vadd.f32 %v1561, %v1562
    %1564 = vadd.xlane.f32.xlu0 %v1563
    %v1565 = vpop.xlane.xlu0 %1564
    %v1566 = vmul.f32 %v1565, %v1555
    %s1567 = sld [smem:[#allocation8]]
    %v1568 = vadd.f32 %v1566, 1e-05
    %v1569 = vrsqrt.pop %v1568
    %v1570 = vstv %s1567
    %v1571 = vmul.f32 %v1570, %v1569
    %v1572 = vmul.f32 %v1557, %v1571
    %v1573 = vmul.f32 %v1558, %v1571
    %s1574 = sld [smem:[#allocation9]]
    %v1575 = vstv %s1574
    %v1576 = vadd.f32 %v1572, %v1575
    %v1577 = vadd.f32 %v1573, %v1575
    %v1578 = vmax.f32 %v1576, 0.0
    %v1579 = vmax.f32 %v1577, 0.0
    %v1580 = vsel %vm1549, %v1419, 0.0
    %v1581 = vsel %vm1549, %v1420, 0.0
    %v1582 = vadd.f32 %v1580, %v1581
    %1583 = vadd.xlane.f32.xlu0 %v1582
    %v1584 = vpop.xlane.xlu0 %1583
    %v1585 = vmul.f32 %v1584, %v1555
    %v1586 = vsub.f32 %v1419, %v1585
    %v1587 = vsub.f32 %v1420, %v1585
    %v1588 = vmul.f32 %v1586, %v1586
    %v1589 = vmul.f32 %v1587, %v1587
    %v1590 = vsel %vm1549, %v1588, 0.0
    %v1591 = vsel %vm1549, %v1589, 0.0
    %v1592 = vadd.f32 %v1590, %v1591
    %1593 = vadd.xlane.f32.xlu0 %v1592
    %v1594 = vpop.xlane.xlu0 %1593
    %v1595 = vmul.f32 %v1594, %v1555
    %s1596 = sld [smem:[#allocation8 + $0x1]]
    %v1597 = vadd.f32 %v1595, 1e-05
    %v1598 = vrsqrt.pop %v1597
    %v1599 = vstv %s1596
    %v1600 = vmul.f32 %v1599, %v1598
    %v1601 = vmul.f32 %v1586, %v1600
    %v1602 = vmul.f32 %v1587, %v1600
    %s1603 = sld [smem:[#allocation9 + $0x1]]
    %v1604 = vstv %s1603
    %v1605 = vadd.f32 %v1601, %v1604
    %v1606 = vadd.f32 %v1602, %v1604
    %v1607 = vmax.f32 %v1605, 0.0
    %v1608 = vmax.f32 %v1606, 0.0
    %v1609 = vsel %vm1549, %v1483, 0.0
    %v1610 = vsel %vm1549, %v1484, 0.0
    %v1611 = vadd.f32 %v1609, %v1610
    %1612 = vadd.xlane.f32.xlu0 %v1611
    %v1613 = vpop.xlane.xlu0 %1612
    %v1614 = vmul.f32 %v1613, %v1555
    %v1615 = vsub.f32 %v1483, %v1614
    %v1616 = vsub.f32 %v1484, %v1614
    %v1617 = vmul.f32 %v1615, %v1615
    %v1618 = vmul.f32 %v1616, %v1616
    %v1619 = vsel %vm1549, %v1617, 0.0
    %v1620 = vsel %vm1549, %v1618, 0.0
    %v1621 = vadd.f32 %v1619, %v1620
    %1622 = vadd.xlane.f32.xlu0 %v1621
    %v1623 = vpop.xlane.xlu0 %1622
    %v1624 = vmul.f32 %v1623, %v1555
    %s1625 = sld [smem:[#allocation8 + $0x2]]
    %v1626 = vadd.f32 %v1624, 1e-05
    %v1627 = vrsqrt.pop %v1626
    %v1628 = vstv %s1625
    %v1629 = vmul.f32 %v1628, %v1627
    %v1630 = vmul.f32 %v1615, %v1629
    %v1631 = vmul.f32 %v1616, %v1629
    %s1632 = sld [smem:[#allocation9 + $0x2]]
    %v1633 = vstv %s1632
    %v1634 = vadd.f32 %v1630, %v1633
    %v1635 = vadd.f32 %v1631, %v1633
    %v1636 = vmax.f32 %v1634, 0.0
    %v1637 = vmax.f32 %v1635, 0.0
    %v1638 = vsel %vm1549, %v1547, 0.0
    %v1639 = vsel %vm1549, %v1548, 0.0
    %v1640 = vadd.f32 %v1638, %v1639
    %1641 = vadd.xlane.f32.xlu0 %v1640
    %v1642 = vpop.xlane.xlu0 %1641
    %v1643 = vmul.f32 %v1642, %v1555
    %v1644 = vsub.f32 %v1547, %v1643
    %v1645 = vsub.f32 %v1548, %v1643
    %v1646 = vmul.f32 %v1644, %v1644
    %v1647 = vmul.f32 %v1645, %v1645
    %v1648 = vsel %vm1549, %v1646, 0.0
    %v1649 = vsel %vm1549, %v1647, 0.0
    %v1650 = vadd.f32 %v1648, %v1649
    %1651 = vadd.xlane.f32.xlu0 %v1650
    %v1652 = vpop.xlane.xlu0 %1651
    %v1653 = vmul.f32 %v1652, %v1555
    %s1654 = sld [smem:[#allocation8 + $0x3]]
    %v1655 = vadd.f32 %v1653, 1e-05
    %v1656 = vrsqrt.pop %v1655
    %v1657 = vstv %s1654
    %v1658 = vmul.f32 %v1657, %v1656
    %v1659 = vmul.f32 %v1644, %v1658
    %v1660 = vmul.f32 %v1645, %v1658
    %s1661 = sld [smem:[#allocation9 + $0x3]]
    %v1662 = vstv %s1661
    %v1663 = vadd.f32 %v1659, %v1662
    %v1664 = vadd.f32 %v1660, %v1662
    %v1665 = vmax.f32 %v1663, 0.0
    %v1666 = vmax.f32 %v1664, 0.0
    %1667 = vrot.lane.b32.xlu0 %v1578, 17
    %v1668 = vpop.permute.xlu0 %1667
    %1669 = vrot.lane.b32.xlu0 %v1579, 17
    %v1670 = vpop.permute.xlu0 %1669
    %v1671 = vsel %vm161, %v1668, %v1670
    %v1672 = vsel %vm161, %v1670, %v1668
    %1673 = vrot.lane.b32.xlu0 %v1578, 16
    %v1674 = vpop.permute.xlu0 %1673
    %1675 = vrot.lane.b32.xlu0 %v1579, 16
    %v1676 = vpop.permute.xlu0 %1675
    %v1677 = vsel %vm127, %v1674, %v1676
    %v1678 = vsel %vm127, %v1676, %v1674
    %1679 = vrot.lane.b32.xlu0 %v1578, 15
    %v1680 = vpop.permute.xlu0 %1679
    %1681 = vrot.lane.b32.xlu0 %v1579, 15
    %v1682 = vpop.permute.xlu0 %1681
    %v1683 = vsel %vm174, %v1680, %v1682
    %v1684 = vsel %vm174, %v1682, %v1680
    %1685 = vrot.lane.b32.xlu0 %v1578, 1
    %v1686 = vpop.permute.xlu0 %1685
    %1687 = vrot.lane.b32.xlu0 %v1579, 1
    %v1688 = vpop.permute.xlu0 %1687
    %v1689 = vsel %vm181, %v1686, %v1688
    %v1690 = vsel %vm181, %v1688, %v1686
    %1691 = vrot.lane.b32.xlu0 %v1578, 127
    %v1692 = vpop.permute.xlu0 %1691
    %1693 = vrot.lane.b32.xlu0 %v1579, 127
    %v1694 = vpop.permute.xlu0 %1693
    %v1695 = vsel %vm188, %v1692, %v1694
    %v1696 = vsel %vm188, %v1694, %v1692
    %1697 = vrot.lane.b32.xlu0 %v1578, 113
    %v1698 = vpop.permute.xlu0 %1697
    %1699 = vrot.lane.b32.xlu0 %v1579, 113
    %v1700 = vpop.permute.xlu0 %1699
    %v1701 = vsel %vm195, %v1698, %v1700
    %v1702 = vsel %vm195, %v1700, %v1698
    %1703 = vrot.lane.b32.xlu0 %v1578, 112
    %v1704 = vpop.permute.xlu0 %1703
    %1705 = vrot.lane.b32.xlu0 %v1579, 112
    %v1706 = vpop.permute.xlu0 %1705
    %v1707 = vsel %vm202, %v1704, %v1706
    %v1708 = vsel %vm202, %v1706, %v1704
    %1709 = vrot.lane.b32.xlu0 %v1578, 111
    %v1710 = vpop.permute.xlu0 %1709
    %1711 = vrot.lane.b32.xlu0 %v1579, 111
    %v1712 = vpop.permute.xlu0 %1711
    %v1713 = vsel %vm209, %v1710, %v1712
    %v1714 = vsel %vm209, %v1712, %v1710
    %v1715 = vsel %vm119, %v1684, %v1672
    %v1716 = vsel %vm120, %v1683, %v1671
    %v1717 = vsel %vm131, %v1701, %v1715
    %v1718 = vsel %vm132, %v1702, %v1716
    %v1719 = vsel %vm216, %v1713, %v1717
    %v1720 = vsel %vm217, %v1714, %v1718
    %v1721 = vsel %vm131, %v1707, %v1678
    %v1722 = vsel %vm132, %v1708, %v1677
    %v1723 = vsel %vm125, %v1672, %v1684
    %v1724 = vsel %vm126, %v1671, %v1683
    %v1725 = vsel %vm131, %v1713, %v1723
    %v1726 = vsel %vm132, %v1714, %v1724
    %v1727 = vsel %vm226, %v1701, %v1725
    %v1728 = vsel %vm227, %v1702, %v1726
    %v1729 = vsel %vm119, %v1695, %v1690
    %v1730 = vsel %vm120, %v1696, %v1689
    %v1731 = vsel %vm125, %v1690, %v1695
    %v1732 = vsel %vm126, %v1689, %v1696
    %v1733 = vsel %vm119, %v1713, %v1701
    %v1734 = vsel %vm120, %v1714, %v1702
    %v1735 = vsel %vm137, %v1672, %v1733
    %v1736 = vsel %vm138, %v1671, %v1734
    %v1737 = vsel %vm238, %v1684, %v1735
    %v1738 = vsel %vm239, %v1683, %v1736
    %v1739 = vsel %vm137, %v1678, %v1707
    %v1740 = vsel %vm138, %v1677, %v1708
    %v1741 = vsel %vm125, %v1701, %v1713
    %v1742 = vsel %vm126, %v1702, %v1714
    %v1743 = vsel %vm137, %v1684, %v1741
    %v1744 = vsel %vm138, %v1683, %v1742
    %v1745 = vsel %vm248, %v1672, %v1743
    %v1746 = vsel %vm249, %v1671, %v1744
    %s1747 = sld [smem:[#allocation11]]
    %v1748 = vstv %s1747
    %v1749 = vmul.f32 %v1748, %v1719
    %v1750 = vmul.f32 %v1748, %v1720
    %v1751 = vadd.f32 %v1749, 0.0
    %v1752 = vadd.f32 %v1750, 0.0
    %s1753 = sld [smem:[#allocation11 + $0x1]]
    %v1754 = vstv %s1753
    %v1755 = vmul.f32 %v1754, %v1721
    %v1756 = vmul.f32 %v1754, %v1722
    %v1757 = vadd.f32 %v1751, %v1755
    %v1758 = vadd.f32 %v1752, %v1756
    %s1759 = sld [smem:[#allocation11 + $0x2]]
    %v1760 = vstv %s1759
    %v1761 = vmul.f32 %v1760, %v1727
    %v1762 = vmul.f32 %v1760, %v1728
    %v1763 = vadd.f32 %v1757, %v1761
    %v1764 = vadd.f32 %v1758, %v1762
    %s1765 = sld [smem:[#allocation11 + $0x3]]
    %v1766 = vstv %s1765
    %v1767 = vmul.f32 %v1766, %v1729
    %v1768 = vmul.f32 %v1766, %v1730
    %v1769 = vadd.f32 %v1763, %v1767
    %v1770 = vadd.f32 %v1764, %v1768
    %s1771 = sld [smem:[#allocation11 + $0x4]]
    %v1772 = vstv %s1771
    %v1773 = vmul.f32 %v1772, %v1578
    %v1774 = vmul.f32 %v1772, %v1579
    %v1775 = vadd.f32 %v1769, %v1773
    %v1776 = vadd.f32 %v1770, %v1774
    %s1777 = sld [smem:[#allocation11 + $0x5]]
    %v1778 = vstv %s1777
    %v1779 = vmul.f32 %v1778, %v1731
    %v1780 = vmul.f32 %v1778, %v1732
    %v1781 = vadd.f32 %v1775, %v1779
    %v1782 = vadd.f32 %v1776, %v1780
    %s1783 = sld [smem:[#allocation11 + $0x6]]
    %v1784 = vstv %s1783
    %v1785 = vmul.f32 %v1784, %v1737
    %v1786 = vmul.f32 %v1784, %v1738
    %v1787 = vadd.f32 %v1781, %v1785
    %v1788 = vadd.f32 %v1782, %v1786
    %s1789 = sld [smem:[#allocation11 + $0x7]]
    %v1790 = vstv %s1789
    %v1791 = vmul.f32 %v1790, %v1739
    %v1792 = vmul.f32 %v1790, %v1740
    %v1793 = vadd.f32 %v1787, %v1791
    %v1794 = vadd.f32 %v1788, %v1792
    %s1795 = sld [smem:[#allocation11 + $0x8]]
    %v1796 = vstv %s1795
    %v1797 = vmul.f32 %v1796, %v1745
    %v1798 = vmul.f32 %v1796, %v1746
    %v1799 = vadd.f32 %v1793, %v1797
    %v1800 = vadd.f32 %v1794, %v1798
    %s1801 = sld [smem:[#allocation11 + $0x24]]
    %v1802 = vstv %s1801
    %v1803 = vmul.f32 %v1802, %v1719
    %v1804 = vmul.f32 %v1802, %v1720
    %v1805 = vadd.f32 %v1803, 0.0
    %v1806 = vadd.f32 %v1804, 0.0
    %s1807 = sld [smem:[#allocation11 + $0x25]]
    %v1808 = vstv %s1807
    %v1809 = vmul.f32 %v1808, %v1721
    %v1810 = vmul.f32 %v1808, %v1722
    %v1811 = vadd.f32 %v1805, %v1809
    %v1812 = vadd.f32 %v1806, %v1810
    %s1813 = sld [smem:[#allocation11 + $0x26]]
    %v1814 = vstv %s1813
    %v1815 = vmul.f32 %v1814, %v1727
    %v1816 = vmul.f32 %v1814, %v1728
    %v1817 = vadd.f32 %v1811, %v1815
    %v1818 = vadd.f32 %v1812, %v1816
    %s1819 = sld [smem:[#allocation11 + $0x27]]
    %v1820 = vstv %s1819
    %v1821 = vmul.f32 %v1820, %v1729
    %v1822 = vmul.f32 %v1820, %v1730
    %v1823 = vadd.f32 %v1817, %v1821
    %v1824 = vadd.f32 %v1818, %v1822
    %s1825 = sld [smem:[#allocation11 + $0x28]]
    %v1826 = vstv %s1825
    %v1827 = vmul.f32 %v1826, %v1578
    %v1828 = vmul.f32 %v1826, %v1579
    %v1829 = vadd.f32 %v1823, %v1827
    %v1830 = vadd.f32 %v1824, %v1828
    %s1831 = sld [smem:[#allocation11 + $0x29]]
    %v1832 = vstv %s1831
    %v1833 = vmul.f32 %v1832, %v1731
    %v1834 = vmul.f32 %v1832, %v1732
    %v1835 = vadd.f32 %v1829, %v1833
    %v1836 = vadd.f32 %v1830, %v1834
    %s1837 = sld [smem:[#allocation11 + $0x2a]]
    %v1838 = vstv %s1837
    %v1839 = vmul.f32 %v1838, %v1737
    %v1840 = vmul.f32 %v1838, %v1738
    %v1841 = vadd.f32 %v1835, %v1839
    %v1842 = vadd.f32 %v1836, %v1840
    %s1843 = sld [smem:[#allocation11 + $0x2b]]
    %v1844 = vstv %s1843
    %v1845 = vmul.f32 %v1844, %v1739
    %v1846 = vmul.f32 %v1844, %v1740
    %v1847 = vadd.f32 %v1841, %v1845
    %v1848 = vadd.f32 %v1842, %v1846
    %s1849 = sld [smem:[#allocation11 + $0x2c]]
    %v1850 = vstv %s1849
    %v1851 = vmul.f32 %v1850, %v1745
    %v1852 = vmul.f32 %v1850, %v1746
    %v1853 = vadd.f32 %v1847, %v1851
    %v1854 = vadd.f32 %v1848, %v1852
    %s1855 = sld [smem:[#allocation11 + $0x48]]
    %v1856 = vstv %s1855
    %v1857 = vmul.f32 %v1856, %v1719
    %v1858 = vmul.f32 %v1856, %v1720
    %v1859 = vadd.f32 %v1857, 0.0
    %v1860 = vadd.f32 %v1858, 0.0
    %s1861 = sld [smem:[#allocation11 + $0x49]]
    %v1862 = vstv %s1861
    %v1863 = vmul.f32 %v1862, %v1721
    %v1864 = vmul.f32 %v1862, %v1722
    %v1865 = vadd.f32 %v1859, %v1863
    %v1866 = vadd.f32 %v1860, %v1864
    %s1867 = sld [smem:[#allocation11 + $0x4a]]
    %v1868 = vstv %s1867
    %v1869 = vmul.f32 %v1868, %v1727
    %v1870 = vmul.f32 %v1868, %v1728
    %v1871 = vadd.f32 %v1865, %v1869
    %v1872 = vadd.f32 %v1866, %v1870
    %s1873 = sld [smem:[#allocation11 + $0x4b]]
    %v1874 = vstv %s1873
    %v1875 = vmul.f32 %v1874, %v1729
    %v1876 = vmul.f32 %v1874, %v1730
    %v1877 = vadd.f32 %v1871, %v1875
    %v1878 = vadd.f32 %v1872, %v1876
    %s1879 = sld [smem:[#allocation11 + $0x4c]]
    %v1880 = vstv %s1879
    %v1881 = vmul.f32 %v1880, %v1578
    %v1882 = vmul.f32 %v1880, %v1579
    %v1883 = vadd.f32 %v1877, %v1881
    %v1884 = vadd.f32 %v1878, %v1882
    %s1885 = sld [smem:[#allocation11 + $0x4d]]
    %v1886 = vstv %s1885
    %v1887 = vmul.f32 %v1886, %v1731
    %v1888 = vmul.f32 %v1886, %v1732
    %v1889 = vadd.f32 %v1883, %v1887
    %v1890 = vadd.f32 %v1884, %v1888
    %s1891 = sld [smem:[#allocation11 + $0x4e]]
    %v1892 = vstv %s1891
    %v1893 = vmul.f32 %v1892, %v1737
    %v1894 = vmul.f32 %v1892, %v1738
    %v1895 = vadd.f32 %v1889, %v1893
    %v1896 = vadd.f32 %v1890, %v1894
    %s1897 = sld [smem:[#allocation11 + $0x4f]]
    %v1898 = vstv %s1897
    %v1899 = vmul.f32 %v1898, %v1739
    %v1900 = vmul.f32 %v1898, %v1740
    %v1901 = vadd.f32 %v1895, %v1899
    %v1902 = vadd.f32 %v1896, %v1900
    %s1903 = sld [smem:[#allocation11 + $0x50]]
    %v1904 = vstv %s1903
    %v1905 = vmul.f32 %v1904, %v1745
    %v1906 = vmul.f32 %v1904, %v1746
    %v1907 = vadd.f32 %v1901, %v1905
    %v1908 = vadd.f32 %v1902, %v1906
    %s1909 = sld [smem:[#allocation11 + $0x6c]]
    %v1910 = vstv %s1909
    %v1911 = vmul.f32 %v1910, %v1719
    %v1912 = vmul.f32 %v1910, %v1720
    %v1913 = vadd.f32 %v1911, 0.0
    %v1914 = vadd.f32 %v1912, 0.0
    %s1915 = sld [smem:[#allocation11 + $0x6d]]
    %v1916 = vstv %s1915
    %v1917 = vmul.f32 %v1916, %v1721
    %v1918 = vmul.f32 %v1916, %v1722
    %v1919 = vadd.f32 %v1913, %v1917
    %v1920 = vadd.f32 %v1914, %v1918
    %s1921 = sld [smem:[#allocation11 + $0x6e]]
    %v1922 = vstv %s1921
    %v1923 = vmul.f32 %v1922, %v1727
    %v1924 = vmul.f32 %v1922, %v1728
    %v1925 = vadd.f32 %v1919, %v1923
    %v1926 = vadd.f32 %v1920, %v1924
    %s1927 = sld [smem:[#allocation11 + $0x6f]]
    %v1928 = vstv %s1927
    %v1929 = vmul.f32 %v1928, %v1729
    %v1930 = vmul.f32 %v1928, %v1730
    %v1931 = vadd.f32 %v1925, %v1929
    %v1932 = vadd.f32 %v1926, %v1930
    %s1933 = sld [smem:[#allocation11 + $0x70]]
    %v1934 = vstv %s1933
    %v1935 = vmul.f32 %v1934, %v1578
    %v1936 = vmul.f32 %v1934, %v1579
    %v1937 = vadd.f32 %v1931, %v1935
    %v1938 = vadd.f32 %v1932, %v1936
    %s1939 = sld [smem:[#allocation11 + $0x71]]
    %v1940 = vstv %s1939
    %v1941 = vmul.f32 %v1940, %v1731
    %v1942 = vmul.f32 %v1940, %v1732
    %v1943 = vadd.f32 %v1937, %v1941
    %v1944 = vadd.f32 %v1938, %v1942
    %s1945 = sld [smem:[#allocation11 + $0x72]]
    %v1946 = vstv %s1945
    %v1947 = vmul.f32 %v1946, %v1737
    %v1948 = vmul.f32 %v1946, %v1738
    %v1949 = vadd.f32 %v1943, %v1947
    %v1950 = vadd.f32 %v1944, %v1948
    %s1951 = sld [smem:[#allocation11 + $0x73]]
    %v1952 = vstv %s1951
    %v1953 = vmul.f32 %v1952, %v1739
    %v1954 = vmul.f32 %v1952, %v1740
    %v1955 = vadd.f32 %v1949, %v1953
    %v1956 = vadd.f32 %v1950, %v1954
    %s1957 = sld [smem:[#allocation11 + $0x74]]
    %v1958 = vstv %s1957
    %v1959 = vmul.f32 %v1958, %v1745
    %v1960 = vmul.f32 %v1958, %v1746
    %v1961 = vadd.f32 %v1955, %v1959
    %v1962 = vadd.f32 %v1956, %v1960
    %1963 = vrot.lane.b32.xlu0 %v1607, 17
    %v1964 = vpop.permute.xlu0 %1963
    %1965 = vrot.lane.b32.xlu0 %v1608, 17
    %v1966 = vpop.permute.xlu0 %1965
    %v1967 = vsel %vm161, %v1964, %v1966
    %v1968 = vsel %vm161, %v1966, %v1964
    %1969 = vrot.lane.b32.xlu0 %v1607, 16
    %v1970 = vpop.permute.xlu0 %1969
    %1971 = vrot.lane.b32.xlu0 %v1608, 16
    %v1972 = vpop.permute.xlu0 %1971
    %v1973 = vsel %vm127, %v1970, %v1972
    %v1974 = vsel %vm127, %v1972, %v1970
    %1975 = vrot.lane.b32.xlu0 %v1607, 15
    %v1976 = vpop.permute.xlu0 %1975
    %1977 = vrot.lane.b32.xlu0 %v1608, 15
    %v1978 = vpop.permute.xlu0 %1977
    %v1979 = vsel %vm174, %v1976, %v1978
    %v1980 = vsel %vm174, %v1978, %v1976
    %1981 = vrot.lane.b32.xlu0 %v1607, 1
    %v1982 = vpop.permute.xlu0 %1981
    %1983 = vrot.lane.b32.xlu0 %v1608, 1
    %v1984 = vpop.permute.xlu0 %1983
    %v1985 = vsel %vm181, %v1982, %v1984
    %v1986 = vsel %vm181, %v1984, %v1982
    %1987 = vrot.lane.b32.xlu0 %v1607, 127
    %v1988 = vpop.permute.xlu0 %1987
    %1989 = vrot.lane.b32.xlu0 %v1608, 127
    %v1990 = vpop.permute.xlu0 %1989
    %v1991 = vsel %vm188, %v1988, %v1990
    %v1992 = vsel %vm188, %v1990, %v1988
    %1993 = vrot.lane.b32.xlu0 %v1607, 113
    %v1994 = vpop.permute.xlu0 %1993
    %1995 = vrot.lane.b32.xlu0 %v1608, 113
    %v1996 = vpop.permute.xlu0 %1995
    %v1997 = vsel %vm195, %v1994, %v1996
    %v1998 = vsel %vm195, %v1996, %v1994
    %1999 = vrot.lane.b32.xlu0 %v1607, 112
    %v2000 = vpop.permute.xlu0 %1999
    %2001 = vrot.lane.b32.xlu0 %v1608, 112
    %v2002 = vpop.permute.xlu0 %2001
    %v2003 = vsel %vm202, %v2000, %v2002
    %v2004 = vsel %vm202, %v2002, %v2000
    %2005 = vrot.lane.b32.xlu0 %v1607, 111
    %v2006 = vpop.permute.xlu0 %2005
    %2007 = vrot.lane.b32.xlu0 %v1608, 111
    %v2008 = vpop.permute.xlu0 %2007
    %v2009 = vsel %vm209, %v2006, %v2008
    %v2010 = vsel %vm209, %v2008, %v2006
    %v2011 = vsel %vm119, %v1980, %v1968
    %v2012 = vsel %vm120, %v1979, %v1967
    %v2013 = vsel %vm131, %v1997, %v2011
    %v2014 = vsel %vm132, %v1998, %v2012
    %v2015 = vsel %vm216, %v2009, %v2013
    %v2016 = vsel %vm217, %v2010, %v2014
    %v2017 = vsel %vm131, %v2003, %v1974
    %v2018 = vsel %vm132, %v2004, %v1973
    %v2019 = vsel %vm125, %v1968, %v1980
    %v2020 = vsel %vm126, %v1967, %v1979
    %v2021 = vsel %vm131, %v2009, %v2019
    %v2022 = vsel %vm132, %v2010, %v2020
    %v2023 = vsel %vm226, %v1997, %v2021
    %v2024 = vsel %vm227, %v1998, %v2022
    %v2025 = vsel %vm119, %v1991, %v1986
    %v2026 = vsel %vm120, %v1992, %v1985
    %v2027 = vsel %vm125, %v1986, %v1991
    %v2028 = vsel %vm126, %v1985, %v1992
    %v2029 = vsel %vm119, %v2009, %v1997
    %v2030 = vsel %vm120, %v2010, %v1998
    %v2031 = vsel %vm137, %v1968, %v2029
    %v2032 = vsel %vm138, %v1967, %v2030
    %v2033 = vsel %vm238, %v1980, %v2031
    %v2034 = vsel %vm239, %v1979, %v2032
    %v2035 = vsel %vm137, %v1974, %v2003
    %v2036 = vsel %vm138, %v1973, %v2004
    %v2037 = vsel %vm125, %v1997, %v2009
    %v2038 = vsel %vm126, %v1998, %v2010
    %v2039 = vsel %vm137, %v1980, %v2037
    %v2040 = vsel %vm138, %v1979, %v2038
    %v2041 = vsel %vm248, %v1968, %v2039
    %v2042 = vsel %vm249, %v1967, %v2040
    %s2043 = sld [smem:[#allocation11 + $0x9]]
    %v2044 = vstv %s2043
    %v2045 = vmul.f32 %v2044, %v2015
    %v2046 = vmul.f32 %v2044, %v2016
    %v2047 = vadd.f32 %v1799, %v2045
    %v2048 = vadd.f32 %v1800, %v2046
    %s2049 = sld [smem:[#allocation11 + $0xa]]
    %v2050 = vstv %s2049
    %v2051 = vmul.f32 %v2050, %v2017
    %v2052 = vmul.f32 %v2050, %v2018
    %v2053 = vadd.f32 %v2047, %v2051
    %v2054 = vadd.f32 %v2048, %v2052
    %s2055 = sld [smem:[#allocation11 + $0xb]]
    %v2056 = vstv %s2055
    %v2057 = vmul.f32 %v2056, %v2023
    %v2058 = vmul.f32 %v2056, %v2024
    %v2059 = vadd.f32 %v2053, %v2057
    %v2060 = vadd.f32 %v2054, %v2058
    %s2061 = sld [smem:[#allocation11 + $0xc]]
    %v2062 = vstv %s2061
    %v2063 = vmul.f32 %v2062, %v2025
    %v2064 = vmul.f32 %v2062, %v2026
    %v2065 = vadd.f32 %v2059, %v2063
    %v2066 = vadd.f32 %v2060, %v2064
    %s2067 = sld [smem:[#allocation11 + $0xd]]
    %v2068 = vstv %s2067
    %v2069 = vmul.f32 %v2068, %v1607
    %v2070 = vmul.f32 %v2068, %v1608
    %v2071 = vadd.f32 %v2065, %v2069
    %v2072 = vadd.f32 %v2066, %v2070
    %s2073 = sld [smem:[#allocation11 + $0xe]]
    %v2074 = vstv %s2073
    %v2075 = vmul.f32 %v2074, %v2027
    %v2076 = vmul.f32 %v2074, %v2028
    %v2077 = vadd.f32 %v2071, %v2075
    %v2078 = vadd.f32 %v2072, %v2076
    %s2079 = sld [smem:[#allocation11 + $0xf]]
    %v2080 = vstv %s2079
    %v2081 = vmul.f32 %v2080, %v2033
    %v2082 = vmul.f32 %v2080, %v2034
    %v2083 = vadd.f32 %v2077, %v2081
    %v2084 = vadd.f32 %v2078, %v2082
    %s2085 = sld [smem:[#allocation11 + $0x10]]
    %v2086 = vstv %s2085
    %v2087 = vmul.f32 %v2086, %v2035
    %v2088 = vmul.f32 %v2086, %v2036
    %v2089 = vadd.f32 %v2083, %v2087
    %v2090 = vadd.f32 %v2084, %v2088
    %s2091 = sld [smem:[#allocation11 + $0x11]]
    %v2092 = vstv %s2091
    %v2093 = vmul.f32 %v2092, %v2041
    %v2094 = vmul.f32 %v2092, %v2042
    %v2095 = vadd.f32 %v2089, %v2093
    %v2096 = vadd.f32 %v2090, %v2094
    %s2097 = sld [smem:[#allocation11 + $0x2d]]
    %v2098 = vstv %s2097
    %v2099 = vmul.f32 %v2098, %v2015
    %v2100 = vmul.f32 %v2098, %v2016
    %v2101 = vadd.f32 %v1853, %v2099
    %v2102 = vadd.f32 %v1854, %v2100
    %s2103 = sld [smem:[#allocation11 + $0x2e]]
    %v2104 = vstv %s2103
    %v2105 = vmul.f32 %v2104, %v2017
    %v2106 = vmul.f32 %v2104, %v2018
    %v2107 = vadd.f32 %v2101, %v2105
    %v2108 = vadd.f32 %v2102, %v2106
    %s2109 = sld [smem:[#allocation11 + $0x2f]]
    %v2110 = vstv %s2109
    %v2111 = vmul.f32 %v2110, %v2023
    %v2112 = vmul.f32 %v2110, %v2024
    %v2113 = vadd.f32 %v2107, %v2111
    %v2114 = vadd.f32 %v2108, %v2112
    %s2115 = sld [smem:[#allocation11 + $0x30]]
    %v2116 = vstv %s2115
    %v2117 = vmul.f32 %v2116, %v2025
    %v2118 = vmul.f32 %v2116, %v2026
    %v2119 = vadd.f32 %v2113, %v2117
    %v2120 = vadd.f32 %v2114, %v2118
    %s2121 = sld [smem:[#allocation11 + $0x31]]
    %v2122 = vstv %s2121
    %v2123 = vmul.f32 %v2122, %v1607
    %v2124 = vmul.f32 %v2122, %v1608
    %v2125 = vadd.f32 %v2119, %v2123
    %v2126 = vadd.f32 %v2120, %v2124
    %s2127 = sld [smem:[#allocation11 + $0x32]]
    %v2128 = vstv %s2127
    %v2129 = vmul.f32 %v2128, %v2027
    %v2130 = vmul.f32 %v2128, %v2028
    %v2131 = vadd.f32 %v2125, %v2129
    %v2132 = vadd.f32 %v2126, %v2130
    %s2133 = sld [smem:[#allocation11 + $0x33]]
    %v2134 = vstv %s2133
    %v2135 = vmul.f32 %v2134, %v2033
    %v2136 = vmul.f32 %v2134, %v2034
    %v2137 = vadd.f32 %v2131, %v2135
    %v2138 = vadd.f32 %v2132, %v2136
    %s2139 = sld [smem:[#allocation11 + $0x34]]
    %v2140 = vstv %s2139
    %v2141 = vmul.f32 %v2140, %v2035
    %v2142 = vmul.f32 %v2140, %v2036
    %v2143 = vadd.f32 %v2137, %v2141
    %v2144 = vadd.f32 %v2138, %v2142
    %s2145 = sld [smem:[#allocation11 + $0x35]]
    %v2146 = vstv %s2145
    %v2147 = vmul.f32 %v2146, %v2041
    %v2148 = vmul.f32 %v2146, %v2042
    %v2149 = vadd.f32 %v2143, %v2147
    %v2150 = vadd.f32 %v2144, %v2148
    %s2151 = sld [smem:[#allocation11 + $0x51]]
    %v2152 = vstv %s2151
    %v2153 = vmul.f32 %v2152, %v2015
    %v2154 = vmul.f32 %v2152, %v2016
    %v2155 = vadd.f32 %v1907, %v2153
    %v2156 = vadd.f32 %v1908, %v2154
    %s2157 = sld [smem:[#allocation11 + $0x52]]
    %v2158 = vstv %s2157
    %v2159 = vmul.f32 %v2158, %v2017
    %v2160 = vmul.f32 %v2158, %v2018
    %v2161 = vadd.f32 %v2155, %v2159
    %v2162 = vadd.f32 %v2156, %v2160
    %s2163 = sld [smem:[#allocation11 + $0x53]]
    %v2164 = vstv %s2163
    %v2165 = vmul.f32 %v2164, %v2023
    %v2166 = vmul.f32 %v2164, %v2024
    %v2167 = vadd.f32 %v2161, %v2165
    %v2168 = vadd.f32 %v2162, %v2166
    %s2169 = sld [smem:[#allocation11 + $0x54]]
    %v2170 = vstv %s2169
    %v2171 = vmul.f32 %v2170, %v2025
    %v2172 = vmul.f32 %v2170, %v2026
    %v2173 = vadd.f32 %v2167, %v2171
    %v2174 = vadd.f32 %v2168, %v2172
    %s2175 = sld [smem:[#allocation11 + $0x55]]
    %v2176 = vstv %s2175
    %v2177 = vmul.f32 %v2176, %v1607
    %v2178 = vmul.f32 %v2176, %v1608
    %v2179 = vadd.f32 %v2173, %v2177
    %v2180 = vadd.f32 %v2174, %v2178
    %s2181 = sld [smem:[#allocation11 + $0x56]]
    %v2182 = vstv %s2181
    %v2183 = vmul.f32 %v2182, %v2027
    %v2184 = vmul.f32 %v2182, %v2028
    %v2185 = vadd.f32 %v2179, %v2183
    %v2186 = vadd.f32 %v2180, %v2184
    %s2187 = sld [smem:[#allocation11 + $0x57]]
    %v2188 = vstv %s2187
    %v2189 = vmul.f32 %v2188, %v2033
    %v2190 = vmul.f32 %v2188, %v2034
    %v2191 = vadd.f32 %v2185, %v2189
    %v2192 = vadd.f32 %v2186, %v2190
    %s2193 = sld [smem:[#allocation11 + $0x58]]
    %v2194 = vstv %s2193
    %v2195 = vmul.f32 %v2194, %v2035
    %v2196 = vmul.f32 %v2194, %v2036
    %v2197 = vadd.f32 %v2191, %v2195
    %v2198 = vadd.f32 %v2192, %v2196
    %s2199 = sld [smem:[#allocation11 + $0x59]]
    %v2200 = vstv %s2199
    %v2201 = vmul.f32 %v2200, %v2041
    %v2202 = vmul.f32 %v2200, %v2042
    %v2203 = vadd.f32 %v2197, %v2201
    %v2204 = vadd.f32 %v2198, %v2202
    %s2205 = sld [smem:[#allocation11 + $0x75]]
    %v2206 = vstv %s2205
    %v2207 = vmul.f32 %v2206, %v2015
    %v2208 = vmul.f32 %v2206, %v2016
    %v2209 = vadd.f32 %v1961, %v2207
    %v2210 = vadd.f32 %v1962, %v2208
    %s2211 = sld [smem:[#allocation11 + $0x76]]
    %v2212 = vstv %s2211
    %v2213 = vmul.f32 %v2212, %v2017
    %v2214 = vmul.f32 %v2212, %v2018
    %v2215 = vadd.f32 %v2209, %v2213
    %v2216 = vadd.f32 %v2210, %v2214
    %s2217 = sld [smem:[#allocation11 + $0x77]]
    %v2218 = vstv %s2217
    %v2219 = vmul.f32 %v2218, %v2023
    %v2220 = vmul.f32 %v2218, %v2024
    %v2221 = vadd.f32 %v2215, %v2219
    %v2222 = vadd.f32 %v2216, %v2220
    %s2223 = sld [smem:[#allocation11 + $0x78]]
    %v2224 = vstv %s2223
    %v2225 = vmul.f32 %v2224, %v2025
    %v2226 = vmul.f32 %v2224, %v2026
    %v2227 = vadd.f32 %v2221, %v2225
    %v2228 = vadd.f32 %v2222, %v2226
    %s2229 = sld [smem:[#allocation11 + $0x79]]
    %v2230 = vstv %s2229
    %v2231 = vmul.f32 %v2230, %v1607
    %v2232 = vmul.f32 %v2230, %v1608
    %v2233 = vadd.f32 %v2227, %v2231
    %v2234 = vadd.f32 %v2228, %v2232
    %s2235 = sld [smem:[#allocation11 + $0x7a]]
    %v2236 = vstv %s2235
    %v2237 = vmul.f32 %v2236, %v2027
    %v2238 = vmul.f32 %v2236, %v2028
    %v2239 = vadd.f32 %v2233, %v2237
    %v2240 = vadd.f32 %v2234, %v2238
    %s2241 = sld [smem:[#allocation11 + $0x7b]]
    %v2242 = vstv %s2241
    %v2243 = vmul.f32 %v2242, %v2033
    %v2244 = vmul.f32 %v2242, %v2034
    %v2245 = vadd.f32 %v2239, %v2243
    %v2246 = vadd.f32 %v2240, %v2244
    %s2247 = sld [smem:[#allocation11 + $0x7c]]
    %v2248 = vstv %s2247
    %v2249 = vmul.f32 %v2248, %v2035
    %v2250 = vmul.f32 %v2248, %v2036
    %v2251 = vadd.f32 %v2245, %v2249
    %v2252 = vadd.f32 %v2246, %v2250
    %s2253 = sld [smem:[#allocation11 + $0x7d]]
    %v2254 = vstv %s2253
    %v2255 = vmul.f32 %v2254, %v2041
    %v2256 = vmul.f32 %v2254, %v2042
    %v2257 = vadd.f32 %v2251, %v2255
    %v2258 = vadd.f32 %v2252, %v2256
    %2259 = vrot.lane.b32.xlu0 %v1636, 17
    %v2260 = vpop.permute.xlu0 %2259
    %2261 = vrot.lane.b32.xlu0 %v1637, 17
    %v2262 = vpop.permute.xlu0 %2261
    %v2263 = vsel %vm161, %v2260, %v2262
    %v2264 = vsel %vm161, %v2262, %v2260
    %2265 = vrot.lane.b32.xlu0 %v1636, 16
    %v2266 = vpop.permute.xlu0 %2265
    %2267 = vrot.lane.b32.xlu0 %v1637, 16
    %v2268 = vpop.permute.xlu0 %2267
    %v2269 = vsel %vm127, %v2266, %v2268
    %v2270 = vsel %vm127, %v2268, %v2266
    %2271 = vrot.lane.b32.xlu0 %v1636, 15
    %v2272 = vpop.permute.xlu0 %2271
    %2273 = vrot.lane.b32.xlu0 %v1637, 15
    %v2274 = vpop.permute.xlu0 %2273
    %v2275 = vsel %vm174, %v2272, %v2274
    %v2276 = vsel %vm174, %v2274, %v2272
    %2277 = vrot.lane.b32.xlu0 %v1636, 1
    %v2278 = vpop.permute.xlu0 %2277
    %2279 = vrot.lane.b32.xlu0 %v1637, 1
    %v2280 = vpop.permute.xlu0 %2279
    %v2281 = vsel %vm181, %v2278, %v2280
    %v2282 = vsel %vm181, %v2280, %v2278
    %2283 = vrot.lane.b32.xlu0 %v1636, 127
    %v2284 = vpop.permute.xlu0 %2283
    %2285 = vrot.lane.b32.xlu0 %v1637, 127
    %v2286 = vpop.permute.xlu0 %2285
    %v2287 = vsel %vm188, %v2284, %v2286
    %v2288 = vsel %vm188, %v2286, %v2284
    %2289 = vrot.lane.b32.xlu0 %v1636, 113
    %v2290 = vpop.permute.xlu0 %2289
    %2291 = vrot.lane.b32.xlu0 %v1637, 113
    %v2292 = vpop.permute.xlu0 %2291
    %v2293 = vsel %vm195, %v2290, %v2292
    %v2294 = vsel %vm195, %v2292, %v2290
    %2295 = vrot.lane.b32.xlu0 %v1636, 112
    %v2296 = vpop.permute.xlu0 %2295
    %2297 = vrot.lane.b32.xlu0 %v1637, 112
    %v2298 = vpop.permute.xlu0 %2297
    %v2299 = vsel %vm202, %v2296, %v2298
    %v2300 = vsel %vm202, %v2298, %v2296
    %2301 = vrot.lane.b32.xlu0 %v1636, 111
    %v2302 = vpop.permute.xlu0 %2301
    %2303 = vrot.lane.b32.xlu0 %v1637, 111
    %v2304 = vpop.permute.xlu0 %2303
    %v2305 = vsel %vm209, %v2302, %v2304
    %v2306 = vsel %vm209, %v2304, %v2302
    %v2307 = vsel %vm119, %v2276, %v2264
    %v2308 = vsel %vm120, %v2275, %v2263
    %v2309 = vsel %vm131, %v2293, %v2307
    %v2310 = vsel %vm132, %v2294, %v2308
    %v2311 = vsel %vm216, %v2305, %v2309
    %v2312 = vsel %vm217, %v2306, %v2310
    %v2313 = vsel %vm131, %v2299, %v2270
    %v2314 = vsel %vm132, %v2300, %v2269
    %v2315 = vsel %vm125, %v2264, %v2276
    %v2316 = vsel %vm126, %v2263, %v2275
    %v2317 = vsel %vm131, %v2305, %v2315
    %v2318 = vsel %vm132, %v2306, %v2316
    %v2319 = vsel %vm226, %v2293, %v2317
    %v2320 = vsel %vm227, %v2294, %v2318
    %v2321 = vsel %vm119, %v2287, %v2282
    %v2322 = vsel %vm120, %v2288, %v2281
    %v2323 = vsel %vm125, %v2282, %v2287
    %v2324 = vsel %vm126, %v2281, %v2288
    %v2325 = vsel %vm119, %v2305, %v2293
    %v2326 = vsel %vm120, %v2306, %v2294
    %v2327 = vsel %vm137, %v2264, %v2325
    %v2328 = vsel %vm138, %v2263, %v2326
    %v2329 = vsel %vm238, %v2276, %v2327
    %v2330 = vsel %vm239, %v2275, %v2328
    %v2331 = vsel %vm137, %v2270, %v2299
    %v2332 = vsel %vm138, %v2269, %v2300
    %v2333 = vsel %vm125, %v2293, %v2305
    %v2334 = vsel %vm126, %v2294, %v2306
    %v2335 = vsel %vm137, %v2276, %v2333
    %v2336 = vsel %vm138, %v2275, %v2334
    %v2337 = vsel %vm248, %v2264, %v2335
    %v2338 = vsel %vm249, %v2263, %v2336
    %s2339 = sld [smem:[#allocation11 + $0x12]]
    %v2340 = vstv %s2339
    %v2341 = vmul.f32 %v2340, %v2311
    %v2342 = vmul.f32 %v2340, %v2312
    %v2343 = vadd.f32 %v2095, %v2341
    %v2344 = vadd.f32 %v2096, %v2342
    %s2345 = sld [smem:[#allocation11 + $0x13]]
    %v2346 = vstv %s2345
    %v2347 = vmul.f32 %v2346, %v2313
    %v2348 = vmul.f32 %v2346, %v2314
    %v2349 = vadd.f32 %v2343, %v2347
    %v2350 = vadd.f32 %v2344, %v2348
    %s2351 = sld [smem:[#allocation11 + $0x14]]
    %v2352 = vstv %s2351
    %v2353 = vmul.f32 %v2352, %v2319
    %v2354 = vmul.f32 %v2352, %v2320
    %v2355 = vadd.f32 %v2349, %v2353
    %v2356 = vadd.f32 %v2350, %v2354
    %s2357 = sld [smem:[#allocation11 + $0x15]]
    %v2358 = vstv %s2357
    %v2359 = vmul.f32 %v2358, %v2321
    %v2360 = vmul.f32 %v2358, %v2322
    %v2361 = vadd.f32 %v2355, %v2359
    %v2362 = vadd.f32 %v2356, %v2360
    %s2363 = sld [smem:[#allocation11 + $0x16]]
    %v2364 = vstv %s2363
    %v2365 = vmul.f32 %v2364, %v1636
    %v2366 = vmul.f32 %v2364, %v1637
    %v2367 = vadd.f32 %v2361, %v2365
    %v2368 = vadd.f32 %v2362, %v2366
    %s2369 = sld [smem:[#allocation11 + $0x17]]
    %v2370 = vstv %s2369
    %v2371 = vmul.f32 %v2370, %v2323
    %v2372 = vmul.f32 %v2370, %v2324
    %v2373 = vadd.f32 %v2367, %v2371
    %v2374 = vadd.f32 %v2368, %v2372
    %s2375 = sld [smem:[#allocation11 + $0x18]]
    %v2376 = vstv %s2375
    %v2377 = vmul.f32 %v2376, %v2329
    %v2378 = vmul.f32 %v2376, %v2330
    %v2379 = vadd.f32 %v2373, %v2377
    %v2380 = vadd.f32 %v2374, %v2378
    %s2381 = sld [smem:[#allocation11 + $0x19]]
    %v2382 = vstv %s2381
    %v2383 = vmul.f32 %v2382, %v2331
    %v2384 = vmul.f32 %v2382, %v2332
    %v2385 = vadd.f32 %v2379, %v2383
    %v2386 = vadd.f32 %v2380, %v2384
    %s2387 = sld [smem:[#allocation11 + $0x1a]]
    %v2388 = vstv %s2387
    %v2389 = vmul.f32 %v2388, %v2337
    %v2390 = vmul.f32 %v2388, %v2338
    %v2391 = vadd.f32 %v2385, %v2389
    %v2392 = vadd.f32 %v2386, %v2390
    %s2393 = sld [smem:[#allocation11 + $0x36]]
    %v2394 = vstv %s2393
    %v2395 = vmul.f32 %v2394, %v2311
    %v2396 = vmul.f32 %v2394, %v2312
    %v2397 = vadd.f32 %v2149, %v2395
    %v2398 = vadd.f32 %v2150, %v2396
    %s2399 = sld [smem:[#allocation11 + $0x37]]
    %v2400 = vstv %s2399
    %v2401 = vmul.f32 %v2400, %v2313
    %v2402 = vmul.f32 %v2400, %v2314
    %v2403 = vadd.f32 %v2397, %v2401
    %v2404 = vadd.f32 %v2398, %v2402
    %s2405 = sld [smem:[#allocation11 + $0x38]]
    %v2406 = vstv %s2405
    %v2407 = vmul.f32 %v2406, %v2319
    %v2408 = vmul.f32 %v2406, %v2320
    %v2409 = vadd.f32 %v2403, %v2407
    %v2410 = vadd.f32 %v2404, %v2408
    %s2411 = sld [smem:[#allocation11 + $0x39]]
    %v2412 = vstv %s2411
    %v2413 = vmul.f32 %v2412, %v2321
    %v2414 = vmul.f32 %v2412, %v2322
    %v2415 = vadd.f32 %v2409, %v2413
    %v2416 = vadd.f32 %v2410, %v2414
    %s2417 = sld [smem:[#allocation11 + $0x3a]]
    %v2418 = vstv %s2417
    %v2419 = vmul.f32 %v2418, %v1636
    %v2420 = vmul.f32 %v2418, %v1637
    %v2421 = vadd.f32 %v2415, %v2419
    %v2422 = vadd.f32 %v2416, %v2420
    %s2423 = sld [smem:[#allocation11 + $0x3b]]
    %v2424 = vstv %s2423
    %v2425 = vmul.f32 %v2424, %v2323
    %v2426 = vmul.f32 %v2424, %v2324
    %v2427 = vadd.f32 %v2421, %v2425
    %v2428 = vadd.f32 %v2422, %v2426
    %s2429 = sld [smem:[#allocation11 + $0x3c]]
    %v2430 = vstv %s2429
    %v2431 = vmul.f32 %v2430, %v2329
    %v2432 = vmul.f32 %v2430, %v2330
    %v2433 = vadd.f32 %v2427, %v2431
    %v2434 = vadd.f32 %v2428, %v2432
    %s2435 = sld [smem:[#allocation11 + $0x3d]]
    %v2436 = vstv %s2435
    %v2437 = vmul.f32 %v2436, %v2331
    %v2438 = vmul.f32 %v2436, %v2332
    %v2439 = vadd.f32 %v2433, %v2437
    %v2440 = vadd.f32 %v2434, %v2438
    %s2441 = sld [smem:[#allocation11 + $0x3e]]
    %v2442 = vstv %s2441
    %v2443 = vmul.f32 %v2442, %v2337
    %v2444 = vmul.f32 %v2442, %v2338
    %v2445 = vadd.f32 %v2439, %v2443
    %v2446 = vadd.f32 %v2440, %v2444
    %s2447 = sld [smem:[#allocation11 + $0x5a]]
    %v2448 = vstv %s2447
    %v2449 = vmul.f32 %v2448, %v2311
    %v2450 = vmul.f32 %v2448, %v2312
    %v2451 = vadd.f32 %v2203, %v2449
    %v2452 = vadd.f32 %v2204, %v2450
    %s2453 = sld [smem:[#allocation11 + $0x5b]]
    %v2454 = vstv %s2453
    %v2455 = vmul.f32 %v2454, %v2313
    %v2456 = vmul.f32 %v2454, %v2314
    %v2457 = vadd.f32 %v2451, %v2455
    %v2458 = vadd.f32 %v2452, %v2456
    %s2459 = sld [smem:[#allocation11 + $0x5c]]
    %v2460 = vstv %s2459
    %v2461 = vmul.f32 %v2460, %v2319
    %v2462 = vmul.f32 %v2460, %v2320
    %v2463 = vadd.f32 %v2457, %v2461
    %v2464 = vadd.f32 %v2458, %v2462
    %s2465 = sld [smem:[#allocation11 + $0x5d]]
    %v2466 = vstv %s2465
    %v2467 = vmul.f32 %v2466, %v2321
    %v2468 = vmul.f32 %v2466, %v2322
    %v2469 = vadd.f32 %v2463, %v2467
    %v2470 = vadd.f32 %v2464, %v2468
    %s2471 = sld [smem:[#allocation11 + $0x5e]]
    %v2472 = vstv %s2471
    %v2473 = vmul.f32 %v2472, %v1636
    %v2474 = vmul.f32 %v2472, %v1637
    %v2475 = vadd.f32 %v2469, %v2473
    %v2476 = vadd.f32 %v2470, %v2474
    %s2477 = sld [smem:[#allocation11 + $0x5f]]
    %v2478 = vstv %s2477
    %v2479 = vmul.f32 %v2478, %v2323
    %v2480 = vmul.f32 %v2478, %v2324
    %v2481 = vadd.f32 %v2475, %v2479
    %v2482 = vadd.f32 %v2476, %v2480
    %s2483 = sld [smem:[#allocation11 + $0x60]]
    %v2484 = vstv %s2483
    %v2485 = vmul.f32 %v2484, %v2329
    %v2486 = vmul.f32 %v2484, %v2330
    %v2487 = vadd.f32 %v2481, %v2485
    %v2488 = vadd.f32 %v2482, %v2486
    %s2489 = sld [smem:[#allocation11 + $0x61]]
    %v2490 = vstv %s2489
    %v2491 = vmul.f32 %v2490, %v2331
    %v2492 = vmul.f32 %v2490, %v2332
    %v2493 = vadd.f32 %v2487, %v2491
    %v2494 = vadd.f32 %v2488, %v2492
    %s2495 = sld [smem:[#allocation11 + $0x62]]
    %v2496 = vstv %s2495
    %v2497 = vmul.f32 %v2496, %v2337
    %v2498 = vmul.f32 %v2496, %v2338
    %v2499 = vadd.f32 %v2493, %v2497
    %v2500 = vadd.f32 %v2494, %v2498
    %s2501 = sld [smem:[#allocation11 + $0x7e]]
    %v2502 = vstv %s2501
    %v2503 = vmul.f32 %v2502, %v2311
    %v2504 = vmul.f32 %v2502, %v2312
    %v2505 = vadd.f32 %v2257, %v2503
    %v2506 = vadd.f32 %v2258, %v2504
    %s2507 = sld [smem:[#allocation11 + $0x7f]]
    %v2508 = vstv %s2507
    %v2509 = vmul.f32 %v2508, %v2313
    %v2510 = vmul.f32 %v2508, %v2314
    %v2511 = vadd.f32 %v2505, %v2509
    %v2512 = vadd.f32 %v2506, %v2510
    %s2513 = sld [smem:[#allocation11 + $0x80]]
    %v2514 = vstv %s2513
    %v2515 = vmul.f32 %v2514, %v2319
    %v2516 = vmul.f32 %v2514, %v2320
    %v2517 = vadd.f32 %v2511, %v2515
    %v2518 = vadd.f32 %v2512, %v2516
    %s2519 = sld [smem:[#allocation11 + $0x81]]
    %v2520 = vstv %s2519
    %v2521 = vmul.f32 %v2520, %v2321
    %v2522 = vmul.f32 %v2520, %v2322
    %v2523 = vadd.f32 %v2517, %v2521
    %v2524 = vadd.f32 %v2518, %v2522
    %s2525 = sld [smem:[#allocation11 + $0x82]]
    %v2526 = vstv %s2525
    %v2527 = vmul.f32 %v2526, %v1636
    %v2528 = vmul.f32 %v2526, %v1637
    %v2529 = vadd.f32 %v2523, %v2527
    %v2530 = vadd.f32 %v2524, %v2528
    %s2531 = sld [smem:[#allocation11 + $0x83]]
    %v2532 = vstv %s2531
    %v2533 = vmul.f32 %v2532, %v2323
    %v2534 = vmul.f32 %v2532, %v2324
    %v2535 = vadd.f32 %v2529, %v2533
    %v2536 = vadd.f32 %v2530, %v2534
    %s2537 = sld [smem:[#allocation11 + $0x84]]
    %v2538 = vstv %s2537
    %v2539 = vmul.f32 %v2538, %v2329
    %v2540 = vmul.f32 %v2538, %v2330
    %v2541 = vadd.f32 %v2535, %v2539
    %v2542 = vadd.f32 %v2536, %v2540
    %s2543 = sld [smem:[#allocation11 + $0x85]]
    %v2544 = vstv %s2543
    %v2545 = vmul.f32 %v2544, %v2331
    %v2546 = vmul.f32 %v2544, %v2332
    %v2547 = vadd.f32 %v2541, %v2545
    %v2548 = vadd.f32 %v2542, %v2546
    %s2549 = sld [smem:[#allocation11 + $0x86]]
    %v2550 = vstv %s2549
    %v2551 = vmul.f32 %v2550, %v2337
    %v2552 = vmul.f32 %v2550, %v2338
    %v2553 = vadd.f32 %v2547, %v2551
    %v2554 = vadd.f32 %v2548, %v2552
    %2555 = vrot.lane.b32.xlu0 %v1665, 17
    %v2556 = vpop.permute.xlu0 %2555
    %2557 = vrot.lane.b32.xlu0 %v1666, 17
    %v2558 = vpop.permute.xlu0 %2557
    %v2559 = vsel %vm161, %v2556, %v2558
    %v2560 = vsel %vm161, %v2558, %v2556
    %2561 = vrot.lane.b32.xlu0 %v1665, 16
    %v2562 = vpop.permute.xlu0 %2561
    %2563 = vrot.lane.b32.xlu0 %v1666, 16
    %v2564 = vpop.permute.xlu0 %2563
    %v2565 = vsel %vm127, %v2562, %v2564
    %v2566 = vsel %vm127, %v2564, %v2562
    %2567 = vrot.lane.b32.xlu0 %v1665, 15
    %v2568 = vpop.permute.xlu0 %2567
    %2569 = vrot.lane.b32.xlu0 %v1666, 15
    %v2570 = vpop.permute.xlu0 %2569
    %v2571 = vsel %vm174, %v2568, %v2570
    %v2572 = vsel %vm174, %v2570, %v2568
    %2573 = vrot.lane.b32.xlu0 %v1665, 1
    %v2574 = vpop.permute.xlu0 %2573
    %2575 = vrot.lane.b32.xlu0 %v1666, 1
    %v2576 = vpop.permute.xlu0 %2575
    %v2577 = vsel %vm181, %v2574, %v2576
    %v2578 = vsel %vm181, %v2576, %v2574
    %2579 = vrot.lane.b32.xlu0 %v1665, 127
    %v2580 = vpop.permute.xlu0 %2579
    %2581 = vrot.lane.b32.xlu0 %v1666, 127
    %v2582 = vpop.permute.xlu0 %2581
    %v2583 = vsel %vm188, %v2580, %v2582
    %v2584 = vsel %vm188, %v2582, %v2580
    %2585 = vrot.lane.b32.xlu0 %v1665, 113
    %v2586 = vpop.permute.xlu0 %2585
    %2587 = vrot.lane.b32.xlu0 %v1666, 113
    %v2588 = vpop.permute.xlu0 %2587
    %v2589 = vsel %vm195, %v2586, %v2588
    %v2590 = vsel %vm195, %v2588, %v2586
    %2591 = vrot.lane.b32.xlu0 %v1665, 112
    %v2592 = vpop.permute.xlu0 %2591
    %2593 = vrot.lane.b32.xlu0 %v1666, 112
    %v2594 = vpop.permute.xlu0 %2593
    %v2595 = vsel %vm202, %v2592, %v2594
    %v2596 = vsel %vm202, %v2594, %v2592
    %2597 = vrot.lane.b32.xlu0 %v1665, 111
    %v2598 = vpop.permute.xlu0 %2597
    %2599 = vrot.lane.b32.xlu0 %v1666, 111
    %v2600 = vpop.permute.xlu0 %2599
    %v2601 = vsel %vm209, %v2598, %v2600
    %v2602 = vsel %vm209, %v2600, %v2598
    %v2603 = vsel %vm119, %v2572, %v2560
    %v2604 = vsel %vm120, %v2571, %v2559
    %v2605 = vsel %vm131, %v2589, %v2603
    %v2606 = vsel %vm132, %v2590, %v2604
    %v2607 = vsel %vm216, %v2601, %v2605
    %v2608 = vsel %vm217, %v2602, %v2606
    %v2609 = vsel %vm131, %v2595, %v2566
    %v2610 = vsel %vm132, %v2596, %v2565
    %v2611 = vsel %vm125, %v2560, %v2572
    %v2612 = vsel %vm126, %v2559, %v2571
    %v2613 = vsel %vm131, %v2601, %v2611
    %v2614 = vsel %vm132, %v2602, %v2612
    %v2615 = vsel %vm226, %v2589, %v2613
    %v2616 = vsel %vm227, %v2590, %v2614
    %v2617 = vsel %vm119, %v2583, %v2578
    %v2618 = vsel %vm120, %v2584, %v2577
    %v2619 = vsel %vm125, %v2578, %v2583
    %v2620 = vsel %vm126, %v2577, %v2584
    %v2621 = vsel %vm119, %v2601, %v2589
    %v2622 = vsel %vm120, %v2602, %v2590
    %v2623 = vsel %vm137, %v2560, %v2621
    %v2624 = vsel %vm138, %v2559, %v2622
    %v2625 = vsel %vm238, %v2572, %v2623
    %v2626 = vsel %vm239, %v2571, %v2624
    %v2627 = vsel %vm137, %v2566, %v2595
    %v2628 = vsel %vm138, %v2565, %v2596
    %v2629 = vsel %vm125, %v2589, %v2601
    %v2630 = vsel %vm126, %v2590, %v2602
    %v2631 = vsel %vm137, %v2572, %v2629
    %v2632 = vsel %vm138, %v2571, %v2630
    %v2633 = vsel %vm248, %v2560, %v2631
    %v2634 = vsel %vm249, %v2559, %v2632
    %s2635 = sld [smem:[#allocation11 + $0x1b]]
    %v2636 = vstv %s2635
    %v2637 = vmul.f32 %v2636, %v2607
    %v2638 = vmul.f32 %v2636, %v2608
    %v2639 = vadd.f32 %v2391, %v2637
    %v2640 = vadd.f32 %v2392, %v2638
    %s2641 = sld [smem:[#allocation11 + $0x1c]]
    %v2642 = vstv %s2641
    %v2643 = vmul.f32 %v2642, %v2609
    %v2644 = vmul.f32 %v2642, %v2610
    %v2645 = vadd.f32 %v2639, %v2643
    %v2646 = vadd.f32 %v2640, %v2644
    %s2647 = sld [smem:[#allocation11 + $0x1d]]
    %v2648 = vstv %s2647
    %v2649 = vmul.f32 %v2648, %v2615
    %v2650 = vmul.f32 %v2648, %v2616
    %v2651 = vadd.f32 %v2645, %v2649
    %v2652 = vadd.f32 %v2646, %v2650
    %s2653 = sld [smem:[#allocation11 + $0x1e]]
    %v2654 = vstv %s2653
    %v2655 = vmul.f32 %v2654, %v2617
    %v2656 = vmul.f32 %v2654, %v2618
    %v2657 = vadd.f32 %v2651, %v2655
    %v2658 = vadd.f32 %v2652, %v2656
    %s2659 = sld [smem:[#allocation11 + $0x1f]]
    %v2660 = vstv %s2659
    %v2661 = vmul.f32 %v2660, %v1665
    %v2662 = vmul.f32 %v2660, %v1666
    %v2663 = vadd.f32 %v2657, %v2661
    %v2664 = vadd.f32 %v2658, %v2662
    %s2665 = sld [smem:[#allocation11 + $0x20]]
    %v2666 = vstv %s2665
    %v2667 = vmul.f32 %v2666, %v2619
    %v2668 = vmul.f32 %v2666, %v2620
    %v2669 = vadd.f32 %v2663, %v2667
    %v2670 = vadd.f32 %v2664, %v2668
    %s2671 = sld [smem:[#allocation11 + $0x21]]
    %v2672 = vstv %s2671
    %v2673 = vmul.f32 %v2672, %v2625
    %v2674 = vmul.f32 %v2672, %v2626
    %v2675 = vadd.f32 %v2669, %v2673
    %v2676 = vadd.f32 %v2670, %v2674
    %s2677 = sld [smem:[#allocation11 + $0x22]]
    %v2678 = vstv %s2677
    %v2679 = vmul.f32 %v2678, %v2627
    %v2680 = vmul.f32 %v2678, %v2628
    %v2681 = vadd.f32 %v2675, %v2679
    %v2682 = vadd.f32 %v2676, %v2680
    %s2683 = sld [smem:[#allocation11 + $0x23]]
    %v2684 = vstv %s2683
    %v2685 = vmul.f32 %v2684, %v2633
    %v2686 = vmul.f32 %v2684, %v2634
    %v2687 = vadd.f32 %v2681, %v2685
    %v2688 = vadd.f32 %v2682, %v2686
    %s2689 = sld [smem:[#allocation11 + $0x3f]]
    %v2690 = vstv %s2689
    %v2691 = vmul.f32 %v2690, %v2607
    %v2692 = vmul.f32 %v2690, %v2608
    %v2693 = vadd.f32 %v2445, %v2691
    %v2694 = vadd.f32 %v2446, %v2692
    %s2695 = sld [smem:[#allocation11 + $0x40]]
    %v2696 = vstv %s2695
    %v2697 = vmul.f32 %v2696, %v2609
    %v2698 = vmul.f32 %v2696, %v2610
    %v2699 = vadd.f32 %v2693, %v2697
    %v2700 = vadd.f32 %v2694, %v2698
    %s2701 = sld [smem:[#allocation11 + $0x41]]
    %v2702 = vstv %s2701
    %v2703 = vmul.f32 %v2702, %v2615
    %v2704 = vmul.f32 %v2702, %v2616
    %v2705 = vadd.f32 %v2699, %v2703
    %v2706 = vadd.f32 %v2700, %v2704
    %s2707 = sld [smem:[#allocation11 + $0x42]]
    %v2708 = vstv %s2707
    %v2709 = vmul.f32 %v2708, %v2617
    %v2710 = vmul.f32 %v2708, %v2618
    %v2711 = vadd.f32 %v2705, %v2709
    %v2712 = vadd.f32 %v2706, %v2710
    %s2713 = sld [smem:[#allocation11 + $0x43]]
    %v2714 = vstv %s2713
    %v2715 = vmul.f32 %v2714, %v1665
    %v2716 = vmul.f32 %v2714, %v1666
    %v2717 = vadd.f32 %v2711, %v2715
    %v2718 = vadd.f32 %v2712, %v2716
    %s2719 = sld [smem:[#allocation11 + $0x44]]
    %v2720 = vstv %s2719
    %v2721 = vmul.f32 %v2720, %v2619
    %v2722 = vmul.f32 %v2720, %v2620
    %v2723 = vadd.f32 %v2717, %v2721
    %v2724 = vadd.f32 %v2718, %v2722
    %s2725 = sld [smem:[#allocation11 + $0x45]]
    %v2726 = vstv %s2725
    %v2727 = vmul.f32 %v2726, %v2625
    %v2728 = vmul.f32 %v2726, %v2626
    %v2729 = vadd.f32 %v2723, %v2727
    %v2730 = vadd.f32 %v2724, %v2728
    %s2731 = sld [smem:[#allocation11 + $0x46]]
    %v2732 = vstv %s2731
    %v2733 = vmul.f32 %v2732, %v2627
    %v2734 = vmul.f32 %v2732, %v2628
    %v2735 = vadd.f32 %v2729, %v2733
    %v2736 = vadd.f32 %v2730, %v2734
    %s2737 = sld [smem:[#allocation11 + $0x47]]
    %v2738 = vstv %s2737
    %v2739 = vmul.f32 %v2738, %v2633
    %v2740 = vmul.f32 %v2738, %v2634
    %v2741 = vadd.f32 %v2735, %v2739
    %v2742 = vadd.f32 %v2736, %v2740
    %s2743 = sld [smem:[#allocation11 + $0x63]]
    %v2744 = vstv %s2743
    %v2745 = vmul.f32 %v2744, %v2607
    %v2746 = vmul.f32 %v2744, %v2608
    %v2747 = vadd.f32 %v2499, %v2745
    %v2748 = vadd.f32 %v2500, %v2746
    %s2749 = sld [smem:[#allocation11 + $0x64]]
    %v2750 = vstv %s2749
    %v2751 = vmul.f32 %v2750, %v2609
    %v2752 = vmul.f32 %v2750, %v2610
    %v2753 = vadd.f32 %v2747, %v2751
    %v2754 = vadd.f32 %v2748, %v2752
    %s2755 = sld [smem:[#allocation11 + $0x65]]
    %v2756 = vstv %s2755
    %v2757 = vmul.f32 %v2756, %v2615
    %v2758 = vmul.f32 %v2756, %v2616
    %v2759 = vadd.f32 %v2753, %v2757
    %v2760 = vadd.f32 %v2754, %v2758
    %s2761 = sld [smem:[#allocation11 + $0x66]]
    %v2762 = vstv %s2761
    %v2763 = vmul.f32 %v2762, %v2617
    %v2764 = vmul.f32 %v2762, %v2618
    %v2765 = vadd.f32 %v2759, %v2763
    %v2766 = vadd.f32 %v2760, %v2764
    %s2767 = sld [smem:[#allocation11 + $0x67]]
    %v2768 = vstv %s2767
    %v2769 = vmul.f32 %v2768, %v1665
    %v2770 = vmul.f32 %v2768, %v1666
    %v2771 = vadd.f32 %v2765, %v2769
    %v2772 = vadd.f32 %v2766, %v2770
    %s2773 = sld [smem:[#allocation11 + $0x68]]
    %v2774 = vstv %s2773
    %v2775 = vmul.f32 %v2774, %v2619
    %v2776 = vmul.f32 %v2774, %v2620
    %v2777 = vadd.f32 %v2771, %v2775
    %v2778 = vadd.f32 %v2772, %v2776
    %s2779 = sld [smem:[#allocation11 + $0x69]]
    %v2780 = vstv %s2779
    %v2781 = vmul.f32 %v2780, %v2625
    %v2782 = vmul.f32 %v2780, %v2626
    %v2783 = vadd.f32 %v2777, %v2781
    %v2784 = vadd.f32 %v2778, %v2782
    %s2785 = sld [smem:[#allocation11 + $0x6a]]
    %v2786 = vstv %s2785
    %v2787 = vmul.f32 %v2786, %v2627
    %v2788 = vmul.f32 %v2786, %v2628
    %v2789 = vadd.f32 %v2783, %v2787
    %v2790 = vadd.f32 %v2784, %v2788
    %s2791 = sld [smem:[#allocation11 + $0x6b]]
    %v2792 = vstv %s2791
    %v2793 = vmul.f32 %v2792, %v2633
    %v2794 = vmul.f32 %v2792, %v2634
    %v2795 = vadd.f32 %v2789, %v2793
    %v2796 = vadd.f32 %v2790, %v2794
    %s2797 = sld [smem:[#allocation11 + $0x87]]
    %v2798 = vstv %s2797
    %v2799 = vmul.f32 %v2798, %v2607
    %v2800 = vmul.f32 %v2798, %v2608
    %v2801 = vadd.f32 %v2553, %v2799
    %v2802 = vadd.f32 %v2554, %v2800
    %s2803 = sld [smem:[#allocation11 + $0x88]]
    %v2804 = vstv %s2803
    %v2805 = vmul.f32 %v2804, %v2609
    %v2806 = vmul.f32 %v2804, %v2610
    %v2807 = vadd.f32 %v2801, %v2805
    %v2808 = vadd.f32 %v2802, %v2806
    %s2809 = sld [smem:[#allocation11 + $0x89]]
    %v2810 = vstv %s2809
    %v2811 = vmul.f32 %v2810, %v2615
    %v2812 = vmul.f32 %v2810, %v2616
    %v2813 = vadd.f32 %v2807, %v2811
    %v2814 = vadd.f32 %v2808, %v2812
    %s2815 = sld [smem:[#allocation11 + $0x8a]]
    %v2816 = vstv %s2815
    %v2817 = vmul.f32 %v2816, %v2617
    %v2818 = vmul.f32 %v2816, %v2618
    %v2819 = vadd.f32 %v2813, %v2817
    %v2820 = vadd.f32 %v2814, %v2818
    %s2821 = sld [smem:[#allocation11 + $0x8b]]
    %v2822 = vstv %s2821
    %v2823 = vmul.f32 %v2822, %v1665
    %v2824 = vmul.f32 %v2822, %v1666
    %v2825 = vadd.f32 %v2819, %v2823
    %v2826 = vadd.f32 %v2820, %v2824
    %s2827 = sld [smem:[#allocation11 + $0x8c]]
    %v2828 = vstv %s2827
    %v2829 = vmul.f32 %v2828, %v2619
    %v2830 = vmul.f32 %v2828, %v2620
    %v2831 = vadd.f32 %v2825, %v2829
    %v2832 = vadd.f32 %v2826, %v2830
    %s2833 = sld [smem:[#allocation11 + $0x8d]]
    %v2834 = vstv %s2833
    %v2835 = vmul.f32 %v2834, %v2625
    %v2836 = vmul.f32 %v2834, %v2626
    %v2837 = vadd.f32 %v2831, %v2835
    %v2838 = vadd.f32 %v2832, %v2836
    %s2839 = sld [smem:[#allocation11 + $0x8e]]
    %v2840 = vstv %s2839
    %v2841 = vmul.f32 %v2840, %v2627
    %v2842 = vmul.f32 %v2840, %v2628
    %v2843 = vadd.f32 %v2837, %v2841
    %v2844 = vadd.f32 %v2838, %v2842
    %s2845 = sld [smem:[#allocation11 + $0x8f]]
    %v2846 = vstv %s2845
    %v2847 = vmul.f32 %v2846, %v2633
    %v2848 = vmul.f32 %v2846, %v2634
    %v2849 = vadd.f32 %v2843, %v2847
    %v2850 = vadd.f32 %v2844, %v2848
    %v2851 = vsel %vm1549, %v2687, 0.0
    %v2852 = vsel %vm1549, %v2688, 0.0
    %v2853 = vadd.f32 %v2851, %v2852
    %2854 = vadd.xlane.f32.xlu0 %v2853
    %v2855 = vpop.xlane.xlu0 %2854
    %v2856 = vmul.f32 %v2855, %v1555
    %v2857 = vsub.f32 %v2687, %v2856
    %v2858 = vsub.f32 %v2688, %v2856
    %v2859 = vmul.f32 %v2857, %v2857
    %v2860 = vmul.f32 %v2858, %v2858
    %v2861 = vsel %vm1549, %v2859, 0.0
    %v2862 = vsel %vm1549, %v2860, 0.0
    %v2863 = vadd.f32 %v2861, %v2862
    %2864 = vadd.xlane.f32.xlu0 %v2863
    %v2865 = vpop.xlane.xlu0 %2864
    %v2866 = vmul.f32 %v2865, %v1555
    %s2867 = sld [smem:[#allocation12]]
    %v2868 = vadd.f32 %v2866, 1e-05
    %v2869 = vrsqrt.pop %v2868
    %v2870 = vstv %s2867
    %v2871 = vmul.f32 %v2870, %v2869
    %v2872 = vmul.f32 %v2857, %v2871
    %v2873 = vmul.f32 %v2858, %v2871
    %s2874 = sld [smem:[#allocation14]]
    %v2875 = vstv %s2874
    %v2876 = vadd.f32 %v2872, %v2875
    %v2877 = vadd.f32 %v2873, %v2875
    %v2878 = vsel %vm1549, %v2741, 0.0
    %v2879 = vsel %vm1549, %v2742, 0.0
    %v2880 = vadd.f32 %v2878, %v2879
    %2881 = vadd.xlane.f32.xlu0 %v2880
    %v2882 = vpop.xlane.xlu0 %2881
    %v2883 = vmul.f32 %v2882, %v1555
    %v2884 = vsub.f32 %v2741, %v2883
    %v2885 = vsub.f32 %v2742, %v2883
    %v2886 = vmul.f32 %v2884, %v2884
    %v2887 = vmul.f32 %v2885, %v2885
    %v2888 = vsel %vm1549, %v2886, 0.0
    %v2889 = vsel %vm1549, %v2887, 0.0
    %v2890 = vadd.f32 %v2888, %v2889
    %2891 = vadd.xlane.f32.xlu0 %v2890
    %v2892 = vpop.xlane.xlu0 %2891
    %v2893 = vmul.f32 %v2892, %v1555
    %s2894 = sld [smem:[#allocation12 + $0x1]]
    %v2895 = vadd.f32 %v2893, 1e-05
    %v2896 = vrsqrt.pop %v2895
    %v2897 = vstv %s2894
    %v2898 = vmul.f32 %v2897, %v2896
    %v2899 = vmul.f32 %v2884, %v2898
    %v2900 = vmul.f32 %v2885, %v2898
    %s2901 = sld [smem:[#allocation14 + $0x1]]
    %v2902 = vstv %s2901
    %v2903 = vadd.f32 %v2899, %v2902
    %v2904 = vadd.f32 %v2900, %v2902
    %v2905 = vsel %vm1549, %v2795, 0.0
    %v2906 = vsel %vm1549, %v2796, 0.0
    %v2907 = vadd.f32 %v2905, %v2906
    %2908 = vadd.xlane.f32.xlu0 %v2907
    %v2909 = vpop.xlane.xlu0 %2908
    %v2910 = vmul.f32 %v2909, %v1555
    %v2911 = vsub.f32 %v2795, %v2910
    %v2912 = vsub.f32 %v2796, %v2910
    %v2913 = vmul.f32 %v2911, %v2911
    %v2914 = vmul.f32 %v2912, %v2912
    %v2915 = vsel %vm1549, %v2913, 0.0
    %v2916 = vsel %vm1549, %v2914, 0.0
    %v2917 = vadd.f32 %v2915, %v2916
    %2918 = vadd.xlane.f32.xlu0 %v2917
    %v2919 = vpop.xlane.xlu0 %2918
    %v2920 = vmul.f32 %v2919, %v1555
    %s2921 = sld [smem:[#allocation12 + $0x2]]
    %v2922 = vadd.f32 %v2920, 1e-05
    %v2923 = vrsqrt.pop %v2922
    %v2924 = vstv %s2921
    %v2925 = vmul.f32 %v2924, %v2923
    %v2926 = vmul.f32 %v2911, %v2925
    %v2927 = vmul.f32 %v2912, %v2925
    %s2928 = sld [smem:[#allocation14 + $0x2]]
    %v2929 = vstv %s2928
    %v2930 = vadd.f32 %v2926, %v2929
    %v2931 = vadd.f32 %v2927, %v2929
    %v2932 = vsel %vm1549, %v2849, 0.0
    %v2933 = vsel %vm1549, %v2850, 0.0
    %v2934 = vadd.f32 %v2932, %v2933
    %2935 = vadd.xlane.f32.xlu0 %v2934
    %v2936 = vpop.xlane.xlu0 %2935
    %v2937 = vmul.f32 %v2936, %v1555
    %v2938 = vsub.f32 %v2849, %v2937
    %v2939 = vsub.f32 %v2850, %v2937
    %v2940 = vmul.f32 %v2938, %v2938
    %v2941 = vmul.f32 %v2939, %v2939
    %v2942 = vsel %vm1549, %v2940, 0.0
    %v2943 = vsel %vm1549, %v2941, 0.0
    %v2944 = vadd.f32 %v2942, %v2943
    %2945 = vadd.xlane.f32.xlu0 %v2944
    %v2946 = vpop.xlane.xlu0 %2945
    %v2947 = vmul.f32 %v2946, %v1555
    %s2948 = sld [smem:[#allocation12 + $0x3]]
    %v2949 = vadd.f32 %v2947, 1e-05
    %v2950 = vrsqrt.pop %v2949
    %v2951 = vstv %s2948
    %v2952 = vmul.f32 %v2951, %v2950
    %v2953 = vmul.f32 %v2938, %v2952
    %v2954 = vmul.f32 %v2939, %v2952
    %s2955 = sld [smem:[#allocation14 + $0x3]]
    %v2956 = vstv %s2955
    %v2957 = vadd.f32 %v2953, %v2956
    %v2958 = vadd.f32 %v2954, %v2956
    %v2959 = vadd.f32 %v2876, %v153
    %v2960 = vadd.f32 %v2877, %v154
    %v2963 = vcombine.low %v2959, %v2960
    %v2965 = vunpack.c.l.s4 1983009808
    %v2966 = vunpack.c.0.s8 %v2965
    %v2967 = vlaneseq
    %v2968 = vshrl.u32 %v2967, 7
    %v2969 = vsub.s32 %v2966, %v2968
    %v2970 = vrot.slane %v2963, %v2969
    %2972 = vst [vmem:[#allocation15] sm:$0xf] %v2970
    %v2973 = vadd.f32 %v2903, %v515
    %v2974 = vadd.f32 %v2904, %v516
    %v2977 = vcombine.low %v2973, %v2974
    %v2979 = vunpack.c.l.s4 1983009808
    %v2980 = vunpack.c.0.s8 %v2979
    %v2981 = vlaneseq
    %v2982 = vshrl.u32 %v2981, 7
    %v2983 = vsub.s32 %v2980, %v2982
    %v2984 = vrot.slane %v2977, %v2983
    %s2986 = scalar_lea.vmem [#allocation15], 4
    %2987 = vst [vmem:[%s2986] sm:$0xf] %v2984
    %v2988 = vadd.f32 %v2930, %v862
    %v2989 = vadd.f32 %v2931, %v863
    %v2992 = vcombine.low %v2988, %v2989
    %v2994 = vunpack.c.l.s4 1983009808
    %v2995 = vunpack.c.0.s8 %v2994
    %v2996 = vlaneseq
    %v2997 = vshrl.u32 %v2996, 7
    %v2998 = vsub.s32 %v2995, %v2997
    %v2999 = vrot.slane %v2992, %v2998
    %s3001 = scalar_lea.vmem [#allocation15], 8
    %3002 = vst [vmem:[%s3001] sm:$0xf] %v2999
    %v3003 = vadd.f32 %v2957, %v1209
    %v3004 = vadd.f32 %v2958, %v1210
    %v3007 = vcombine.low %v3003, %v3004
    %v3009 = vunpack.c.l.s4 1983009808
    %v3010 = vunpack.c.0.s8 %v3009
    %v3011 = vlaneseq
    %v3012 = vshrl.u32 %v3011, 7
    %v3013 = vsub.s32 %v3010, %v3012
    %v3014 = vrot.slane %v3007, %v3013
    %s3016 = scalar_lea.vmem [#allocation15], 12
    %3017 = vst [vmem:[%s3016] sm:$0xf] %v3014
    // Predicated region
    $region58: #{tpu_custom_call.1} parent=1 // pred_check
      _
    $region59: #{tpu_custom_call.1} parent=1 // pred_check_branch
      %3019 = sbr.rel (0) target = $region61
    $region60: #{tpu_custom_call.1} parent=1 // pred_region
      %s3021 = ssub.s32 256, 256
      %3022 = vsyncadd [#allocation4], %s3021
      %s3023 = sshll.u32 [#allocation15], 4
      %s3024 = int_to_ptr.vmem [resolvable:$true] %s3023
      %3029 = dma.vmem_to_hbm [thread:$0]  %s3024, 256, %s7, [#allocation4], 64, 64, 4
    $region61: #{tpu_custom_call.1} parent=1 // pred_fallthru
      _
    // Predicated region
    $region62: #{tpu_custom_call.1} parent=1 // pred_check
      _
    $region63: #{tpu_custom_call.1} parent=1 // pred_check_branch
      %3031 = sbr.rel (0) target = $region65
    $region64: #{tpu_custom_call.1} parent=1 // pred_region
      %3032 = dma.done [#allocation4], 256
    $region65: #{tpu_custom_call.1} parent=1 // pred_fallthru
      _
    %3033 = vsyncpa [#allocation3], 1
    %3034 = vsyncpa [#allocation4], 1
    %3035 = vsyncpa [#allocation5], 1
    %3036 = vsyncpa [#allocation6], 1
    %3037 = vsyncpa [#allocation10], 1
    %3038 = vsyncpa [#allocation13], 1

</llo_original>
